<compile_context>
chip_gen: v5e
topology: v5e:2x2
jax: 0.10.0
libtpu: 0.0.40
codegen_flags: <defaults>
</compile_context>

<pallas_src>
import functools

import jax
import jax.numpy as jnp
from jax.experimental import pallas as pl
from jax.experimental.pallas import tpu as pltpu

LN_EPS = 1e-8
NEG_INF = float(-(2 ** 32) + 1)


# ----------------------------- in-kernel helpers ------------------------------------

def _layer_norm(x, gamma, beta):
    # Kyubyong-style layer_normalization: (x - mean) / (std + eps), std unbiased (n-1).
    n = x.shape[-1]
    mean = jnp.mean(x, axis=-1, keepdims=True)
    var = jnp.sum((x - mean) ** 2, axis=-1, keepdims=True) * (1.0 / (n - 1))
    inv = pl.reciprocal(jnp.sqrt(var) + LN_EPS, approx=True)
    return gamma * ((x - mean) * inv) + beta


# ----------------------------- fused encoder kernel ---------------------------------

def _encoder_kernel(num_heads,
                    vis_ref, mask_ref,
                    vw1_ref, vb1_ref, vw2_ref, vb2_ref, pos_ref,
                    wq_ref, bq_ref, wk_ref, bk_ref, wv_ref, bv_ref,
                    ag_ref, ab_ref,
                    fw1_ref, fb1_ref, fw2_ref, fb2_ref, fg_ref, fbt_ref,
                    o_ref):
    blk = pl.program_id(1)

    # ---- first block only: visual MLP + positional encoding, parked in the resident o_ref ----
    @pl.when(blk == 0)
    def _():
        xv = vis_ref[0]                                                      # (N, 2048) bf16
        h = jnp.dot(xv, vw1_ref[...], preferred_element_type=jnp.float32) + vb1_ref[...]
        h = jnp.maximum(h, 0.0)                                              # ReLU
        y = jnp.dot(h.astype(jnp.bfloat16), vw2_ref[...],
                    preferred_element_type=jnp.float32) + vb2_ref[...]
        # + positional encoding (embedding of arange(N)); positional dropout = identity.
        o_ref[0] = (y + pos_ref[...]).astype(o_ref.dtype)

    x = o_ref[0]                         # (N, H) f32 resident activation
    m = mask_ref[0]                      # (1, N) float mask (1 = keep, 0 = pad)
    n, hdim = x.shape
    dh = hdim // num_heads
    scale = 1.0 / (float(dh) ** 0.5)

    # ---- multi-head self-attention (head-batched, no per-head loop / k.T / concat) ----
    xb = x.astype(jnp.bfloat16)
    q = jnp.maximum(jnp.dot(xb, wq_ref[0], preferred_element_type=jnp.float32) + bq_ref[0], 0.0)
    k = jnp.maximum(jnp.dot(xb, wk_ref[0], preferred_element_type=jnp.float32) + bk_ref[0], 0.0)
    v = jnp.maximum(jnp.dot(xb, wv_ref[0], preferred_element_type=jnp.float32) + bv_ref[0], 0.0)

    qh = jnp.transpose(q.reshape(n, num_heads, dh), (1, 0, 2)).astype(jnp.bfloat16)  # (nh,N,dh)
    kh = jnp.transpose(k.reshape(n, num_heads, dh), (1, 0, 2)).astype(jnp.bfloat16)
    vh = jnp.transpose(v.reshape(n, num_heads, dh), (1, 0, 2)).astype(jnp.bfloat16)

    s = jnp.einsum('hqd,hkd->hqk', qh, kh, preferred_element_type=jnp.float32) * scale
    s = jnp.where(m == 0.0, NEG_INF, s)          # key masking, (1,N) broadcast over keys

    # hand-rolled softmax: max-subtract, exp, EUP reciprocal
    s_max = jnp.max(s, axis=-1, keepdims=True)
    p = jnp.exp(s - s_max)
    denom = jnp.sum(p, axis=-1, keepdims=True)
    p = p * pl.reciprocal(denom, approx=True)
    p = p * m.reshape(n, 1)                      # query masking
    # attention dropout: identity (inference)

    att = jnp.einsum('hqk,hkd->hqd', p.astype(jnp.bfloat16), vh,
                     preferred_element_type=jnp.float32)                     # (nh, N, dh)
    att = jnp.transpose(att, (1, 0, 2)).reshape(n, hdim)                     # (N, H)

    y = _layer_norm(att + x, ag_ref[0], ab_ref[0])                           # residual + LN

    # ---- position-wise feed-forward (1x1 convs == per-position Linear) ----
    yb = y.astype(jnp.bfloat16)
    h1 = jnp.maximum(jnp.dot(yb, fw1_ref[0], preferred_element_type=jnp.float32) + fb1_ref[0], 0.0)
    h2 = jnp.dot(h1.astype(jnp.bfloat16), fw2_ref[0],
                 preferred_element_type=jnp.float32) + fb2_ref[0]
    o_ref[0] = _layer_norm(h2 + y, fg_ref[0], fbt_ref[0]).astype(o_ref.dtype)


# ----------------------------- pallas_call wrapper -----------------------------------

def _rep_spec(shape):
    # constant block across the whole (batch, block) grid: vmlp weights, pos table
    nd = len(shape)
    return pl.BlockSpec(shape, lambda b, k, _nd=nd: (0,) * _nd)


def _per_batch_spec(shape):
    nd = len(shape)
    return pl.BlockSpec((1,) + tuple(shape[1:]), lambda b, k, _nd=nd: (b,) + (0,) * (_nd - 1))


def _per_block_spec(shape):
    # stacked per-layer weights streamed along the inner grid axis (double-buffered)
    nd = len(shape)
    return pl.BlockSpec((1,) + tuple(shape[1:]), lambda b, k, _nd=nd: (k,) + (0,) * (_nd - 1))


def att_model_self_vis(params, vis_fea, vis_mask, num_blocks, num_heads):
    B = vis_fea.shape[0]
    if vis_fea.ndim == 4:  # (B, R1, R2, 2048) -> (B, R1*R2, 2048)
        vis_fea = vis_fea.reshape(B, vis_fea.shape[1] * vis_fea.shape[2], vis_fea.shape[3])
    N = vis_fea.shape[1]
    H = params["v_w2"].shape[1]

    if vis_mask is None or vis_mask.size == 0:
        vis_mask = jnp.ones((B, N), jnp.float32)
    mask3 = vis_mask.astype(jnp.float32).reshape(B, 1, N)

    pos = params["pos_table"][:N].astype(jnp.float32)     # shared across the batch

    bf16 = jnp.bfloat16
    vis_bf = vis_fea.astype(bf16)                          # halves HBM->VMEM DMA of biggest input
    vw1 = params["v_w1"].astype(bf16)
    vw2 = params["v_w2"].astype(bf16)
    wq = params["wq"].astype(bf16)
    wk = params["wk"].astype(bf16)
    wv = params["wv"].astype(bf16)
    fw1 = params["f_w1"].astype(bf16)
    fw2 = params["f_w2"].astype(bf16)

    args = (vis_bf, mask3,
            vw1, params["v_b1"], vw2, params["v_b2"], pos,
            wq, params["bq"], wk, params["bk"], wv, params["bv"],
            params["att_gamma"], params["att_beta"],
            fw1, params["f_b1"], fw2, params["f_b2"],
            params["ff_gamma"], params["ff_beta"])

    in_specs = [
        _per_batch_spec(vis_bf.shape), _per_batch_spec(mask3.shape),
        _rep_spec(vw1.shape), _rep_spec(params["v_b1"].shape),
        _rep_spec(vw2.shape), _rep_spec(params["v_b2"].shape),
        _rep_spec(pos.shape),
        _per_block_spec(wq.shape), _per_block_spec(params["bq"].shape),
        _per_block_spec(wk.shape), _per_block_spec(params["bk"].shape),
        _per_block_spec(wv.shape), _per_block_spec(params["bv"].shape),
        _per_block_spec(params["att_gamma"].shape), _per_block_spec(params["att_beta"].shape),
        _per_block_spec(fw1.shape), _per_block_spec(params["f_b1"].shape),
        _per_block_spec(fw2.shape), _per_block_spec(params["f_b2"].shape),
        _per_block_spec(params["ff_gamma"].shape), _per_block_spec(params["ff_beta"].shape),
    ]

    kern = functools.partial(_encoder_kernel, num_heads)
    return pl.pallas_call(
        kern,
        out_shape=jax.ShapeDtypeStruct((B, N, H), jnp.float32),
        grid=(B, num_blocks),
        in_specs=in_specs,
        # output block index constant across the block axis -> activation stays resident in VMEM
        out_specs=pl.BlockSpec((1, N, H), lambda b, k: (b, 0, 0)),
        compiler_params=pltpu.CompilerParams(
            dimension_semantics=("parallel", "arbitrary"),   # batch axis megacore-parallel
            vmem_limit_bytes=64 * 1024 * 1024,
        ),
    )(*args)


# ----------------------------- parameters --------------------------------------------

def init_params(key, hidden, num_blocks, maxlen_v, in_dim=2048):
    counter = [0]

    def nrm(shape, scale=0.02):
        counter[0] += 1
        return scale * jax.random.normal(jax.random.fold_in(key, counter[0]), shape, jnp.float32)

    def z(*s):
        return jnp.zeros(s, jnp.float32)

    def o(*s):
        return jnp.ones(s, jnp.float32)

    nb, h = num_blocks, hidden
    return {
        "v_w1": nrm((in_dim, h)), "v_b1": z(1, h),
        "v_w2": nrm((h, h)),      "v_b2": z(1, h),
        "pos_table": nrm((maxlen_v, h)),
        # per-block weights stacked along a leading num_blocks axis (streamed in the kernel)
        "wq": nrm((nb, h, h)), "bq": z(nb, 1, h),
        "wk": nrm((nb, h, h)), "bk": z(nb, 1, h),
        "wv": nrm((nb, h, h)), "bv": z(nb, 1, h),
        "att_gamma": o(nb, 1, h), "att_beta": z(nb, 1, h),
        "f_w1": nrm((nb, h, 4 * h)), "f_b1": z(nb, 1, 4 * h),
        "f_w2": nrm((nb, 4 * h, h)), "f_b2": z(nb, 1, h),
        "ff_gamma": o(nb, 1, h), "ff_beta": z(nb, 1, h),
    }


# ----------------------------- demo --------------------------------------------------

if __name__ == "__main__":
    B, R1, R2, DIN = 2, 2, 4, 2048
    HIDDEN, NUM_BLOCKS, NUM_HEADS, MAXLEN_V = 32, 2, 4, 16

    key = jax.random.PRNGKey(0)
    k_fea, k_par = jax.random.split(key)

    vis_fea = jax.random.normal(k_fea, (B, R1, R2, DIN), jnp.float32)
    vis_mask = jnp.ones((B, R1 * R2), jnp.float32)

    params = init_params(k_par, HIDDEN, NUM_BLOCKS, MAXLEN_V, DIN)

    out = att_model_self_vis(params, vis_fea, vis_mask, NUM_BLOCKS, NUM_HEADS)
    out = jax.block_until_ready(out)

    assert out.shape == (B, R1 * R2, HIDDEN), out.shape
    assert bool(jnp.all(jnp.isfinite(out)))
    print("KERNEL_OK")
</pallas_src>

<mosaic_0001>
module attributes {stable_mosaic.version = 11 : i64} {
  func.func @_encoder_kernel(%arg0: i32, %arg1: i32, %arg2: memref<1x8x2048xbf16, #tpu.memory_space<vmem>>, %arg3: memref<1x1x8xf32, #tpu.memory_space<vmem>>, %arg4: memref<2048x32xbf16, #tpu.memory_space<vmem>>, %arg5: memref<1x32xf32, #tpu.memory_space<vmem>>, %arg6: memref<32x32xbf16, #tpu.memory_space<vmem>>, %arg7: memref<1x32xf32, #tpu.memory_space<vmem>>, %arg8: memref<8x32xf32, #tpu.memory_space<vmem>>, %arg9: memref<1x32x32xbf16, #tpu.memory_space<vmem>>, %arg10: memref<1x1x32xf32, #tpu.memory_space<vmem>>, %arg11: memref<1x32x32xbf16, #tpu.memory_space<vmem>>, %arg12: memref<1x1x32xf32, #tpu.memory_space<vmem>>, %arg13: memref<1x32x32xbf16, #tpu.memory_space<vmem>>, %arg14: memref<1x1x32xf32, #tpu.memory_space<vmem>>, %arg15: memref<1x1x32xf32, #tpu.memory_space<vmem>>, %arg16: memref<1x1x32xf32, #tpu.memory_space<vmem>>, %arg17: memref<1x32x128xbf16, #tpu.memory_space<vmem>>, %arg18: memref<1x1x128xf32, #tpu.memory_space<vmem>>, %arg19: memref<1x128x32xbf16, #tpu.memory_space<vmem>>, %arg20: memref<1x1x32xf32, #tpu.memory_space<vmem>>, %arg21: memref<1x1x32xf32, #tpu.memory_space<vmem>>, %arg22: memref<1x1x32xf32, #tpu.memory_space<vmem>>, %arg23: memref<1x8x32xf32, #tpu.memory_space<vmem>>) attributes {dimension_semantics = [#tpu.dimension_semantics<parallel>, #tpu.dimension_semantics<arbitrary>], iteration_bounds = array<i64: 2, 2>, scalar_prefetch = 0 : i64, scratch_operands = 0 : i64, tpu.core_type = #tpu.core_type<tc>, window_params = [{transform_indices = @transform_0, window_bounds = array<i64: 1, 8, 2048>}, {transform_indices = @transform_1, window_bounds = array<i64: 1, 1, 8>}, {pipeline_mode = #tpu.pipeline_mode<synchronous>, transform_indices = @transform_2, window_bounds = array<i64: 2048, 32>}, {pipeline_mode = #tpu.pipeline_mode<synchronous>, transform_indices = @transform_3, window_bounds = array<i64: 1, 32>}, {pipeline_mode = #tpu.pipeline_mode<synchronous>, transform_indices = @transform_4, window_bounds = array<i64: 32, 32>}, {pipeline_mode = #tpu.pipeline_mode<synchronous>, transform_indices = @transform_5, window_bounds = array<i64: 1, 32>}, {pipeline_mode = #tpu.pipeline_mode<synchronous>, transform_indices = @transform_6, window_bounds = array<i64: 8, 32>}, {transform_indices = @transform_7, window_bounds = array<i64: 1, 32, 32>}, {transform_indices = @transform_8, window_bounds = array<i64: 1, 1, 32>}, {transform_indices = @transform_9, window_bounds = array<i64: 1, 32, 32>}, {transform_indices = @transform_10, window_bounds = array<i64: 1, 1, 32>}, {transform_indices = @transform_11, window_bounds = array<i64: 1, 32, 32>}, {transform_indices = @transform_12, window_bounds = array<i64: 1, 1, 32>}, {transform_indices = @transform_13, window_bounds = array<i64: 1, 1, 32>}, {transform_indices = @transform_14, window_bounds = array<i64: 1, 1, 32>}, {transform_indices = @transform_15, window_bounds = array<i64: 1, 32, 128>}, {transform_indices = @transform_16, window_bounds = array<i64: 1, 1, 128>}, {transform_indices = @transform_17, window_bounds = array<i64: 1, 128, 32>}, {transform_indices = @transform_18, window_bounds = array<i64: 1, 1, 32>}, {transform_indices = @transform_19, window_bounds = array<i64: 1, 1, 32>}, {transform_indices = @transform_20, window_bounds = array<i64: 1, 1, 32>}, {transform_indices = @transform_21, window_bounds = array<i64: 1, 8, 32>}]} {
    %c0_i32 = arith.constant 0 : i32
    %0 = arith.cmpi eq, %arg1, %c0_i32 : i32
    %1 = arith.extui %0 : i1 to i32
    %c0_i32_0 = arith.constant 0 : i32
    %2 = arith.cmpi ne, %1, %c0_i32_0 : i32
    scf.if %2 {
      %c0_76 = arith.constant 0 : index
      %c0_77 = arith.constant 0 : index
      %c0_78 = arith.constant 0 : index
      %148 = vector.load %arg2[%c0_76, %c0_77, %c0_78] : memref<1x8x2048xbf16, #tpu.memory_space<vmem>>, vector<1x8x2048xbf16>
      %149 = vector.shape_cast %148 : vector<1x8x2048xbf16> to vector<8x2048xbf16>
      %c0_79 = arith.constant 0 : index
      %c0_80 = arith.constant 0 : index
      %150 = vector.load %arg4[%c0_79, %c0_80] : memref<2048x32xbf16, #tpu.memory_space<vmem>>, vector<2048x32xbf16>
      %cst_81 = arith.constant dense<0.000000e+00> : vector<8x32xf32>
      %151 = tpu.matmul %149, %150, %cst_81 {dimension_numbers = #tpu.dot_dimension_numbers<[1], [0], [0], [1], [0, 0, 1, 1], [], []>} : vector<8x2048xbf16>, vector<2048x32xbf16>, vector<8x32xf32> -> vector<8x32xf32>
      %c0_82 = arith.constant 0 : index
      %c0_83 = arith.constant 0 : index
      %152 = vector.load %arg5[%c0_82, %c0_83] : memref<1x32xf32, #tpu.memory_space<vmem>>, vector<1x32xf32>
      %153 = vector.broadcast %152 : vector<1x32xf32> to vector<8x32xf32>
      %154 = arith.addf %151, %153 : vector<8x32xf32>
      %cst_84 = arith.constant 0.000000e+00 : f32
      %155 = vector.broadcast %cst_84 : f32 to vector<8x32xf32>
      %156 = arith.maximumf %154, %155 : vector<8x32xf32>
      %157 = arith.truncf %156 : vector<8x32xf32> to vector<8x32xbf16>
      %c0_85 = arith.constant 0 : index
      %c0_86 = arith.constant 0 : index
      %158 = vector.load %arg6[%c0_85, %c0_86] : memref<32x32xbf16, #tpu.memory_space<vmem>>, vector<32x32xbf16>
      %cst_87 = arith.constant dense<0.000000e+00> : vector<8x32xf32>
      %159 = tpu.matmul %157, %158, %cst_87 {dimension_numbers = #tpu.dot_dimension_numbers<[1], [0], [0], [1], [0, 0, 1, 1], [], []>} : vector<8x32xbf16>, vector<32x32xbf16>, vector<8x32xf32> -> vector<8x32xf32>
      %c0_88 = arith.constant 0 : index
      %c0_89 = arith.constant 0 : index
      %160 = vector.load %arg7[%c0_88, %c0_89] : memref<1x32xf32, #tpu.memory_space<vmem>>, vector<1x32xf32>
      %161 = vector.broadcast %160 : vector<1x32xf32> to vector<8x32xf32>
      %162 = arith.addf %159, %161 : vector<8x32xf32>
      %c0_90 = arith.constant 0 : index
      %c0_91 = arith.constant 0 : index
      %163 = vector.load %arg8[%c0_90, %c0_91] : memref<8x32xf32, #tpu.memory_space<vmem>>, vector<8x32xf32>
      %164 = arith.addf %162, %163 : vector<8x32xf32>
      %c0_92 = arith.constant 0 : index
      %c0_93 = arith.constant 0 : index
      %c0_94 = arith.constant 0 : index
      %165 = vector.load %arg23[%c0_92, %c0_93, %c0_94] : memref<1x8x32xf32, #tpu.memory_space<vmem>>, vector<1x8x32xf32>
      %166 = vector.shape_cast %165 : vector<1x8x32xf32> to vector<8x32xf32>
      %167 = vector.shape_cast %164 : vector<8x32xf32> to vector<1x8x32xf32>
      tpu.vector_store %arg23[%c0_92, %c0_93, %c0_94], %167 {strides = array<i32>} : memref<1x8x32xf32, #tpu.memory_space<vmem>>, vector<1x8x32xf32>,
    } else {
    }
    %c0 = arith.constant 0 : index
    %c0_1 = arith.constant 0 : index
    %c0_2 = arith.constant 0 : index
    %3 = vector.load %arg23[%c0, %c0_1, %c0_2] : memref<1x8x32xf32, #tpu.memory_space<vmem>>, vector<1x8x32xf32>
    %4 = vector.shape_cast %3 : vector<1x8x32xf32> to vector<8x32xf32>
    %c0_3 = arith.constant 0 : index
    %c0_4 = arith.constant 0 : index
    %c0_5 = arith.constant 0 : index
    %5 = vector.load %arg3[%c0_3, %c0_4, %c0_5] : memref<1x1x8xf32, #tpu.memory_space<vmem>>, vector<1x1x8xf32>
    %6 = vector.shape_cast %5 : vector<1x1x8xf32> to vector<1x8xf32>
    %7 = arith.truncf %4 : vector<8x32xf32> to vector<8x32xbf16>
    %c0_6 = arith.constant 0 : index
    %c0_7 = arith.constant 0 : index
    %c0_8 = arith.constant 0 : index
    %8 = vector.load %arg9[%c0_6, %c0_7, %c0_8] : memref<1x32x32xbf16, #tpu.memory_space<vmem>>, vector<1x32x32xbf16>
    %9 = vector.shape_cast %8 : vector<1x32x32xbf16> to vector<32x32xbf16>
    %cst = arith.constant dense<0.000000e+00> : vector<8x32xf32>
    %10 = tpu.matmul %7, %9, %cst {dimension_numbers = #tpu.dot_dimension_numbers<[1], [0], [0], [1], [0, 0, 1, 1], [], []>} : vector<8x32xbf16>, vector<32x32xbf16>, vector<8x32xf32> -> vector<8x32xf32>
    %c0_9 = arith.constant 0 : index
    %c0_10 = arith.constant 0 : index
    %c0_11 = arith.constant 0 : index
    %11 = vector.load %arg10[%c0_9, %c0_10, %c0_11] : memref<1x1x32xf32, #tpu.memory_space<vmem>>, vector<1x1x32xf32>
    %12 = vector.shape_cast %11 : vector<1x1x32xf32> to vector<1x32xf32>
    %13 = vector.broadcast %12 : vector<1x32xf32> to vector<8x32xf32>
    %14 = arith.addf %10, %13 : vector<8x32xf32>
    %cst_12 = arith.constant 0.000000e+00 : f32
    %15 = vector.broadcast %cst_12 : f32 to vector<8x32xf32>
    %16 = arith.maximumf %14, %15 : vector<8x32xf32>
    %c0_13 = arith.constant 0 : index
    %c0_14 = arith.constant 0 : index
    %c0_15 = arith.constant 0 : index
    %17 = vector.load %arg11[%c0_13, %c0_14, %c0_15] : memref<1x32x32xbf16, #tpu.memory_space<vmem>>, vector<1x32x32xbf16>
    %18 = vector.shape_cast %17 : vector<1x32x32xbf16> to vector<32x32xbf16>
    %cst_16 = arith.constant dense<0.000000e+00> : vector<8x32xf32>
    %19 = tpu.matmul %7, %18, %cst_16 {dimension_numbers = #tpu.dot_dimension_numbers<[1], [0], [0], [1], [0, 0, 1, 1], [], []>} : vector<8x32xbf16>, vector<32x32xbf16>, vector<8x32xf32> -> vector<8x32xf32>
    %c0_17 = arith.constant 0 : index
    %c0_18 = arith.constant 0 : index
    %c0_19 = arith.constant 0 : index
    %20 = vector.load %arg12[%c0_17, %c0_18, %c0_19] : memref<1x1x32xf32, #tpu.memory_space<vmem>>, vector<1x1x32xf32>
    %21 = vector.shape_cast %20 : vector<1x1x32xf32> to vector<1x32xf32>
    %22 = vector.broadcast %21 : vector<1x32xf32> to vector<8x32xf32>
    %23 = arith.addf %19, %22 : vector<8x32xf32>
    %cst_20 = arith.constant 0.000000e+00 : f32
    %24 = vector.broadcast %cst_20 : f32 to vector<8x32xf32>
    %25 = arith.maximumf %23, %24 : vector<8x32xf32>
    %c0_21 = arith.constant 0 : index
    %c0_22 = arith.constant 0 : index
    %c0_23 = arith.constant 0 : index
    %26 = vector.load %arg13[%c0_21, %c0_22, %c0_23] : memref<1x32x32xbf16, #tpu.memory_space<vmem>>, vector<1x32x32xbf16>
    %27 = vector.shape_cast %26 : vector<1x32x32xbf16> to vector<32x32xbf16>
    %cst_24 = arith.constant dense<0.000000e+00> : vector<8x32xf32>
    %28 = tpu.matmul %7, %27, %cst_24 {dimension_numbers = #tpu.dot_dimension_numbers<[1], [0], [0], [1], [0, 0, 1, 1], [], []>} : vector<8x32xbf16>, vector<32x32xbf16>, vector<8x32xf32> -> vector<8x32xf32>
    %c0_25 = arith.constant 0 : index
    %c0_26 = arith.constant 0 : index
    %c0_27 = arith.constant 0 : index
    %29 = vector.load %arg14[%c0_25, %c0_26, %c0_27] : memref<1x1x32xf32, #tpu.memory_space<vmem>>, vector<1x1x32xf32>
    %30 = vector.shape_cast %29 : vector<1x1x32xf32> to vector<1x32xf32>
    %31 = vector.broadcast %30 : vector<1x32xf32> to vector<8x32xf32>
    %32 = arith.addf %28, %31 : vector<8x32xf32>
    %cst_28 = arith.constant 0.000000e+00 : f32
    %33 = vector.broadcast %cst_28 : f32 to vector<8x32xf32>
    %34 = arith.maximumf %32, %33 : vector<8x32xf32>
    %35 = vector.shape_cast %16 : vector<8x32xf32> to vector<8x4x8xf32>
    %36 = tpu.transpose %35, [1, 0, 2] : vector<8x4x8xf32> -> vector<4x8x8xf32>
    %37 = arith.truncf %36 : vector<4x8x8xf32> to vector<4x8x8xbf16>
    %38 = vector.shape_cast %25 : vector<8x32xf32> to vector<8x4x8xf32>
    %39 = tpu.transpose %38, [1, 0, 2] : vector<8x4x8xf32> -> vector<4x8x8xf32>
    %40 = arith.truncf %39 : vector<4x8x8xf32> to vector<4x8x8xbf16>
    %41 = vector.shape_cast %34 : vector<8x32xf32> to vector<8x4x8xf32>
    %42 = tpu.transpose %41, [1, 0, 2] : vector<8x4x8xf32> -> vector<4x8x8xf32>
    %43 = arith.truncf %42 : vector<4x8x8xf32> to vector<4x8x8xbf16>
    "tpu.trace_start"() <{level = 10 : i32, message = "hqd,hkd->hqk"}> : () -> ()
    %cst_29 = arith.constant dense<0.000000e+00> : vector<4x8x8xf32>
    %44 = tpu.matmul %37, %40, %cst_29 {dimension_numbers = #tpu.dot_dimension_numbers<[2], [2], [1], [1], [0, 0, 0, 1, 1, 1], [0], [0]>} : vector<4x8x8xbf16>, vector<4x8x8xbf16>, vector<4x8x8xf32> -> vector<4x8x8xf32>
    "tpu.trace_stop"() : () -> ()
    %cst_30 = arith.constant 0.353553385 : f32
    %45 = vector.broadcast %cst_30 : f32 to vector<4x8x8xf32>
    %46 = arith.mulf %44, %45 : vector<4x8x8xf32>
    %cst_31 = arith.constant 0.000000e+00 : f32
    %47 = vector.broadcast %cst_31 : f32 to vector<1x8xf32>
    %48 = arith.cmpf oeq, %6, %47 : vector<1x8xf32>
    %cst_32 = arith.constant -4.2949673E+9 : f32
    %49 = vector.shape_cast %48 : vector<1x8xi1> to vector<1x1x8xi1>
    %50 = vector.broadcast %49 : vector<1x1x8xi1> to vector<4x8x8xi1>
    %51 = vector.broadcast %cst_32 : f32 to vector<4x8x8xf32>
    %52 = arith.select %50, %51, %46 : vector<4x8x8xi1>, vector<4x8x8xf32>
    %cst_33 = arith.constant dense<0xFF800000> : vector<4x8xf32>
    %53 = vector.multi_reduction <maximumf>, %52, %cst_33 [2] : vector<4x8x8xf32> to vector<4x8xf32>
    %54 = vector.shape_cast %53 : vector<4x8xf32> to vector<4x8x1xf32>
    %55 = vector.broadcast %54 : vector<4x8x1xf32> to vector<4x8x8xf32>
    %56 = arith.subf %52, %55 : vector<4x8x8xf32>
    %57 = math.exp %56 : vector<4x8x8xf32>
    %cst_34 = arith.constant dense<0.000000e+00> : vector<4x8xf32>
    %58 = vector.multi_reduction <add>, %57, %cst_34 [2] : vector<4x8x8xf32> to vector<4x8xf32>
    %59 = vector.shape_cast %58 : vector<4x8xf32> to vector<4x8x1xf32>
    %60 = tpu.reciprocal %59 {approx = true} : vector<4x8x1xf32> -> vector<4x8x1xf32>
    %61 = vector.broadcast %60 : vector<4x8x1xf32> to vector<4x8x8xf32>
    %62 = arith.mulf %57, %61 : vector<4x8x8xf32>
    %63 = vector.shape_cast %6 : vector<1x8xf32> to vector<8x1xf32>
    %64 = vector.shape_cast %63 : vector<8x1xf32> to vector<1x8x1xf32>
    %65 = vector.broadcast %64 : vector<1x8x1xf32> to vector<4x8x8xf32>
    %66 = arith.mulf %62, %65 : vector<4x8x8xf32>
    %67 = arith.truncf %66 : vector<4x8x8xf32> to vector<4x8x8xbf16>
    "tpu.trace_start"() <{level = 10 : i32, message = "hqk,hkd->hqd"}> : () -> ()
    %cst_35 = arith.constant dense<0.000000e+00> : vector<4x8x8xf32>
    %68 = tpu.matmul %67, %43, %cst_35 {dimension_numbers = #tpu.dot_dimension_numbers<[2], [1], [1], [2], [0, 0, 0, 1, 1, 2], [0], [0]>} : vector<4x8x8xbf16>, vector<4x8x8xbf16>, vector<4x8x8xf32> -> vector<4x8x8xf32>
    "tpu.trace_stop"() : () -> ()
    %69 = tpu.transpose %68, [1, 0, 2] : vector<4x8x8xf32> -> vector<8x4x8xf32>
    %70 = vector.shape_cast %69 : vector<8x4x8xf32> to vector<8x32xf32>
    %71 = arith.addf %70, %4 : vector<8x32xf32>
    %c0_36 = arith.constant 0 : index
    %c0_37 = arith.constant 0 : index
    %c0_38 = arith.constant 0 : index
    %72 = vector.load %arg15[%c0_36, %c0_37, %c0_38] : memref<1x1x32xf32, #tpu.memory_space<vmem>>, vector<1x1x32xf32>
    %73 = vector.shape_cast %72 : vector<1x1x32xf32> to vector<1x32xf32>
    %c0_39 = arith.constant 0 : index
    %c0_40 = arith.constant 0 : index
    %c0_41 = arith.constant 0 : index
    %74 = vector.load %arg16[%c0_39, %c0_40, %c0_41] : memref<1x1x32xf32, #tpu.memory_space<vmem>>, vector<1x1x32xf32>
    %75 = vector.shape_cast %74 : vector<1x1x32xf32> to vector<1x32xf32>
    %cst_42 = arith.constant dense<0.000000e+00> : vector<8xf32>
    %76 = vector.multi_reduction <add>, %71, %cst_42 [1] : vector<8x32xf32> to vector<8xf32>
    %77 = vector.shape_cast %76 : vector<8xf32> to vector<8x1xf32>
    %cst_43 = arith.constant 3.200000e+01 : f32
    %78 = vector.broadcast %cst_43 : f32 to vector<8x1xf32>
    %79 = arith.divf %77, %78 : vector<8x1xf32>
    %80 = vector.broadcast %79 : vector<8x1xf32> to vector<8x32xf32>
    %81 = arith.subf %71, %80 : vector<8x32xf32>
    %82 = arith.mulf %81, %81 : vector<8x32xf32>
    %cst_44 = arith.constant dense<0.000000e+00> : vector<8xf32>
    %83 = vector.multi_reduction <add>, %82, %cst_44 [1] : vector<8x32xf32> to vector<8xf32>
    %84 = vector.shape_cast %83 : vector<8xf32> to vector<8x1xf32>
    %cst_45 = arith.constant 0.0322580636 : f32
    %85 = vector.broadcast %cst_45 : f32 to vector<8x1xf32>
    %86 = arith.mulf %84, %85 : vector<8x1xf32>
    %87 = math.sqrt %86 : vector<8x1xf32>
    %cst_46 = arith.constant 9.99999993E-9 : f32
    %88 = vector.broadcast %cst_46 : f32 to vector<8x1xf32>
    %89 = arith.addf %87, %88 : vector<8x1xf32>
    %90 = tpu.reciprocal %89 {approx = true} : vector<8x1xf32> -> vector<8x1xf32>
    %91 = vector.broadcast %79 : vector<8x1xf32> to vector<8x32xf32>
    %92 = arith.subf %71, %91 : vector<8x32xf32>
    %93 = vector.broadcast %90 : vector<8x1xf32> to vector<8x32xf32>
    %94 = arith.mulf %92, %93 : vector<8x32xf32>
    %95 = vector.broadcast %73 : vector<1x32xf32> to vector<8x32xf32>
    %96 = arith.mulf %95, %94 : vector<8x32xf32>
    %97 = vector.broadcast %75 : vector<1x32xf32> to vector<8x32xf32>
    %98 = arith.addf %96, %97 : vector<8x32xf32>
    %99 = arith.truncf %98 : vector<8x32xf32> to vector<8x32xbf16>
    %c0_47 = arith.constant 0 : index
    %c0_48 = arith.constant 0 : index
    %c0_49 = arith.constant 0 : index
    %100 = vector.load %arg17[%c0_47, %c0_48, %c0_49] : memref<1x32x128xbf16, #tpu.memory_space<vmem>>, vector<1x32x128xbf16>
    %101 = vector.shape_cast %100 : vector<1x32x128xbf16> to vector<32x128xbf16>
    %cst_50 = arith.constant dense<0.000000e+00> : vector<8x128xf32>
    %102 = tpu.matmul %99, %101, %cst_50 {dimension_numbers = #tpu.dot_dimension_numbers<[1], [0], [0], [1], [0, 0, 1, 1], [], []>} : vector<8x32xbf16>, vector<32x128xbf16>, vector<8x128xf32> -> vector<8x128xf32>
    %c0_51 = arith.constant 0 : index
    %c0_52 = arith.constant 0 : index
    %c0_53 = arith.constant 0 : index
    %103 = vector.load %arg18[%c0_51, %c0_52, %c0_53] : memref<1x1x128xf32, #tpu.memory_space<vmem>>, vector<1x1x128xf32>
    %104 = vector.shape_cast %103 : vector<1x1x128xf32> to vector<1x128xf32>
    %105 = vector.broadcast %104 : vector<1x128xf32> to vector<8x128xf32>
    %106 = arith.addf %102, %105 : vector<8x128xf32>
    %cst_54 = arith.constant 0.000000e+00 : f32
    %107 = vector.broadcast %cst_54 : f32 to vector<8x128xf32>
    %108 = arith.maximumf %106, %107 : vector<8x128xf32>
    %109 = arith.truncf %108 : vector<8x128xf32> to vector<8x128xbf16>
    %c0_55 = arith.constant 0 : index
    %c0_56 = arith.constant 0 : index
    %c0_57 = arith.constant 0 : index
    %110 = vector.load %arg19[%c0_55, %c0_56, %c0_57] : memref<1x128x32xbf16, #tpu.memory_space<vmem>>, vector<1x128x32xbf16>
    %111 = vector.shape_cast %110 : vector<1x128x32xbf16> to vector<128x32xbf16>
    %cst_58 = arith.constant dense<0.000000e+00> : vector<8x32xf32>
    %112 = tpu.matmul %109, %111, %cst_58 {dimension_numbers = #tpu.dot_dimension_numbers<[1], [0], [0], [1], [0, 0, 1, 1], [], []>} : vector<8x128xbf16>, vector<128x32xbf16>, vector<8x32xf32> -> vector<8x32xf32>
    %c0_59 = arith.constant 0 : index
    %c0_60 = arith.constant 0 : index
    %c0_61 = arith.constant 0 : index
    %113 = vector.load %arg20[%c0_59, %c0_60, %c0_61] : memref<1x1x32xf32, #tpu.memory_space<vmem>>, vector<1x1x32xf32>
    %114 = vector.shape_cast %113 : vector<1x1x32xf32> to vector<1x32xf32>
    %115 = vector.broadcast %114 : vector<1x32xf32> to vector<8x32xf32>
    %116 = arith.addf %112, %115 : vector<8x32xf32>
    %117 = arith.addf %116, %98 : vector<8x32xf32>
    %c0_62 = arith.constant 0 : index
    %c0_63 = arith.constant 0 : index
    %c0_64 = arith.constant 0 : index
    %118 = vector.load %arg21[%c0_62, %c0_63, %c0_64] : memref<1x1x32xf32, #tpu.memory_space<vmem>>, vector<1x1x32xf32>
    %119 = vector.shape_cast %118 : vector<1x1x32xf32> to vector<1x32xf32>
    %c0_65 = arith.constant 0 : index
    %c0_66 = arith.constant 0 : index
    %c0_67 = arith.constant 0 : index
    %120 = vector.load %arg22[%c0_65, %c0_66, %c0_67] : memref<1x1x32xf32, #tpu.memory_space<vmem>>, vector<1x1x32xf32>
    %121 = vector.shape_cast %120 : vector<1x1x32xf32> to vector<1x32xf32>
    %cst_68 = arith.constant dense<0.000000e+00> : vector<8xf32>
    %122 = vector.multi_reduction <add>, %117, %cst_68 [1] : vector<8x32xf32> to vector<8xf32>
    %123 = vector.shape_cast %122 : vector<8xf32> to vector<8x1xf32>
    %cst_69 = arith.constant 3.200000e+01 : f32
    %124 = vector.broadcast %cst_69 : f32 to vector<8x1xf32>
    %125 = arith.divf %123, %124 : vector<8x1xf32>
    %126 = vector.broadcast %125 : vector<8x1xf32> to vector<8x32xf32>
    %127 = arith.subf %117, %126 : vector<8x32xf32>
    %128 = arith.mulf %127, %127 : vector<8x32xf32>
    %cst_70 = arith.constant dense<0.000000e+00> : vector<8xf32>
    %129 = vector.multi_reduction <add>, %128, %cst_70 [1] : vector<8x32xf32> to vector<8xf32>
    %130 = vector.shape_cast %129 : vector<8xf32> to vector<8x1xf32>
    %cst_71 = arith.constant 0.0322580636 : f32
    %131 = vector.broadcast %cst_71 : f32 to vector<8x1xf32>
    %132 = arith.mulf %130, %131 : vector<8x1xf32>
    %133 = math.sqrt %132 : vector<8x1xf32>
    %cst_72 = arith.constant 9.99999993E-9 : f32
    %134 = vector.broadcast %cst_72 : f32 to vector<8x1xf32>
    %135 = arith.addf %133, %134 : vector<8x1xf32>
    %136 = tpu.reciprocal %135 {approx = true} : vector<8x1xf32> -> vector<8x1xf32>
    %137 = vector.broadcast %125 : vector<8x1xf32> to vector<8x32xf32>
    %138 = arith.subf %117, %137 : vector<8x32xf32>
    %139 = vector.broadcast %136 : vector<8x1xf32> to vector<8x32xf32>
    %140 = arith.mulf %138, %139 : vector<8x32xf32>
    %141 = vector.broadcast %119 : vector<1x32xf32> to vector<8x32xf32>
    %142 = arith.mulf %141, %140 : vector<8x32xf32>
    %143 = vector.broadcast %121 : vector<1x32xf32> to vector<8x32xf32>
    %144 = arith.addf %142, %143 : vector<8x32xf32>
    %c0_73 = arith.constant 0 : index
    %c0_74 = arith.constant 0 : index
    %c0_75 = arith.constant 0 : index
    %145 = vector.load %arg23[%c0_73, %c0_74, %c0_75] : memref<1x8x32xf32, #tpu.memory_space<vmem>>, vector<1x8x32xf32>
    %146 = vector.shape_cast %145 : vector<1x8x32xf32> to vector<8x32xf32>
    %147 = vector.shape_cast %144 : vector<8x32xf32> to vector<1x8x32xf32>
    tpu.vector_store %arg23[%c0_73, %c0_74, %c0_75], %147 {strides = array<i32>} : memref<1x8x32xf32, #tpu.memory_space<vmem>>, vector<1x8x32xf32>,
    return
  }
  func.func @transform_0(%arg0: i32, %arg1: i32) -> (i32, i32, i32) {
    %c0_i32 = arith.constant 0 : i32
    %c0_i32_0 = arith.constant 0 : i32
    %c0_i32_1 = arith.constant 0 : i32
    return %arg0, %c0_i32, %c0_i32_0 : i32, i32, i32
  }
  func.func @transform_1(%arg0: i32, %arg1: i32) -> (i32, i32, i32) {
    %c0_i32 = arith.constant 0 : i32
    %c0_i32_0 = arith.constant 0 : i32
    %c0_i32_1 = arith.constant 0 : i32
    return %arg0, %c0_i32, %c0_i32_0 : i32, i32, i32
  }
  func.func @transform_2(%arg0: i32, %arg1: i32) -> (i32, i32) {
    %c0_i32 = arith.constant 0 : i32
    %c0_i32_0 = arith.constant 0 : i32
    %c0_i32_1 = arith.constant 0 : i32
    return %c0_i32, %c0_i32_0 : i32, i32
  }
  func.func @transform_3(%arg0: i32, %arg1: i32) -> (i32, i32) {
    %c0_i32 = arith.constant 0 : i32
    %c0_i32_0 = arith.constant 0 : i32
    %c0_i32_1 = arith.constant 0 : i32
    return %c0_i32, %c0_i32_0 : i32, i32
  }
  func.func @transform_4(%arg0: i32, %arg1: i32) -> (i32, i32) {
    %c0_i32 = arith.constant 0 : i32
    %c0_i32_0 = arith.constant 0 : i32
    %c0_i32_1 = arith.constant 0 : i32
    return %c0_i32, %c0_i32_0 : i32, i32
  }
  func.func @transform_5(%arg0: i32, %arg1: i32) -> (i32, i32) {
    %c0_i32 = arith.constant 0 : i32
    %c0_i32_0 = arith.constant 0 : i32
    %c0_i32_1 = arith.constant 0 : i32
    return %c0_i32, %c0_i32_0 : i32, i32
  }
  func.func @transform_6(%arg0: i32, %arg1: i32) -> (i32, i32) {
    %c0_i32 = arith.constant 0 : i32
    %c0_i32_0 = arith.constant 0 : i32
    %c0_i32_1 = arith.constant 0 : i32
    return %c0_i32, %c0_i32_0 : i32, i32
  }
  func.func @transform_7(%arg0: i32, %arg1: i32) -> (i32, i32, i32) {
    %c0_i32 = arith.constant 0 : i32
    %c0_i32_0 = arith.constant 0 : i32
    %c0_i32_1 = arith.constant 0 : i32
    return %arg1, %c0_i32, %c0_i32_0 : i32, i32, i32
  }
  func.func @transform_8(%arg0: i32, %arg1: i32) -> (i32, i32, i32) {
    %c0_i32 = arith.constant 0 : i32
    %c0_i32_0 = arith.constant 0 : i32
    %c0_i32_1 = arith.constant 0 : i32
    return %arg1, %c0_i32, %c0_i32_0 : i32, i32, i32
  }
  func.func @transform_9(%arg0: i32, %arg1: i32) -> (i32, i32, i32) {
    %c0_i32 = arith.constant 0 : i32
    %c0_i32_0 = arith.constant 0 : i32
    %c0_i32_1 = arith.constant 0 : i32
    return %arg1, %c0_i32, %c0_i32_0 : i32, i32, i32
  }
  func.func @transform_10(%arg0: i32, %arg1: i32) -> (i32, i32, i32) {
    %c0_i32 = arith.constant 0 : i32
    %c0_i32_0 = arith.constant 0 : i32
    %c0_i32_1 = arith.constant 0 : i32
    return %arg1, %c0_i32, %c0_i32_0 : i32, i32, i32
  }
  func.func @transform_11(%arg0: i32, %arg1: i32) -> (i32, i32, i32) {
    %c0_i32 = arith.constant 0 : i32
    %c0_i32_0 = arith.constant 0 : i32
    %c0_i32_1 = arith.constant 0 : i32
    return %arg1, %c0_i32, %c0_i32_0 : i32, i32, i32
  }
  func.func @transform_12(%arg0: i32, %arg1: i32) -> (i32, i32, i32) {
    %c0_i32 = arith.constant 0 : i32
    %c0_i32_0 = arith.constant 0 : i32
    %c0_i32_1 = arith.constant 0 : i32
    return %arg1, %c0_i32, %c0_i32_0 : i32, i32, i32
  }
  func.func @transform_13(%arg0: i32, %arg1: i32) -> (i32, i32, i32) {
    %c0_i32 = arith.constant 0 : i32
    %c0_i32_0 = arith.constant 0 : i32
    %c0_i32_1 = arith.constant 0 : i32
    return %arg1, %c0_i32, %c0_i32_0 : i32, i32, i32
  }
  func.func @transform_14(%arg0: i32, %arg1: i32) -> (i32, i32, i32) {
    %c0_i32 = arith.constant 0 : i32
    %c0_i32_0 = arith.constant 0 : i32
    %c0_i32_1 = arith.constant 0 : i32
    return %arg1, %c0_i32, %c0_i32_0 : i32, i32, i32
  }
  func.func @transform_15(%arg0: i32, %arg1: i32) -> (i32, i32, i32) {
    %c0_i32 = arith.constant 0 : i32
    %c0_i32_0 = arith.constant 0 : i32
    %c0_i32_1 = arith.constant 0 : i32
    return %arg1, %c0_i32, %c0_i32_0 : i32, i32, i32
  }
  func.func @transform_16(%arg0: i32, %arg1: i32) -> (i32, i32, i32) {
    %c0_i32 = arith.constant 0 : i32
    %c0_i32_0 = arith.constant 0 : i32
    %c0_i32_1 = arith.constant 0 : i32
    return %arg1, %c0_i32, %c0_i32_0 : i32, i32, i32
  }
  func.func @transform_17(%arg0: i32, %arg1: i32) -> (i32, i32, i32) {
    %c0_i32 = arith.constant 0 : i32
    %c0_i32_0 = arith.constant 0 : i32
    %c0_i32_1 = arith.constant 0 : i32
    return %arg1, %c0_i32, %c0_i32_0 : i32, i32, i32
  }
  func.func @transform_18(%arg0: i32, %arg1: i32) -> (i32, i32, i32) {
    %c0_i32 = arith.constant 0 : i32
    %c0_i32_0 = arith.constant 0 : i32
    %c0_i32_1 = arith.constant 0 : i32
    return %arg1, %c0_i32, %c0_i32_0 : i32, i32, i32
  }
  func.func @transform_19(%arg0: i32, %arg1: i32) -> (i32, i32, i32) {
    %c0_i32 = arith.constant 0 : i32
    %c0_i32_0 = arith.constant 0 : i32
    %c0_i32_1 = arith.constant 0 : i32
    return %arg1, %c0_i32, %c0_i32_0 : i32, i32, i32
  }
  func.func @transform_20(%arg0: i32, %arg1: i32) -> (i32, i32, i32) {
    %c0_i32 = arith.constant 0 : i32
    %c0_i32_0 = arith.constant 0 : i32
    %c0_i32_1 = arith.constant 0 : i32
    return %arg1, %c0_i32, %c0_i32_0 : i32, i32, i32
  }
  func.func @transform_21(%arg0: i32, %arg1: i32) -> (i32, i32, i32) {
    %c0_i32 = arith.constant 0 : i32
    %c0_i32_0 = arith.constant 0 : i32
    %c0_i32_1 = arith.constant 0 : i32
    return %arg0, %c0_i32, %c0_i32_0 : i32, i32, i32
  }
}

</mosaic_0001>

<llo_original>
// kernel: tpu_custom_call.1
$region0: #{tpu_custom_call.1}
  #allocation0 [shape = 'u32[]', space=smem, size = 0x4, offset = 0x4, fixed_abs, tag = 'smem constant byte address 0x4 - core index']
  #allocation1 [shape = 'u32[72,128]{1,0:T(1,128)}', space=vmem, size = 0x9000, scoped, tag = 'internal scratch']
  %s0 = inlined_call_operand.vmem [shape: bf16[2,8,2048], index: 0, kind: input, shape index: {}]
  %s1 = inlined_call_operand.vmem [shape: f32[2,1,8], index: 1, kind: input, shape index: {}]
  %s2 = inlined_call_operand.vmem [shape: bf16[2048,32], index: 2, kind: input, shape index: {}]
  %s3 = inlined_call_operand.vmem [shape: f32[1,32], index: 3, kind: input, shape index: {}]
  %s4 = inlined_call_operand.vmem [shape: bf16[32,32], index: 4, kind: input, shape index: {}]
  %s5 = inlined_call_operand.vmem [shape: f32[1,32], index: 5, kind: input, shape index: {}]
  %s6 = inlined_call_operand.vmem [shape: f32[8,32], index: 6, kind: input, shape index: {}]
  %s7 = inlined_call_operand.vmem [shape: bf16[2,32,32], index: 7, kind: input, shape index: {}]
  %s8 = inlined_call_operand.vmem [shape: f32[2,1,32], index: 8, kind: input, shape index: {}]
  %s9 = inlined_call_operand.vmem [shape: bf16[2,32,32], index: 9, kind: input, shape index: {}]
  %s10 = inlined_call_operand.vmem [shape: f32[2,1,32], index: 10, kind: input, shape index: {}]
  %s11 = inlined_call_operand.vmem [shape: bf16[2,32,32], index: 11, kind: input, shape index: {}]
  %s12 = inlined_call_operand.vmem [shape: f32[2,1,32], index: 12, kind: input, shape index: {}]
  %s13 = inlined_call_operand.vmem [shape: f32[2,1,32], index: 13, kind: input, shape index: {}]
  %s14 = inlined_call_operand.vmem [shape: f32[2,1,32], index: 14, kind: input, shape index: {}]
  %s15 = inlined_call_operand.vmem [shape: bf16[2,32,128], index: 15, kind: input, shape index: {}]
  %s16 = inlined_call_operand.vmem [shape: f32[2,1,128], index: 16, kind: input, shape index: {}]
  %s17 = inlined_call_operand.vmem [shape: bf16[2,128,32], index: 17, kind: input, shape index: {}]
  %s18 = inlined_call_operand.vmem [shape: f32[2,1,32], index: 18, kind: input, shape index: {}]
  %s19 = inlined_call_operand.vmem [shape: f32[2,1,32], index: 19, kind: input, shape index: {}]
  %s20 = inlined_call_operand.vmem [shape: f32[2,1,32], index: 20, kind: input, shape index: {}]
  %s21 = inlined_call_operand.hbm [shape: f32[2,8,32], index: 21, kind: output, shape index: {}]
  %s22 = sld [smem:[#allocation0]]
  $region121: #{tpu_custom_call.1} parent=0
    _
  %s24 = ssub.s32 1, %s22
  %s25 = scalar_select 0, %s24, %s22
  $region1: #{tpu_custom_call.1} parent=0
    #allocation2 [shape = 'u8[8192]{0}', space=vmem, size = 0x2000, scoped, tag = 'output window, operand 0']
    #allocation3 [shape = 's32[2]{0}', space=sflag, size = 0x8, scoped, tag = 'scoped memory for tpu_custom_call.1']
    %26 = vsyncpa [#allocation3], 0
    %s27 = scalar_lea.sflag [#allocation3], 1
    %28 = vsyncpa %s27, 0
    loop: start=0, step=1, limit=6
    $region2: #{tpu_custom_call.1} parent=1 // loop_pre_header
      _
    $region3: #{tpu_custom_call.1} parent=1 // loop_header
      %s30 = sphi 0, %s34
      %p31 = scmp.ge.s32.totalorder %s30, 6
      %s37 = sphi 0, %s49
      %s38 = sphi 0, %s45
      %s39 = sphi 0, %s37
      %s40 = sphi 0, %s38
      %s41 = sphi 0, %s39
      %s42 = sphi 0, %s40
      %s52 = sphi 0, %s54
      %s55 = sphi 0, %s52
      %s56 = sphi 0, %s55
      %s72 = sphi 0, %s56
      %s78 = sphi 0, %s80
      %s81 = sphi 0, %s78
      %s82 = sphi 0, %s81
      %s98 = sphi 0, %s82
      %s102 = sphi 0, %s102
      %s104 = sphi 0, %s102
      %s105 = sphi 0, %s104
      %s119 = sphi 0, %s105
      %s123 = sphi 0, %s123
      %s125 = sphi 0, %s123
      %s126 = sphi 0, %s125
      %s140 = sphi 0, %s126
      %s144 = sphi 0, %s144
      %s146 = sphi 0, %s144
      %s147 = sphi 0, %s146
      %s161 = sphi 0, %s147
      %s165 = sphi 0, %s165
      %s167 = sphi 0, %s165
      %s168 = sphi 0, %s167
      %s182 = sphi 0, %s168
      %s186 = sphi 0, %s186
      %s188 = sphi 0, %s186
      %s189 = sphi 0, %s188
      %s203 = sphi 0, %s189
      %s209 = sphi 0, %s211
      %s212 = sphi 0, %s209
      %s213 = sphi 0, %s212
      %s229 = sphi 0, %s213
      %s235 = sphi 0, %s237
      %s238 = sphi 0, %s235
      %s239 = sphi 0, %s238
      %s255 = sphi 0, %s239
      %s261 = sphi 0, %s263
      %s264 = sphi 0, %s261
      %s265 = sphi 0, %s264
      %s281 = sphi 0, %s265
      %s287 = sphi 0, %s289
      %s290 = sphi 0, %s287
      %s291 = sphi 0, %s290
      %s307 = sphi 0, %s291
      %s313 = sphi 0, %s315
      %s316 = sphi 0, %s313
      %s317 = sphi 0, %s316
      %s333 = sphi 0, %s317
      %s339 = sphi 0, %s341
      %s342 = sphi 0, %s339
      %s343 = sphi 0, %s342
      %s359 = sphi 0, %s343
      %s365 = sphi 0, %s367
      %s368 = sphi 0, %s365
      %s369 = sphi 0, %s368
      %s385 = sphi 0, %s369
      %s391 = sphi 0, %s393
      %s394 = sphi 0, %s391
      %s395 = sphi 0, %s394
      %s411 = sphi 0, %s395
      %s417 = sphi 0, %s419
      %s420 = sphi 0, %s417
      %s421 = sphi 0, %s420
      %s437 = sphi 0, %s421
      %s443 = sphi 0, %s445
      %s446 = sphi 0, %s443
      %s447 = sphi 0, %s446
      %s463 = sphi 0, %s447
      %s469 = sphi 0, %s471
      %s472 = sphi 0, %s469
      %s473 = sphi 0, %s472
      %s489 = sphi 0, %s473
      %s495 = sphi 0, %s497
      %s498 = sphi 0, %s495
      %s499 = sphi 0, %s498
      %s515 = sphi 0, %s499
      %s521 = sphi 0, %s523
      %s524 = sphi 0, %s521
      %s525 = sphi 0, %s524
      %s541 = sphi 0, %s525
      %s547 = sphi 0, %s549
      %s550 = sphi 0, %s547
      %s551 = sphi 0, %s550
      %s567 = sphi 0, %s551
      %s573 = sphi 0, %s575
      %s576 = sphi 0, %s573
      %s577 = sphi 0, %s576
      %s593 = sphi 0, %s577
    $region4: #{tpu_custom_call.1} parent=1 // loop_header_branch
      %33 = sbr.rel (%p31) target = $region8
    $region5: #{tpu_custom_call.1} parent=1 // loop_body
      %s35 = ssub.s32 %s30, 1
      %s36 = ssub.s32 %s30, 2
      %s43 = sadd.s32 1, %s38
      %p44 = scmp.ge.s32.totalorder %s43, 2
      %s45 = scalar_select %p44, 0, %s43
      %s46 = sadd.s32 1, %s37
      %s47 = scalar_select %p44, %s46, %s37
      %p48 = scmp.ge.s32.totalorder %s47, 2
      %s49 = scalar_select %p48, 0, %s47
      %s50 = ssub.s32 %s37, %s49
      %p51 = scmp.eq.s32.totalorder %s50, 0
      %s53 = sadd.s32 %s52, 1
      %s54 = scalar_select %p51, %s52, %s53
      %p57 = pneg %p51
      %p58 = scmp.eq.s32.totalorder %s30, 3
      %p59 = por %p57, %p58
      %p60 = scmp.ne.s32.totalorder %s52, %s55
      %p61 = scmp.eq.s32.totalorder %s30, 0
      %p62 = por %p60, %p61
      %p63 = scmp.ne.s32.totalorder %s52, %s55
      %p64 = scmp.eq.s32.totalorder %s35, 3
      %p65 = por %p63, %p64
      %p66 = scmp.ne.s32.totalorder %s55, %s56
      %p67 = scmp.eq.s32.totalorder %s35, 0
      %p68 = por %p66, %p67
      %p69 = scmp.ne.s32.totalorder %s55, %s56
      %p70 = scmp.eq.s32.totalorder %s36, 3
      %p71 = por %p69, %p70
      %p73 = scmp.ne.s32.totalorder %s56, %s72
      %p74 = scmp.eq.s32.totalorder %s36, 0
      %p75 = por %p73, %p74
      %s76 = ssub.s32 %s37, %s49
      %p77 = scmp.eq.s32.totalorder %s76, 0
      %s79 = sadd.s32 %s78, 1
      %s80 = scalar_select %p77, %s78, %s79
      %p83 = pneg %p77
      %p84 = scmp.eq.s32.totalorder %s30, 3
      %p85 = por %p83, %p84
      %p86 = scmp.ne.s32.totalorder %s78, %s81
      %p87 = scmp.eq.s32.totalorder %s30, 0
      %p88 = por %p86, %p87
      %p89 = scmp.ne.s32.totalorder %s78, %s81
      %p90 = scmp.eq.s32.totalorder %s35, 3
      %p91 = por %p89, %p90
      %p92 = scmp.ne.s32.totalorder %s81, %s82
      %p93 = scmp.eq.s32.totalorder %s35, 0
      %p94 = por %p92, %p93
      %p95 = scmp.ne.s32.totalorder %s81, %s82
      %p96 = scmp.eq.s32.totalorder %s36, 3
      %p97 = por %p95, %p96
      %p99 = scmp.ne.s32.totalorder %s82, %s98
      %p100 = scmp.eq.s32.totalorder %s36, 0
      %p101 = por %p99, %p100
      %s103 = sadd.s32 %s102, 1
      %p106 = scmp.eq.s32.totalorder %s30, 3
      %p107 = scmp.ne.s32.totalorder %s102, %s104
      %p108 = scmp.eq.s32.totalorder %s30, 0
      %p109 = por %p107, %p108
      %p110 = scmp.ne.s32.totalorder %s102, %s104
      %p111 = scmp.eq.s32.totalorder %s35, 3
      %p112 = por %p110, %p111
      %p113 = scmp.ne.s32.totalorder %s104, %s105
      %p114 = scmp.eq.s32.totalorder %s35, 0
      %p115 = por %p113, %p114
      %p116 = scmp.ne.s32.totalorder %s104, %s105
      %p117 = scmp.eq.s32.totalorder %s36, 3
      %p118 = por %p116, %p117
      %p120 = scmp.ne.s32.totalorder %s105, %s119
      %p121 = scmp.eq.s32.totalorder %s36, 0
      %p122 = por %p120, %p121
      %s124 = sadd.s32 %s123, 1
      %p127 = scmp.eq.s32.totalorder %s30, 3
      %p128 = scmp.ne.s32.totalorder %s123, %s125
      %p129 = scmp.eq.s32.totalorder %s30, 0
      %p130 = por %p128, %p129
      %p131 = scmp.ne.s32.totalorder %s123, %s125
      %p132 = scmp.eq.s32.totalorder %s35, 3
      %p133 = por %p131, %p132
      %p134 = scmp.ne.s32.totalorder %s125, %s126
      %p135 = scmp.eq.s32.totalorder %s35, 0
      %p136 = por %p134, %p135
      %p137 = scmp.ne.s32.totalorder %s125, %s126
      %p138 = scmp.eq.s32.totalorder %s36, 3
      %p139 = por %p137, %p138
      %p141 = scmp.ne.s32.totalorder %s126, %s140
      %p142 = scmp.eq.s32.totalorder %s36, 0
      %p143 = por %p141, %p142
      %s145 = sadd.s32 %s144, 1
      %p148 = scmp.eq.s32.totalorder %s30, 3
      %p149 = scmp.ne.s32.totalorder %s144, %s146
      %p150 = scmp.eq.s32.totalorder %s30, 0
      %p151 = por %p149, %p150
      %p152 = scmp.ne.s32.totalorder %s144, %s146
      %p153 = scmp.eq.s32.totalorder %s35, 3
      %p154 = por %p152, %p153
      %p155 = scmp.ne.s32.totalorder %s146, %s147
      %p156 = scmp.eq.s32.totalorder %s35, 0
      %p157 = por %p155, %p156
      %p158 = scmp.ne.s32.totalorder %s146, %s147
      %p159 = scmp.eq.s32.totalorder %s36, 3
      %p160 = por %p158, %p159
      %p162 = scmp.ne.s32.totalorder %s147, %s161
      %p163 = scmp.eq.s32.totalorder %s36, 0
      %p164 = por %p162, %p163
      %s166 = sadd.s32 %s165, 1
      %p169 = scmp.eq.s32.totalorder %s30, 3
      %p170 = scmp.ne.s32.totalorder %s165, %s167
      %p171 = scmp.eq.s32.totalorder %s30, 0
      %p172 = por %p170, %p171
      %p173 = scmp.ne.s32.totalorder %s165, %s167
      %p174 = scmp.eq.s32.totalorder %s35, 3
      %p175 = por %p173, %p174
      %p176 = scmp.ne.s32.totalorder %s167, %s168
      %p177 = scmp.eq.s32.totalorder %s35, 0
      %p178 = por %p176, %p177
      %p179 = scmp.ne.s32.totalorder %s167, %s168
      %p180 = scmp.eq.s32.totalorder %s36, 3
      %p181 = por %p179, %p180
      %p183 = scmp.ne.s32.totalorder %s168, %s182
      %p184 = scmp.eq.s32.totalorder %s36, 0
      %p185 = por %p183, %p184
      %s187 = sadd.s32 %s186, 1
      %p190 = scmp.eq.s32.totalorder %s30, 3
      %p191 = scmp.ne.s32.totalorder %s186, %s188
      %p192 = scmp.eq.s32.totalorder %s30, 0
      %p193 = por %p191, %p192
      %p194 = scmp.ne.s32.totalorder %s186, %s188
      %p195 = scmp.eq.s32.totalorder %s35, 3
      %p196 = por %p194, %p195
      %p197 = scmp.ne.s32.totalorder %s188, %s189
      %p198 = scmp.eq.s32.totalorder %s35, 0
      %p199 = por %p197, %p198
      %p200 = scmp.ne.s32.totalorder %s188, %s189
      %p201 = scmp.eq.s32.totalorder %s36, 3
      %p202 = por %p200, %p201
      %p204 = scmp.ne.s32.totalorder %s189, %s203
      %p205 = scmp.eq.s32.totalorder %s36, 0
      %p206 = por %p204, %p205
      %s207 = ssub.s32 %s38, %s45
      %p208 = scmp.eq.s32.totalorder %s207, 0
      %s210 = sadd.s32 %s209, 1
      %s211 = scalar_select %p208, %s209, %s210
      %p214 = pneg %p208
      %p215 = scmp.eq.s32.totalorder %s30, 3
      %p216 = por %p214, %p215
      %p217 = scmp.ne.s32.totalorder %s209, %s212
      %p218 = scmp.eq.s32.totalorder %s30, 0
      %p219 = por %p217, %p218
      %p220 = scmp.ne.s32.totalorder %s209, %s212
      %p221 = scmp.eq.s32.totalorder %s35, 3
      %p222 = por %p220, %p221
      %p223 = scmp.ne.s32.totalorder %s212, %s213
      %p224 = scmp.eq.s32.totalorder %s35, 0
      %p225 = por %p223, %p224
      %p226 = scmp.ne.s32.totalorder %s212, %s213
      %p227 = scmp.eq.s32.totalorder %s36, 3
      %p228 = por %p226, %p227
      %p230 = scmp.ne.s32.totalorder %s213, %s229
      %p231 = scmp.eq.s32.totalorder %s36, 0
      %p232 = por %p230, %p231
      %s233 = ssub.s32 %s38, %s45
      %p234 = scmp.eq.s32.totalorder %s233, 0
      %s236 = sadd.s32 %s235, 1
      %s237 = scalar_select %p234, %s235, %s236
      %p240 = pneg %p234
      %p241 = scmp.eq.s32.totalorder %s30, 3
      %p242 = por %p240, %p241
      %p243 = scmp.ne.s32.totalorder %s235, %s238
      %p244 = scmp.eq.s32.totalorder %s30, 0
      %p245 = por %p243, %p244
      %p246 = scmp.ne.s32.totalorder %s235, %s238
      %p247 = scmp.eq.s32.totalorder %s35, 3
      %p248 = por %p246, %p247
      %p249 = scmp.ne.s32.totalorder %s238, %s239
      %p250 = scmp.eq.s32.totalorder %s35, 0
      %p251 = por %p249, %p250
      %p252 = scmp.ne.s32.totalorder %s238, %s239
      %p253 = scmp.eq.s32.totalorder %s36, 3
      %p254 = por %p252, %p253
      %p256 = scmp.ne.s32.totalorder %s239, %s255
      %p257 = scmp.eq.s32.totalorder %s36, 0
      %p258 = por %p256, %p257
      %s259 = ssub.s32 %s38, %s45
      %p260 = scmp.eq.s32.totalorder %s259, 0
      %s262 = sadd.s32 %s261, 1
      %s263 = scalar_select %p260, %s261, %s262
      %p266 = pneg %p260
      %p267 = scmp.eq.s32.totalorder %s30, 3
      %p268 = por %p266, %p267
      %p269 = scmp.ne.s32.totalorder %s261, %s264
      %p270 = scmp.eq.s32.totalorder %s30, 0
      %p271 = por %p269, %p270
      %p272 = scmp.ne.s32.totalorder %s261, %s264
      %p273 = scmp.eq.s32.totalorder %s35, 3
      %p274 = por %p272, %p273
      %p275 = scmp.ne.s32.totalorder %s264, %s265
      %p276 = scmp.eq.s32.totalorder %s35, 0
      %p277 = por %p275, %p276
      %p278 = scmp.ne.s32.totalorder %s264, %s265
      %p279 = scmp.eq.s32.totalorder %s36, 3
      %p280 = por %p278, %p279
      %p282 = scmp.ne.s32.totalorder %s265, %s281
      %p283 = scmp.eq.s32.totalorder %s36, 0
      %p284 = por %p282, %p283
      %s285 = ssub.s32 %s38, %s45
      %p286 = scmp.eq.s32.totalorder %s285, 0
      %s288 = sadd.s32 %s287, 1
      %s289 = scalar_select %p286, %s287, %s288
      %p292 = pneg %p286
      %p293 = scmp.eq.s32.totalorder %s30, 3
      %p294 = por %p292, %p293
      %p295 = scmp.ne.s32.totalorder %s287, %s290
      %p296 = scmp.eq.s32.totalorder %s30, 0
      %p297 = por %p295, %p296
      %p298 = scmp.ne.s32.totalorder %s287, %s290
      %p299 = scmp.eq.s32.totalorder %s35, 3
      %p300 = por %p298, %p299
      %p301 = scmp.ne.s32.totalorder %s290, %s291
      %p302 = scmp.eq.s32.totalorder %s35, 0
      %p303 = por %p301, %p302
      %p304 = scmp.ne.s32.totalorder %s290, %s291
      %p305 = scmp.eq.s32.totalorder %s36, 3
      %p306 = por %p304, %p305
      %p308 = scmp.ne.s32.totalorder %s291, %s307
      %p309 = scmp.eq.s32.totalorder %s36, 0
      %p310 = por %p308, %p309
      %s311 = ssub.s32 %s38, %s45
      %p312 = scmp.eq.s32.totalorder %s311, 0
      %s314 = sadd.s32 %s313, 1
      %s315 = scalar_select %p312, %s313, %s314
      %p318 = pneg %p312
      %p319 = scmp.eq.s32.totalorder %s30, 3
      %p320 = por %p318, %p319
      %p321 = scmp.ne.s32.totalorder %s313, %s316
      %p322 = scmp.eq.s32.totalorder %s30, 0
      %p323 = por %p321, %p322
      %p324 = scmp.ne.s32.totalorder %s313, %s316
      %p325 = scmp.eq.s32.totalorder %s35, 3
      %p326 = por %p324, %p325
      %p327 = scmp.ne.s32.totalorder %s316, %s317
      %p328 = scmp.eq.s32.totalorder %s35, 0
      %p329 = por %p327, %p328
      %p330 = scmp.ne.s32.totalorder %s316, %s317
      %p331 = scmp.eq.s32.totalorder %s36, 3
      %p332 = por %p330, %p331
      %p334 = scmp.ne.s32.totalorder %s317, %s333
      %p335 = scmp.eq.s32.totalorder %s36, 0
      %p336 = por %p334, %p335
      %s337 = ssub.s32 %s38, %s45
      %p338 = scmp.eq.s32.totalorder %s337, 0
      %s340 = sadd.s32 %s339, 1
      %s341 = scalar_select %p338, %s339, %s340
      %p344 = pneg %p338
      %p345 = scmp.eq.s32.totalorder %s30, 3
      %p346 = por %p344, %p345
      %p347 = scmp.ne.s32.totalorder %s339, %s342
      %p348 = scmp.eq.s32.totalorder %s30, 0
      %p349 = por %p347, %p348
      %p350 = scmp.ne.s32.totalorder %s339, %s342
      %p351 = scmp.eq.s32.totalorder %s35, 3
      %p352 = por %p350, %p351
      %p353 = scmp.ne.s32.totalorder %s342, %s343
      %p354 = scmp.eq.s32.totalorder %s35, 0
      %p355 = por %p353, %p354
      %p356 = scmp.ne.s32.totalorder %s342, %s343
      %p357 = scmp.eq.s32.totalorder %s36, 3
      %p358 = por %p356, %p357
      %p360 = scmp.ne.s32.totalorder %s343, %s359
      %p361 = scmp.eq.s32.totalorder %s36, 0
      %p362 = por %p360, %p361
      %s363 = ssub.s32 %s38, %s45
      %p364 = scmp.eq.s32.totalorder %s363, 0
      %s366 = sadd.s32 %s365, 1
      %s367 = scalar_select %p364, %s365, %s366
      %p370 = pneg %p364
      %p371 = scmp.eq.s32.totalorder %s30, 3
      %p372 = por %p370, %p371
      %p373 = scmp.ne.s32.totalorder %s365, %s368
      %p374 = scmp.eq.s32.totalorder %s30, 0
      %p375 = por %p373, %p374
      %p376 = scmp.ne.s32.totalorder %s365, %s368
      %p377 = scmp.eq.s32.totalorder %s35, 3
      %p378 = por %p376, %p377
      %p379 = scmp.ne.s32.totalorder %s368, %s369
      %p380 = scmp.eq.s32.totalorder %s35, 0
      %p381 = por %p379, %p380
      %p382 = scmp.ne.s32.totalorder %s368, %s369
      %p383 = scmp.eq.s32.totalorder %s36, 3
      %p384 = por %p382, %p383
      %p386 = scmp.ne.s32.totalorder %s369, %s385
      %p387 = scmp.eq.s32.totalorder %s36, 0
      %p388 = por %p386, %p387
      %s389 = ssub.s32 %s38, %s45
      %p390 = scmp.eq.s32.totalorder %s389, 0
      %s392 = sadd.s32 %s391, 1
      %s393 = scalar_select %p390, %s391, %s392
      %p396 = pneg %p390
      %p397 = scmp.eq.s32.totalorder %s30, 3
      %p398 = por %p396, %p397
      %p399 = scmp.ne.s32.totalorder %s391, %s394
      %p400 = scmp.eq.s32.totalorder %s30, 0
      %p401 = por %p399, %p400
      %p402 = scmp.ne.s32.totalorder %s391, %s394
      %p403 = scmp.eq.s32.totalorder %s35, 3
      %p404 = por %p402, %p403
      %p405 = scmp.ne.s32.totalorder %s394, %s395
      %p406 = scmp.eq.s32.totalorder %s35, 0
      %p407 = por %p405, %p406
      %p408 = scmp.ne.s32.totalorder %s394, %s395
      %p409 = scmp.eq.s32.totalorder %s36, 3
      %p410 = por %p408, %p409
      %p412 = scmp.ne.s32.totalorder %s395, %s411
      %p413 = scmp.eq.s32.totalorder %s36, 0
      %p414 = por %p412, %p413
      %s415 = ssub.s32 %s38, %s45
      %p416 = scmp.eq.s32.totalorder %s415, 0
      %s418 = sadd.s32 %s417, 1
      %s419 = scalar_select %p416, %s417, %s418
      %p422 = pneg %p416
      %p423 = scmp.eq.s32.totalorder %s30, 3
      %p424 = por %p422, %p423
      %p425 = scmp.ne.s32.totalorder %s417, %s420
      %p426 = scmp.eq.s32.totalorder %s30, 0
      %p427 = por %p425, %p426
      %p428 = scmp.ne.s32.totalorder %s417, %s420
      %p429 = scmp.eq.s32.totalorder %s35, 3
      %p430 = por %p428, %p429
      %p431 = scmp.ne.s32.totalorder %s420, %s421
      %p432 = scmp.eq.s32.totalorder %s35, 0
      %p433 = por %p431, %p432
      %p434 = scmp.ne.s32.totalorder %s420, %s421
      %p435 = scmp.eq.s32.totalorder %s36, 3
      %p436 = por %p434, %p435
      %p438 = scmp.ne.s32.totalorder %s421, %s437
      %p439 = scmp.eq.s32.totalorder %s36, 0
      %p440 = por %p438, %p439
      %s441 = ssub.s32 %s38, %s45
      %p442 = scmp.eq.s32.totalorder %s441, 0
      %s444 = sadd.s32 %s443, 1
      %s445 = scalar_select %p442, %s443, %s444
      %p448 = pneg %p442
      %p449 = scmp.eq.s32.totalorder %s30, 3
      %p450 = por %p448, %p449
      %p451 = scmp.ne.s32.totalorder %s443, %s446
      %p452 = scmp.eq.s32.totalorder %s30, 0
      %p453 = por %p451, %p452
      %p454 = scmp.ne.s32.totalorder %s443, %s446
      %p455 = scmp.eq.s32.totalorder %s35, 3
      %p456 = por %p454, %p455
      %p457 = scmp.ne.s32.totalorder %s446, %s447
      %p458 = scmp.eq.s32.totalorder %s35, 0
      %p459 = por %p457, %p458
      %p460 = scmp.ne.s32.totalorder %s446, %s447
      %p461 = scmp.eq.s32.totalorder %s36, 3
      %p462 = por %p460, %p461
      %p464 = scmp.ne.s32.totalorder %s447, %s463
      %p465 = scmp.eq.s32.totalorder %s36, 0
      %p466 = por %p464, %p465
      %s467 = ssub.s32 %s38, %s45
      %p468 = scmp.eq.s32.totalorder %s467, 0
      %s470 = sadd.s32 %s469, 1
      %s471 = scalar_select %p468, %s469, %s470
      %p474 = pneg %p468
      %p475 = scmp.eq.s32.totalorder %s30, 3
      %p476 = por %p474, %p475
      %p477 = scmp.ne.s32.totalorder %s469, %s472
      %p478 = scmp.eq.s32.totalorder %s30, 0
      %p479 = por %p477, %p478
      %p480 = scmp.ne.s32.totalorder %s469, %s472
      %p481 = scmp.eq.s32.totalorder %s35, 3
      %p482 = por %p480, %p481
      %p483 = scmp.ne.s32.totalorder %s472, %s473
      %p484 = scmp.eq.s32.totalorder %s35, 0
      %p485 = por %p483, %p484
      %p486 = scmp.ne.s32.totalorder %s472, %s473
      %p487 = scmp.eq.s32.totalorder %s36, 3
      %p488 = por %p486, %p487
      %p490 = scmp.ne.s32.totalorder %s473, %s489
      %p491 = scmp.eq.s32.totalorder %s36, 0
      %p492 = por %p490, %p491
      %s493 = ssub.s32 %s38, %s45
      %p494 = scmp.eq.s32.totalorder %s493, 0
      %s496 = sadd.s32 %s495, 1
      %s497 = scalar_select %p494, %s495, %s496
      %p500 = pneg %p494
      %p501 = scmp.eq.s32.totalorder %s30, 3
      %p502 = por %p500, %p501
      %p503 = scmp.ne.s32.totalorder %s495, %s498
      %p504 = scmp.eq.s32.totalorder %s30, 0
      %p505 = por %p503, %p504
      %p506 = scmp.ne.s32.totalorder %s495, %s498
      %p507 = scmp.eq.s32.totalorder %s35, 3
      %p508 = por %p506, %p507
      %p509 = scmp.ne.s32.totalorder %s498, %s499
      %p510 = scmp.eq.s32.totalorder %s35, 0
      %p511 = por %p509, %p510
      %p512 = scmp.ne.s32.totalorder %s498, %s499
      %p513 = scmp.eq.s32.totalorder %s36, 3
      %p514 = por %p512, %p513
      %p516 = scmp.ne.s32.totalorder %s499, %s515
      %p517 = scmp.eq.s32.totalorder %s36, 0
      %p518 = por %p516, %p517
      %s519 = ssub.s32 %s38, %s45
      %p520 = scmp.eq.s32.totalorder %s519, 0
      %s522 = sadd.s32 %s521, 1
      %s523 = scalar_select %p520, %s521, %s522
      %p526 = pneg %p520
      %p527 = scmp.eq.s32.totalorder %s30, 3
      %p528 = por %p526, %p527
      %p529 = scmp.ne.s32.totalorder %s521, %s524
      %p530 = scmp.eq.s32.totalorder %s30, 0
      %p531 = por %p529, %p530
      %p532 = scmp.ne.s32.totalorder %s521, %s524
      %p533 = scmp.eq.s32.totalorder %s35, 3
      %p534 = por %p532, %p533
      %p535 = scmp.ne.s32.totalorder %s524, %s525
      %p536 = scmp.eq.s32.totalorder %s35, 0
      %p537 = por %p535, %p536
      %p538 = scmp.ne.s32.totalorder %s524, %s525
      %p539 = scmp.eq.s32.totalorder %s36, 3
      %p540 = por %p538, %p539
      %p542 = scmp.ne.s32.totalorder %s525, %s541
      %p543 = scmp.eq.s32.totalorder %s36, 0
      %p544 = por %p542, %p543
      %s545 = ssub.s32 %s38, %s45
      %p546 = scmp.eq.s32.totalorder %s545, 0
      %s548 = sadd.s32 %s547, 1
      %s549 = scalar_select %p546, %s547, %s548
      %p552 = pneg %p546
      %p553 = scmp.eq.s32.totalorder %s30, 3
      %p554 = por %p552, %p553
      %p555 = scmp.ne.s32.totalorder %s547, %s550
      %p556 = scmp.eq.s32.totalorder %s30, 0
      %p557 = por %p555, %p556
      %p558 = scmp.ne.s32.totalorder %s547, %s550
      %p559 = scmp.eq.s32.totalorder %s35, 3
      %p560 = por %p558, %p559
      %p561 = scmp.ne.s32.totalorder %s550, %s551
      %p562 = scmp.eq.s32.totalorder %s35, 0
      %p563 = por %p561, %p562
      %p564 = scmp.ne.s32.totalorder %s550, %s551
      %p565 = scmp.eq.s32.totalorder %s36, 3
      %p566 = por %p564, %p565
      %p568 = scmp.ne.s32.totalorder %s551, %s567
      %p569 = scmp.eq.s32.totalorder %s36, 0
      %p570 = por %p568, %p569
      %s571 = ssub.s32 %s37, %s49
      %p572 = scmp.eq.s32.totalorder %s571, 0
      %s574 = sadd.s32 %s573, 1
      %s575 = scalar_select %p572, %s573, %s574
      %p578 = pneg %p572
      %p579 = scmp.eq.s32.totalorder %s30, 3
      %p580 = por %p578, %p579
      %p581 = scmp.ne.s32.totalorder %s573, %s576
      %p582 = scmp.eq.s32.totalorder %s30, 0
      %p583 = por %p581, %p582
      %p584 = scmp.ne.s32.totalorder %s573, %s576
      %p585 = scmp.eq.s32.totalorder %s35, 3
      %p586 = por %p584, %p585
      %p587 = scmp.ne.s32.totalorder %s576, %s577
      %p588 = scmp.eq.s32.totalorder %s35, 0
      %p589 = por %p587, %p588
      %p590 = scmp.ne.s32.totalorder %s576, %s577
      %p591 = scmp.eq.s32.totalorder %s36, 3
      %p592 = por %p590, %p591
      %p594 = scmp.ne.s32.totalorder %s577, %s593
      %p595 = scmp.eq.s32.totalorder %s36, 0
      %p596 = por %p594, %p595
      %p597 = scmp.le.s32.totalorder 1, %s30
      %p598 = scmp.lt.s32.totalorder %s30, 5
      %p599 = pnand %p597, %p598
      %p600 = pneg %p599
      // Predicated region
      $region9: #{tpu_custom_call.1} parent=5 // pred_check
        _
      $region10: #{tpu_custom_call.1} parent=5 // pred_check_branch
        %602 = sbr.rel (%p599) target = $region12
      $region11: #{tpu_custom_call.1} parent=5 // pred_region
        %s603 = ssub.s32 %s30, 1
        // Predicated region
        $region13: #{tpu_custom_call.1} parent=11 // pred_check
          %p604 = pneg %p115
        $region14: #{tpu_custom_call.1} parent=11 // pred_check_branch
          %606 = sbr.rel (%p604) target = $region16
        $region15: #{tpu_custom_call.1} parent=11 // pred_region
          _
        $region16: #{tpu_custom_call.1} parent=11 // pred_fallthru
          _
        // Predicated region
        $region17: #{tpu_custom_call.1} parent=11 // pred_check
          %p607 = pneg %p136
        $region18: #{tpu_custom_call.1} parent=11 // pred_check_branch
          %609 = sbr.rel (%p607) target = $region20
        $region19: #{tpu_custom_call.1} parent=11 // pred_region
          _
        $region20: #{tpu_custom_call.1} parent=11 // pred_fallthru
          _
        // Predicated region
        $region21: #{tpu_custom_call.1} parent=11 // pred_check
          %p610 = pneg %p157
        $region22: #{tpu_custom_call.1} parent=11 // pred_check_branch
          %612 = sbr.rel (%p610) target = $region24
        $region23: #{tpu_custom_call.1} parent=11 // pred_region
          _
        $region24: #{tpu_custom_call.1} parent=11 // pred_fallthru
          _
        // Predicated region
        $region25: #{tpu_custom_call.1} parent=11 // pred_check
          %p613 = pneg %p178
        $region26: #{tpu_custom_call.1} parent=11 // pred_check_branch
          %615 = sbr.rel (%p613) target = $region28
        $region27: #{tpu_custom_call.1} parent=11 // pred_region
          _
        $region28: #{tpu_custom_call.1} parent=11 // pred_fallthru
          _
        // Predicated region
        $region29: #{tpu_custom_call.1} parent=11 // pred_check
          %p616 = pneg %p199
        $region30: #{tpu_custom_call.1} parent=11 // pred_check_branch
          %618 = sbr.rel (%p616) target = $region32
        $region31: #{tpu_custom_call.1} parent=11 // pred_region
          _
        $region32: #{tpu_custom_call.1} parent=11 // pred_fallthru
          _
      $region12: #{tpu_custom_call.1} parent=5 // pred_fallthru
        _
      %p619 = scmp.lt.s32.totalorder %s30, 4
      // Predicated region
      $region33: #{tpu_custom_call.1} parent=5 // pred_check
        %p620 = pneg %p619
      $region34: #{tpu_custom_call.1} parent=5 // pred_check_branch
        %622 = sbr.rel (%p620) target = $region36
      $region35: #{tpu_custom_call.1} parent=5 // pred_region
        // Predicated region
        $region37: #{tpu_custom_call.1} parent=35 // pred_check
          %p623 = pneg %p62
        $region38: #{tpu_custom_call.1} parent=35 // pred_check_branch
          %625 = sbr.rel (%p623) target = $region40
        $region39: #{tpu_custom_call.1} parent=35 // pred_region
          %p626 = scmp.lt.s32.totalorder %s37, 1
          %s627 = scalar_select %p626, %s37, 1
          %s628 = smul.addr %s627, 16
          %s629 = smul.addr %s628, 4
          %s630 = scalar_lea.vmem %s0, %s629
        $region40: #{tpu_custom_call.1} parent=35 // pred_fallthru
          _
        // Predicated region
        $region41: #{tpu_custom_call.1} parent=35 // pred_check
          %p631 = pneg %p88
        $region42: #{tpu_custom_call.1} parent=35 // pred_check_branch
          %633 = sbr.rel (%p631) target = $region44
        $region43: #{tpu_custom_call.1} parent=35 // pred_region
          %p634 = scmp.lt.s32.totalorder %s37, 1
          %s635 = scalar_select %p634, %s37, 1
          %s636 = scalar_lea.vmem %s1, %s635
        $region44: #{tpu_custom_call.1} parent=35 // pred_fallthru
          _
        // Predicated region
        $region45: #{tpu_custom_call.1} parent=35 // pred_check
          %p637 = pneg %p219
        $region46: #{tpu_custom_call.1} parent=35 // pred_check_branch
          %639 = sbr.rel (%p637) target = $region48
        $region47: #{tpu_custom_call.1} parent=35 // pred_region
          %p640 = scmp.lt.s32.totalorder %s38, 1
          %s641 = scalar_select %p640, %s38, 1
          %s642 = smul.addr %s641, 4
          %s643 = smul.addr %s642, 4
          %s644 = scalar_lea.vmem %s7, %s643
        $region48: #{tpu_custom_call.1} parent=35 // pred_fallthru
          _
        // Predicated region
        $region49: #{tpu_custom_call.1} parent=35 // pred_check
          %p645 = pneg %p245
        $region50: #{tpu_custom_call.1} parent=35 // pred_check_branch
          %647 = sbr.rel (%p645) target = $region52
        $region51: #{tpu_custom_call.1} parent=35 // pred_region
          %p648 = scmp.lt.s32.totalorder %s38, 1
          %s649 = scalar_select %p648, %s38, 1
          %s650 = scalar_lea.vmem %s8, %s649
        $region52: #{tpu_custom_call.1} parent=35 // pred_fallthru
          _
        // Predicated region
        $region53: #{tpu_custom_call.1} parent=35 // pred_check
          %p651 = pneg %p271
        $region54: #{tpu_custom_call.1} parent=35 // pred_check_branch
          %653 = sbr.rel (%p651) target = $region56
        $region55: #{tpu_custom_call.1} parent=35 // pred_region
          %p654 = scmp.lt.s32.totalorder %s38, 1
          %s655 = scalar_select %p654, %s38, 1
          %s656 = smul.addr %s655, 4
          %s657 = smul.addr %s656, 4
          %s658 = scalar_lea.vmem %s9, %s657
        $region56: #{tpu_custom_call.1} parent=35 // pred_fallthru
          _
        // Predicated region
        $region57: #{tpu_custom_call.1} parent=35 // pred_check
          %p659 = pneg %p297
        $region58: #{tpu_custom_call.1} parent=35 // pred_check_branch
          %661 = sbr.rel (%p659) target = $region60
        $region59: #{tpu_custom_call.1} parent=35 // pred_region
          %p662 = scmp.lt.s32.totalorder %s38, 1
          %s663 = scalar_select %p662, %s38, 1
          %s664 = scalar_lea.vmem %s10, %s663
        $region60: #{tpu_custom_call.1} parent=35 // pred_fallthru
          _
        // Predicated region
        $region61: #{tpu_custom_call.1} parent=35 // pred_check
          %p665 = pneg %p323
        $region62: #{tpu_custom_call.1} parent=35 // pred_check_branch
          %667 = sbr.rel (%p665) target = $region64
        $region63: #{tpu_custom_call.1} parent=35 // pred_region
          %p668 = scmp.lt.s32.totalorder %s38, 1
          %s669 = scalar_select %p668, %s38, 1
          %s670 = smul.addr %s669, 4
          %s671 = smul.addr %s670, 4
          %s672 = scalar_lea.vmem %s11, %s671
        $region64: #{tpu_custom_call.1} parent=35 // pred_fallthru
          _
        // Predicated region
        $region65: #{tpu_custom_call.1} parent=35 // pred_check
          %p673 = pneg %p349
        $region66: #{tpu_custom_call.1} parent=35 // pred_check_branch
          %675 = sbr.rel (%p673) target = $region68
        $region67: #{tpu_custom_call.1} parent=35 // pred_region
          %p676 = scmp.lt.s32.totalorder %s38, 1
          %s677 = scalar_select %p676, %s38, 1
          %s678 = scalar_lea.vmem %s12, %s677
        $region68: #{tpu_custom_call.1} parent=35 // pred_fallthru
          _
        // Predicated region
        $region69: #{tpu_custom_call.1} parent=35 // pred_check
          %p679 = pneg %p375
        $region70: #{tpu_custom_call.1} parent=35 // pred_check_branch
          %681 = sbr.rel (%p679) target = $region72
        $region71: #{tpu_custom_call.1} parent=35 // pred_region
          %p682 = scmp.lt.s32.totalorder %s38, 1
          %s683 = scalar_select %p682, %s38, 1
          %s684 = scalar_lea.vmem %s13, %s683
        $region72: #{tpu_custom_call.1} parent=35 // pred_fallthru
          _
        // Predicated region
        $region73: #{tpu_custom_call.1} parent=35 // pred_check
          %p685 = pneg %p401
        $region74: #{tpu_custom_call.1} parent=35 // pred_check_branch
          %687 = sbr.rel (%p685) target = $region76
        $region75: #{tpu_custom_call.1} parent=35 // pred_region
          %p688 = scmp.lt.s32.totalorder %s38, 1
          %s689 = scalar_select %p688, %s38, 1
          %s690 = scalar_lea.vmem %s14, %s689
        $region76: #{tpu_custom_call.1} parent=35 // pred_fallthru
          _
        // Predicated region
        $region77: #{tpu_custom_call.1} parent=35 // pred_check
          %p691 = pneg %p427
        $region78: #{tpu_custom_call.1} parent=35 // pred_check_branch
          %693 = sbr.rel (%p691) target = $region80
        $region79: #{tpu_custom_call.1} parent=35 // pred_region
          %p694 = scmp.lt.s32.totalorder %s38, 1
          %s695 = scalar_select %p694, %s38, 1
          %s696 = smul.addr %s695, 4
          %s697 = smul.addr %s696, 4
          %s698 = scalar_lea.vmem %s15, %s697
        $region80: #{tpu_custom_call.1} parent=35 // pred_fallthru
          _
        // Predicated region
        $region81: #{tpu_custom_call.1} parent=35 // pred_check
          %p699 = pneg %p453
        $region82: #{tpu_custom_call.1} parent=35 // pred_check_branch
          %701 = sbr.rel (%p699) target = $region84
        $region83: #{tpu_custom_call.1} parent=35 // pred_region
          %p702 = scmp.lt.s32.totalorder %s38, 1
          %s703 = scalar_select %p702, %s38, 1
          %s704 = scalar_lea.vmem %s16, %s703
        $region84: #{tpu_custom_call.1} parent=35 // pred_fallthru
          _
        // Predicated region
        $region85: #{tpu_custom_call.1} parent=35 // pred_check
          %p705 = pneg %p479
        $region86: #{tpu_custom_call.1} parent=35 // pred_check_branch
          %707 = sbr.rel (%p705) target = $region88
        $region87: #{tpu_custom_call.1} parent=35 // pred_region
          %p708 = scmp.lt.s32.totalorder %s38, 1
          %s709 = scalar_select %p708, %s38, 1
          %s710 = smul.addr %s709, 16
          %s711 = smul.addr %s710, 4
          %s712 = scalar_lea.vmem %s17, %s711
        $region88: #{tpu_custom_call.1} parent=35 // pred_fallthru
          _
        // Predicated region
        $region89: #{tpu_custom_call.1} parent=35 // pred_check
          %p713 = pneg %p505
        $region90: #{tpu_custom_call.1} parent=35 // pred_check_branch
          %715 = sbr.rel (%p713) target = $region92
        $region91: #{tpu_custom_call.1} parent=35 // pred_region
          %p716 = scmp.lt.s32.totalorder %s38, 1
          %s717 = scalar_select %p716, %s38, 1
          %s718 = scalar_lea.vmem %s18, %s717
        $region92: #{tpu_custom_call.1} parent=35 // pred_fallthru
          _
        // Predicated region
        $region93: #{tpu_custom_call.1} parent=35 // pred_check
          %p719 = pneg %p531
        $region94: #{tpu_custom_call.1} parent=35 // pred_check_branch
          %721 = sbr.rel (%p719) target = $region96
        $region95: #{tpu_custom_call.1} parent=35 // pred_region
          %p722 = scmp.lt.s32.totalorder %s38, 1
          %s723 = scalar_select %p722, %s38, 1
          %s724 = scalar_lea.vmem %s19, %s723
        $region96: #{tpu_custom_call.1} parent=35 // pred_fallthru
          _
        // Predicated region
        $region97: #{tpu_custom_call.1} parent=35 // pred_check
          %p725 = pneg %p557
        $region98: #{tpu_custom_call.1} parent=35 // pred_check_branch
          %727 = sbr.rel (%p725) target = $region100
        $region99: #{tpu_custom_call.1} parent=35 // pred_region
          %p728 = scmp.lt.s32.totalorder %s38, 1
          %s729 = scalar_select %p728, %s38, 1
          %s730 = scalar_lea.vmem %s20, %s729
        $region100: #{tpu_custom_call.1} parent=35 // pred_fallthru
          _
      $region36: #{tpu_custom_call.1} parent=5 // pred_fallthru
        _
      %p731 = scmp.le.s32.totalorder 1, %s30
      %p732 = scmp.lt.s32.totalorder %s30, 5
      %p733 = pnand %p731, %p732
      %p734 = pneg %p733
      // Predicated region
      $region101: #{tpu_custom_call.1} parent=5 // pred_check
        _
      $region102: #{tpu_custom_call.1} parent=5 // pred_check_branch
        %736 = sbr.rel (%p733) target = $region104
      $region103: #{tpu_custom_call.1} parent=5 // pred_region
        %s737 = ssub.s32 %s30, 1
        %p738 = scmp.lt.s32.totalorder %s39, 1
        %s739 = scalar_select %p738, %s39, 1
        %s740 = smul.addr %s739, 16
        %s741 = smul.addr %s740, 4
        %s742 = scalar_lea.vmem %s0, %s741
        %p743 = pneg %p68
        %p744 = pneg %p65
        %p745 = scmp.lt.s32.totalorder %s39, 1
        %s746 = scalar_select %p745, %s39, 1
        %s747 = scalar_lea.vmem %s1, %s746
        %p748 = pneg %p94
        %p749 = pneg %p91
        %p750 = pneg %p115
        %p751 = pneg %p112
        %p752 = pneg %p136
        %p753 = pneg %p133
        %p754 = pneg %p157
        %p755 = pneg %p154
        %p756 = pneg %p178
        %p757 = pneg %p175
        %p758 = pneg %p199
        %p759 = pneg %p196
        %p760 = scmp.lt.s32.totalorder %s40, 1
        %s761 = scalar_select %p760, %s40, 1
        %s762 = smul.addr %s761, 4
        %s763 = smul.addr %s762, 4
        %s764 = scalar_lea.vmem %s7, %s763
        %p765 = pneg %p225
        %p766 = pneg %p222
        %p767 = scmp.lt.s32.totalorder %s40, 1
        %s768 = scalar_select %p767, %s40, 1
        %s769 = scalar_lea.vmem %s8, %s768
        %p770 = pneg %p251
        %p771 = pneg %p248
        %p772 = scmp.lt.s32.totalorder %s40, 1
        %s773 = scalar_select %p772, %s40, 1
        %s774 = smul.addr %s773, 4
        %s775 = smul.addr %s774, 4
        %s776 = scalar_lea.vmem %s9, %s775
        %p777 = pneg %p277
        %p778 = pneg %p274
        %p779 = scmp.lt.s32.totalorder %s40, 1
        %s780 = scalar_select %p779, %s40, 1
        %s781 = scalar_lea.vmem %s10, %s780
        %p782 = pneg %p303
        %p783 = pneg %p300
        %p784 = scmp.lt.s32.totalorder %s40, 1
        %s785 = scalar_select %p784, %s40, 1
        %s786 = smul.addr %s785, 4
        %s787 = smul.addr %s786, 4
        %s788 = scalar_lea.vmem %s11, %s787
        %p789 = pneg %p329
        %p790 = pneg %p326
        %p791 = scmp.lt.s32.totalorder %s40, 1
        %s792 = scalar_select %p791, %s40, 1
        %s793 = scalar_lea.vmem %s12, %s792
        %p794 = pneg %p355
        %p795 = pneg %p352
        %p796 = scmp.lt.s32.totalorder %s40, 1
        %s797 = scalar_select %p796, %s40, 1
        %s798 = scalar_lea.vmem %s13, %s797
        %p799 = pneg %p381
        %p800 = pneg %p378
        %p801 = scmp.lt.s32.totalorder %s40, 1
        %s802 = scalar_select %p801, %s40, 1
        %s803 = scalar_lea.vmem %s14, %s802
        %p804 = pneg %p407
        %p805 = pneg %p404
        %p806 = scmp.lt.s32.totalorder %s40, 1
        %s807 = scalar_select %p806, %s40, 1
        %s808 = smul.addr %s807, 4
        %s809 = smul.addr %s808, 4
        %s810 = scalar_lea.vmem %s15, %s809
        %p811 = pneg %p433
        %p812 = pneg %p430
        %p813 = scmp.lt.s32.totalorder %s40, 1
        %s814 = scalar_select %p813, %s40, 1
        %s815 = scalar_lea.vmem %s16, %s814
        %p816 = pneg %p459
        %p817 = pneg %p456
        %p818 = scmp.lt.s32.totalorder %s40, 1
        %s819 = scalar_select %p818, %s40, 1
        %s820 = smul.addr %s819, 16
        %s821 = smul.addr %s820, 4
        %s822 = scalar_lea.vmem %s17, %s821
        %p823 = pneg %p485
        %p824 = pneg %p482
        %p825 = scmp.lt.s32.totalorder %s40, 1
        %s826 = scalar_select %p825, %s40, 1
        %s827 = scalar_lea.vmem %s18, %s826
        %p828 = pneg %p511
        %p829 = pneg %p508
        %p830 = scmp.lt.s32.totalorder %s40, 1
        %s831 = scalar_select %p830, %s40, 1
        %s832 = scalar_lea.vmem %s19, %s831
        %p833 = pneg %p537
        %p834 = pneg %p534
        %p835 = scmp.lt.s32.totalorder %s40, 1
        %s836 = scalar_select %p835, %s40, 1
        %s837 = scalar_lea.vmem %s20, %s836
        %p838 = pneg %p563
        %p839 = pneg %p560
        %p840 = pneg %p589
        %p841 = pneg %p586
        %s842 = sand.u32 %s576, 1
        %s843 = scalar_lea.sflag [#allocation3], %s842
        %s844 = sand.u32 %s576, 1
        %s845 = smul.addr %s844, 8
        %s846 = scalar_lea.vmem [#allocation2], %s845
        %p847 = scmp.lt.s32.totalorder %s39, 1
        %s848 = scalar_select %p847, %s39, 1
        %s849 = smul.addr %s848, 16
        %s850 = smul.addr %s849, 4
        %s851 = scalar_lea.vmem %s0, %s850
        %p852 = scmp.lt.s32.totalorder %s39, 1
        %s853 = scalar_select %p852, %s39, 1
        %s854 = scalar_lea.vmem %s1, %s853
        %p855 = scmp.lt.s32.totalorder %s40, 1
        %s856 = scalar_select %p855, %s40, 1
        %s857 = smul.addr %s856, 4
        %s858 = smul.addr %s857, 4
        %s859 = scalar_lea.vmem %s7, %s858
        %p860 = scmp.lt.s32.totalorder %s40, 1
        %s861 = scalar_select %p860, %s40, 1
        %s862 = scalar_lea.vmem %s8, %s861
        %p863 = scmp.lt.s32.totalorder %s40, 1
        %s864 = scalar_select %p863, %s40, 1
        %s865 = smul.addr %s864, 4
        %s866 = smul.addr %s865, 4
        %s867 = scalar_lea.vmem %s9, %s866
        %p868 = scmp.lt.s32.totalorder %s40, 1
        %s869 = scalar_select %p868, %s40, 1
        %s870 = scalar_lea.vmem %s10, %s869
        %p871 = scmp.lt.s32.totalorder %s40, 1
        %s872 = scalar_select %p871, %s40, 1
        %s873 = smul.addr %s872, 4
        %s874 = smul.addr %s873, 4
        %s875 = scalar_lea.vmem %s11, %s874
        %p876 = scmp.lt.s32.totalorder %s40, 1
        %s877 = scalar_select %p876, %s40, 1
        %s878 = scalar_lea.vmem %s12, %s877
        %p879 = scmp.lt.s32.totalorder %s40, 1
        %s880 = scalar_select %p879, %s40, 1
        %s881 = scalar_lea.vmem %s13, %s880
        %p882 = scmp.lt.s32.totalorder %s40, 1
        %s883 = scalar_select %p882, %s40, 1
        %s884 = scalar_lea.vmem %s14, %s883
        %p885 = scmp.lt.s32.totalorder %s40, 1
        %s886 = scalar_select %p885, %s40, 1
        %s887 = smul.addr %s886, 4
        %s888 = smul.addr %s887, 4
        %s889 = scalar_lea.vmem %s15, %s888
        %p890 = scmp.lt.s32.totalorder %s40, 1
        %s891 = scalar_select %p890, %s40, 1
        %s892 = scalar_lea.vmem %s16, %s891
        %p893 = scmp.lt.s32.totalorder %s40, 1
        %s894 = scalar_select %p893, %s40, 1
        %s895 = smul.addr %s894, 16
        %s896 = smul.addr %s895, 4
        %s897 = scalar_lea.vmem %s17, %s896
        %p898 = scmp.lt.s32.totalorder %s40, 1
        %s899 = scalar_select %p898, %s40, 1
        %s900 = scalar_lea.vmem %s18, %s899
        %p901 = scmp.lt.s32.totalorder %s40, 1
        %s902 = scalar_select %p901, %s40, 1
        %s903 = scalar_lea.vmem %s19, %s902
        %p904 = scmp.lt.s32.totalorder %s40, 1
        %s905 = scalar_select %p904, %s40, 1
        %s906 = scalar_lea.vmem %s20, %s905
        %p908 = scmp.eq.s32.totalorder %s40, 0
        // Predicated region
        $region105: #{tpu_custom_call.1} parent=103 // pred_check
          %p909 = pneg %p908
        $region106: #{tpu_custom_call.1} parent=103 // pred_check_branch
          %911 = sbr.rel (%p909) target = $region108
        $region107: #{tpu_custom_call.1} parent=103 // pred_region
          %v912 = vld [vmem:[%s851] sm:$0xff]
          %v913 = vld [vmem:[%s851 + $0x8] sm:$0xff]
          %v914 = vld [vmem:[%s851 + $0x10] sm:$0xff]
          %v915 = vld [vmem:[%s851 + $0x18] sm:$0xff]
          %v916 = vld [vmem:[%s851 + $0x20] sm:$0xff]
          %v917 = vld [vmem:[%s851 + $0x28] sm:$0xff]
          %v918 = vld [vmem:[%s851 + $0x30] sm:$0xff]
          %v919 = vld [vmem:[%s851 + $0x38] sm:$0xff]
          %v920 = vld [vmem:[%s2] sm:$0xf]
          %v921 = vld [vmem:[%s2 + $0x4] sm:$0xf]
          %v922 = vld [vmem:[%s2 + $0x8] sm:$0xf]
          %v923 = vld [vmem:[%s2 + $0xc] sm:$0xf]
          %v924 = vld [vmem:[%s2 + $0x10] sm:$0xf]
          %v925 = vld [vmem:[%s2 + $0x14] sm:$0xf]
          %v926 = vld [vmem:[%s2 + $0x18] sm:$0xf]
          %v927 = vld [vmem:[%s2 + $0x1c] sm:$0xf]
          %v928 = vld [vmem:[%s2 + $0x20] sm:$0xf]
          %v929 = vld [vmem:[%s2 + $0x24] sm:$0xf]
          %v930 = vld [vmem:[%s2 + $0x28] sm:$0xf]
          %v931 = vld [vmem:[%s2 + $0x2c] sm:$0xf]
          %v932 = vld [vmem:[%s2 + $0x30] sm:$0xf]
          %v933 = vld [vmem:[%s2 + $0x34] sm:$0xf]
          %v934 = vld [vmem:[%s2 + $0x38] sm:$0xf]
          %v935 = vld [vmem:[%s2 + $0x3c] sm:$0xf]
          %v936 = vld [vmem:[%s2 + $0x40] sm:$0xf]
          %v937 = vld [vmem:[%s2 + $0x44] sm:$0xf]
          %v938 = vld [vmem:[%s2 + $0x48] sm:$0xf]
          %v939 = vld [vmem:[%s2 + $0x4c] sm:$0xf]
          %v940 = vld [vmem:[%s2 + $0x50] sm:$0xf]
          %v941 = vld [vmem:[%s2 + $0x54] sm:$0xf]
          %v942 = vld [vmem:[%s2 + $0x58] sm:$0xf]
          %v943 = vld [vmem:[%s2 + $0x5c] sm:$0xf]
          %v944 = vld [vmem:[%s2 + $0x60] sm:$0xf]
          %v945 = vld [vmem:[%s2 + $0x64] sm:$0xf]
          %v946 = vld [vmem:[%s2 + $0x68] sm:$0xf]
          %v947 = vld [vmem:[%s2 + $0x6c] sm:$0xf]
          %v948 = vld [vmem:[%s2 + $0x70] sm:$0xf]
          %v949 = vld [vmem:[%s2 + $0x74] sm:$0xf]
          %v950 = vld [vmem:[%s2 + $0x78] sm:$0xf]
          %v951 = vld [vmem:[%s2 + $0x7c] sm:$0xf]
          %v952 = vld [vmem:[%s2 + $0x80] sm:$0xf]
          %v953 = vld [vmem:[%s2 + $0x84] sm:$0xf]
          %v954 = vld [vmem:[%s2 + $0x88] sm:$0xf]
          %v955 = vld [vmem:[%s2 + $0x8c] sm:$0xf]
          %v956 = vld [vmem:[%s2 + $0x90] sm:$0xf]
          %v957 = vld [vmem:[%s2 + $0x94] sm:$0xf]
          %v958 = vld [vmem:[%s2 + $0x98] sm:$0xf]
          %v959 = vld [vmem:[%s2 + $0x9c] sm:$0xf]
          %v960 = vld [vmem:[%s2 + $0xa0] sm:$0xf]
          %v961 = vld [vmem:[%s2 + $0xa4] sm:$0xf]
          %v962 = vld [vmem:[%s2 + $0xa8] sm:$0xf]
          %v963 = vld [vmem:[%s2 + $0xac] sm:$0xf]
          %v964 = vld [vmem:[%s2 + $0xb0] sm:$0xf]
          %v965 = vld [vmem:[%s2 + $0xb4] sm:$0xf]
          %v966 = vld [vmem:[%s2 + $0xb8] sm:$0xf]
          %v967 = vld [vmem:[%s2 + $0xbc] sm:$0xf]
          %v968 = vld [vmem:[%s2 + $0xc0] sm:$0xf]
          %v969 = vld [vmem:[%s2 + $0xc4] sm:$0xf]
          %v970 = vld [vmem:[%s2 + $0xc8] sm:$0xf]
          %v971 = vld [vmem:[%s2 + $0xcc] sm:$0xf]
          %v972 = vld [vmem:[%s2 + $0xd0] sm:$0xf]
          %v973 = vld [vmem:[%s2 + $0xd4] sm:$0xf]
          %v974 = vld [vmem:[%s2 + $0xd8] sm:$0xf]
          %v975 = vld [vmem:[%s2 + $0xdc] sm:$0xf]
          %v976 = vld [vmem:[%s2 + $0xe0] sm:$0xf]
          %v977 = vld [vmem:[%s2 + $0xe4] sm:$0xf]
          %v978 = vld [vmem:[%s2 + $0xe8] sm:$0xf]
          %v979 = vld [vmem:[%s2 + $0xec] sm:$0xf]
          %v980 = vld [vmem:[%s2 + $0xf0] sm:$0xf]
          %v981 = vld [vmem:[%s2 + $0xf4] sm:$0xf]
          %v982 = vld [vmem:[%s2 + $0xf8] sm:$0xf]
          %v983 = vld [vmem:[%s2 + $0xfc] sm:$0xf]
          %v984 = vld [vmem:[%s2 + $0x100] sm:$0xf]
          %v985 = vld [vmem:[%s2 + $0x104] sm:$0xf]
          %v986 = vld [vmem:[%s2 + $0x108] sm:$0xf]
          %v987 = vld [vmem:[%s2 + $0x10c] sm:$0xf]
          %v988 = vld [vmem:[%s2 + $0x110] sm:$0xf]
          %v989 = vld [vmem:[%s2 + $0x114] sm:$0xf]
          %v990 = vld [vmem:[%s2 + $0x118] sm:$0xf]
          %v991 = vld [vmem:[%s2 + $0x11c] sm:$0xf]
          %v992 = vld [vmem:[%s2 + $0x120] sm:$0xf]
          %v993 = vld [vmem:[%s2 + $0x124] sm:$0xf]
          %v994 = vld [vmem:[%s2 + $0x128] sm:$0xf]
          %v995 = vld [vmem:[%s2 + $0x12c] sm:$0xf]
          %v996 = vld [vmem:[%s2 + $0x130] sm:$0xf]
          %v997 = vld [vmem:[%s2 + $0x134] sm:$0xf]
          %v998 = vld [vmem:[%s2 + $0x138] sm:$0xf]
          %v999 = vld [vmem:[%s2 + $0x13c] sm:$0xf]
          %v1000 = vld [vmem:[%s2 + $0x140] sm:$0xf]
          %v1001 = vld [vmem:[%s2 + $0x144] sm:$0xf]
          %v1002 = vld [vmem:[%s2 + $0x148] sm:$0xf]
          %v1003 = vld [vmem:[%s2 + $0x14c] sm:$0xf]
          %v1004 = vld [vmem:[%s2 + $0x150] sm:$0xf]
          %v1005 = vld [vmem:[%s2 + $0x154] sm:$0xf]
          %v1006 = vld [vmem:[%s2 + $0x158] sm:$0xf]
          %v1007 = vld [vmem:[%s2 + $0x15c] sm:$0xf]
          %v1008 = vld [vmem:[%s2 + $0x160] sm:$0xf]
          %v1009 = vld [vmem:[%s2 + $0x164] sm:$0xf]
          %v1010 = vld [vmem:[%s2 + $0x168] sm:$0xf]
          %v1011 = vld [vmem:[%s2 + $0x16c] sm:$0xf]
          %v1012 = vld [vmem:[%s2 + $0x170] sm:$0xf]
          %v1013 = vld [vmem:[%s2 + $0x174] sm:$0xf]
          %v1014 = vld [vmem:[%s2 + $0x178] sm:$0xf]
          %v1015 = vld [vmem:[%s2 + $0x17c] sm:$0xf]
          %v1016 = vld [vmem:[%s2 + $0x180] sm:$0xf]
          %v1017 = vld [vmem:[%s2 + $0x184] sm:$0xf]
          %v1018 = vld [vmem:[%s2 + $0x188] sm:$0xf]
          %v1019 = vld [vmem:[%s2 + $0x18c] sm:$0xf]
          %v1020 = vld [vmem:[%s2 + $0x190] sm:$0xf]
          %v1021 = vld [vmem:[%s2 + $0x194] sm:$0xf]
          %v1022 = vld [vmem:[%s2 + $0x198] sm:$0xf]
          %v1023 = vld [vmem:[%s2 + $0x19c] sm:$0xf]
          %v1024 = vld [vmem:[%s2 + $0x1a0] sm:$0xf]
          %v1025 = vld [vmem:[%s2 + $0x1a4] sm:$0xf]
          %v1026 = vld [vmem:[%s2 + $0x1a8] sm:$0xf]
          %v1027 = vld [vmem:[%s2 + $0x1ac] sm:$0xf]
          %v1028 = vld [vmem:[%s2 + $0x1b0] sm:$0xf]
          %v1029 = vld [vmem:[%s2 + $0x1b4] sm:$0xf]
          %v1030 = vld [vmem:[%s2 + $0x1b8] sm:$0xf]
          %v1031 = vld [vmem:[%s2 + $0x1bc] sm:$0xf]
          %v1032 = vld [vmem:[%s2 + $0x1c0] sm:$0xf]
          %v1033 = vld [vmem:[%s2 + $0x1c4] sm:$0xf]
          %v1034 = vld [vmem:[%s2 + $0x1c8] sm:$0xf]
          %v1035 = vld [vmem:[%s2 + $0x1cc] sm:$0xf]
          %v1036 = vld [vmem:[%s2 + $0x1d0] sm:$0xf]
          %v1037 = vld [vmem:[%s2 + $0x1d4] sm:$0xf]
          %v1038 = vld [vmem:[%s2 + $0x1d8] sm:$0xf]
          %v1039 = vld [vmem:[%s2 + $0x1dc] sm:$0xf]
          %v1040 = vld [vmem:[%s2 + $0x1e0] sm:$0xf]
          %v1041 = vld [vmem:[%s2 + $0x1e4] sm:$0xf]
          %v1042 = vld [vmem:[%s2 + $0x1e8] sm:$0xf]
          %v1043 = vld [vmem:[%s2 + $0x1ec] sm:$0xf]
          %v1044 = vld [vmem:[%s2 + $0x1f0] sm:$0xf]
          %v1045 = vld [vmem:[%s2 + $0x1f4] sm:$0xf]
          %v1046 = vld [vmem:[%s2 + $0x1f8] sm:$0xf]
          %v1047 = vld [vmem:[%s2 + $0x1fc] sm:$0xf]
          %v1048 = vld [vmem:[%s2 + $0x200] sm:$0xf]
          %v1049 = vld [vmem:[%s2 + $0x204] sm:$0xf]
          %v1050 = vld [vmem:[%s2 + $0x208] sm:$0xf]
          %v1051 = vld [vmem:[%s2 + $0x20c] sm:$0xf]
          %v1052 = vld [vmem:[%s2 + $0x210] sm:$0xf]
          %v1053 = vld [vmem:[%s2 + $0x214] sm:$0xf]
          %v1054 = vld [vmem:[%s2 + $0x218] sm:$0xf]
          %v1055 = vld [vmem:[%s2 + $0x21c] sm:$0xf]
          %v1056 = vld [vmem:[%s2 + $0x220] sm:$0xf]
          %v1057 = vld [vmem:[%s2 + $0x224] sm:$0xf]
          %v1058 = vld [vmem:[%s2 + $0x228] sm:$0xf]
          %v1059 = vld [vmem:[%s2 + $0x22c] sm:$0xf]
          %v1060 = vld [vmem:[%s2 + $0x230] sm:$0xf]
          %v1061 = vld [vmem:[%s2 + $0x234] sm:$0xf]
          %v1062 = vld [vmem:[%s2 + $0x238] sm:$0xf]
          %v1063 = vld [vmem:[%s2 + $0x23c] sm:$0xf]
          %v1064 = vld [vmem:[%s2 + $0x240] sm:$0xf]
          %v1065 = vld [vmem:[%s2 + $0x244] sm:$0xf]
          %v1066 = vld [vmem:[%s2 + $0x248] sm:$0xf]
          %v1067 = vld [vmem:[%s2 + $0x24c] sm:$0xf]
          %v1068 = vld [vmem:[%s2 + $0x250] sm:$0xf]
          %v1069 = vld [vmem:[%s2 + $0x254] sm:$0xf]
          %v1070 = vld [vmem:[%s2 + $0x258] sm:$0xf]
          %v1071 = vld [vmem:[%s2 + $0x25c] sm:$0xf]
          %v1072 = vld [vmem:[%s2 + $0x260] sm:$0xf]
          %v1073 = vld [vmem:[%s2 + $0x264] sm:$0xf]
          %v1074 = vld [vmem:[%s2 + $0x268] sm:$0xf]
          %v1075 = vld [vmem:[%s2 + $0x26c] sm:$0xf]
          %v1076 = vld [vmem:[%s2 + $0x270] sm:$0xf]
          %v1077 = vld [vmem:[%s2 + $0x274] sm:$0xf]
          %v1078 = vld [vmem:[%s2 + $0x278] sm:$0xf]
          %v1079 = vld [vmem:[%s2 + $0x27c] sm:$0xf]
          %v1080 = vld [vmem:[%s2 + $0x280] sm:$0xf]
          %v1081 = vld [vmem:[%s2 + $0x284] sm:$0xf]
          %v1082 = vld [vmem:[%s2 + $0x288] sm:$0xf]
          %v1083 = vld [vmem:[%s2 + $0x28c] sm:$0xf]
          %v1084 = vld [vmem:[%s2 + $0x290] sm:$0xf]
          %v1085 = vld [vmem:[%s2 + $0x294] sm:$0xf]
          %v1086 = vld [vmem:[%s2 + $0x298] sm:$0xf]
          %v1087 = vld [vmem:[%s2 + $0x29c] sm:$0xf]
          %v1088 = vld [vmem:[%s2 + $0x2a0] sm:$0xf]
          %v1089 = vld [vmem:[%s2 + $0x2a4] sm:$0xf]
          %v1090 = vld [vmem:[%s2 + $0x2a8] sm:$0xf]
          %v1091 = vld [vmem:[%s2 + $0x2ac] sm:$0xf]
          %v1092 = vld [vmem:[%s2 + $0x2b0] sm:$0xf]
          %v1093 = vld [vmem:[%s2 + $0x2b4] sm:$0xf]
          %v1094 = vld [vmem:[%s2 + $0x2b8] sm:$0xf]
          %v1095 = vld [vmem:[%s2 + $0x2bc] sm:$0xf]
          %v1096 = vld [vmem:[%s2 + $0x2c0] sm:$0xf]
          %v1097 = vld [vmem:[%s2 + $0x2c4] sm:$0xf]
          %v1098 = vld [vmem:[%s2 + $0x2c8] sm:$0xf]
          %v1099 = vld [vmem:[%s2 + $0x2cc] sm:$0xf]
          %v1100 = vld [vmem:[%s2 + $0x2d0] sm:$0xf]
          %v1101 = vld [vmem:[%s2 + $0x2d4] sm:$0xf]
          %v1102 = vld [vmem:[%s2 + $0x2d8] sm:$0xf]
          %v1103 = vld [vmem:[%s2 + $0x2dc] sm:$0xf]
          %v1104 = vld [vmem:[%s2 + $0x2e0] sm:$0xf]
          %v1105 = vld [vmem:[%s2 + $0x2e4] sm:$0xf]
          %v1106 = vld [vmem:[%s2 + $0x2e8] sm:$0xf]
          %v1107 = vld [vmem:[%s2 + $0x2ec] sm:$0xf]
          %v1108 = vld [vmem:[%s2 + $0x2f0] sm:$0xf]
          %v1109 = vld [vmem:[%s2 + $0x2f4] sm:$0xf]
          %v1110 = vld [vmem:[%s2 + $0x2f8] sm:$0xf]
          %v1111 = vld [vmem:[%s2 + $0x2fc] sm:$0xf]
          %v1112 = vld [vmem:[%s2 + $0x300] sm:$0xf]
          %v1113 = vld [vmem:[%s2 + $0x304] sm:$0xf]
          %v1114 = vld [vmem:[%s2 + $0x308] sm:$0xf]
          %v1115 = vld [vmem:[%s2 + $0x30c] sm:$0xf]
          %v1116 = vld [vmem:[%s2 + $0x310] sm:$0xf]
          %v1117 = vld [vmem:[%s2 + $0x314] sm:$0xf]
          %v1118 = vld [vmem:[%s2 + $0x318] sm:$0xf]
          %v1119 = vld [vmem:[%s2 + $0x31c] sm:$0xf]
          %v1120 = vld [vmem:[%s2 + $0x320] sm:$0xf]
          %v1121 = vld [vmem:[%s2 + $0x324] sm:$0xf]
          %v1122 = vld [vmem:[%s2 + $0x328] sm:$0xf]
          %v1123 = vld [vmem:[%s2 + $0x32c] sm:$0xf]
          %v1124 = vld [vmem:[%s2 + $0x330] sm:$0xf]
          %v1125 = vld [vmem:[%s2 + $0x334] sm:$0xf]
          %v1126 = vld [vmem:[%s2 + $0x338] sm:$0xf]
          %v1127 = vld [vmem:[%s2 + $0x33c] sm:$0xf]
          %v1128 = vld [vmem:[%s2 + $0x340] sm:$0xf]
          %v1129 = vld [vmem:[%s2 + $0x344] sm:$0xf]
          %v1130 = vld [vmem:[%s2 + $0x348] sm:$0xf]
          %v1131 = vld [vmem:[%s2 + $0x34c] sm:$0xf]
          %v1132 = vld [vmem:[%s2 + $0x350] sm:$0xf]
          %v1133 = vld [vmem:[%s2 + $0x354] sm:$0xf]
          %v1134 = vld [vmem:[%s2 + $0x358] sm:$0xf]
          %v1135 = vld [vmem:[%s2 + $0x35c] sm:$0xf]
          %v1136 = vld [vmem:[%s2 + $0x360] sm:$0xf]
          %v1137 = vld [vmem:[%s2 + $0x364] sm:$0xf]
          %v1138 = vld [vmem:[%s2 + $0x368] sm:$0xf]
          %v1139 = vld [vmem:[%s2 + $0x36c] sm:$0xf]
          %v1140 = vld [vmem:[%s2 + $0x370] sm:$0xf]
          %v1141 = vld [vmem:[%s2 + $0x374] sm:$0xf]
          %v1142 = vld [vmem:[%s2 + $0x378] sm:$0xf]
          %v1143 = vld [vmem:[%s2 + $0x37c] sm:$0xf]
          %v1144 = vld [vmem:[%s2 + $0x380] sm:$0xf]
          %v1145 = vld [vmem:[%s2 + $0x384] sm:$0xf]
          %v1146 = vld [vmem:[%s2 + $0x388] sm:$0xf]
          %v1147 = vld [vmem:[%s2 + $0x38c] sm:$0xf]
          %v1148 = vld [vmem:[%s2 + $0x390] sm:$0xf]
          %v1149 = vld [vmem:[%s2 + $0x394] sm:$0xf]
          %v1150 = vld [vmem:[%s2 + $0x398] sm:$0xf]
          %v1151 = vld [vmem:[%s2 + $0x39c] sm:$0xf]
          %v1152 = vld [vmem:[%s2 + $0x3a0] sm:$0xf]
          %v1153 = vld [vmem:[%s2 + $0x3a4] sm:$0xf]
          %v1154 = vld [vmem:[%s2 + $0x3a8] sm:$0xf]
          %v1155 = vld [vmem:[%s2 + $0x3ac] sm:$0xf]
          %v1156 = vld [vmem:[%s2 + $0x3b0] sm:$0xf]
          %v1157 = vld [vmem:[%s2 + $0x3b4] sm:$0xf]
          %v1158 = vld [vmem:[%s2 + $0x3b8] sm:$0xf]
          %v1159 = vld [vmem:[%s2 + $0x3bc] sm:$0xf]
          %v1160 = vld [vmem:[%s2 + $0x3c0] sm:$0xf]
          %v1161 = vld [vmem:[%s2 + $0x3c4] sm:$0xf]
          %v1162 = vld [vmem:[%s2 + $0x3c8] sm:$0xf]
          %v1163 = vld [vmem:[%s2 + $0x3cc] sm:$0xf]
          %v1164 = vld [vmem:[%s2 + $0x3d0] sm:$0xf]
          %v1165 = vld [vmem:[%s2 + $0x3d4] sm:$0xf]
          %v1166 = vld [vmem:[%s2 + $0x3d8] sm:$0xf]
          %v1167 = vld [vmem:[%s2 + $0x3dc] sm:$0xf]
          %v1168 = vld [vmem:[%s2 + $0x3e0] sm:$0xf]
          %v1169 = vld [vmem:[%s2 + $0x3e4] sm:$0xf]
          %v1170 = vld [vmem:[%s2 + $0x3e8] sm:$0xf]
          %v1171 = vld [vmem:[%s2 + $0x3ec] sm:$0xf]
          %v1172 = vld [vmem:[%s2 + $0x3f0] sm:$0xf]
          %v1173 = vld [vmem:[%s2 + $0x3f4] sm:$0xf]
          %v1174 = vld [vmem:[%s2 + $0x3f8] sm:$0xf]
          %v1175 = vld [vmem:[%s2 + $0x3fc] sm:$0xf]
          %v1176 = vld [vmem:[%s3] sm:$0x1]
          %v1178 = vperm.slane %v1176, 0
          %v1188 = vunpack.c.l.b16 %v912
          %v1189 = vunpack.c.h.b16 %v912
          %v1190 = vunpack.c.l.b16 %v913
          %v1191 = vunpack.c.h.b16 %v913
          %v1192 = vunpack.c.l.b16 %v914
          %v1193 = vunpack.c.h.b16 %v914
          %v1194 = vunpack.c.l.b16 %v915
          %v1195 = vunpack.c.h.b16 %v915
          %v1196 = vunpack.c.l.b16 %v916
          %v1197 = vunpack.c.h.b16 %v916
          %v1198 = vunpack.c.l.b16 %v917
          %v1199 = vunpack.c.h.b16 %v917
          %v1200 = vunpack.c.l.b16 %v918
          %v1201 = vunpack.c.h.b16 %v918
          %v1202 = vunpack.c.l.b16 %v919
          %v1203 = vunpack.c.h.b16 %v919
          %v1204 = vpack.c.b16 %v1188, %v1188
          %v1205 = vpack.c.b16 %v1189, %v1189
          %v1206 = vpack.c.b16 %v1190, %v1190
          %v1207 = vpack.c.b16 %v1191, %v1191
          %v1208 = vpack.c.b16 %v1192, %v1192
          %v1209 = vpack.c.b16 %v1193, %v1193
          %v1210 = vpack.c.b16 %v1194, %v1194
          %v1211 = vpack.c.b16 %v1195, %v1195
          %v1212 = vpack.c.b16 %v1196, %v1196
          %v1213 = vpack.c.b16 %v1197, %v1197
          %v1214 = vpack.c.b16 %v1198, %v1198
          %v1215 = vpack.c.b16 %v1199, %v1199
          %v1216 = vpack.c.b16 %v1200, %v1200
          %v1217 = vpack.c.b16 %v1201, %v1201
          %v1218 = vpack.c.b16 %v1202, %v1202
          %v1219 = vpack.c.b16 %v1203, %v1203
          %v1492 = vunpack.c.l.b16 %v920
          %v1493 = vunpack.c.l.b16 %v921
          %v1494 = vunpack.c.l.b16 %v922
          %v1495 = vunpack.c.l.b16 %v923
          %v1496 = vunpack.c.l.b16 %v924
          %v1497 = vunpack.c.l.b16 %v925
          %v1498 = vunpack.c.l.b16 %v926
          %v1499 = vunpack.c.l.b16 %v927
          %v1500 = vunpack.c.l.b16 %v928
          %v1501 = vunpack.c.l.b16 %v929
          %v1502 = vunpack.c.l.b16 %v930
          %v1503 = vunpack.c.l.b16 %v931
          %v1504 = vunpack.c.l.b16 %v932
          %v1505 = vunpack.c.l.b16 %v933
          %v1506 = vunpack.c.l.b16 %v934
          %v1507 = vunpack.c.l.b16 %v935
          %v1508 = vunpack.c.l.b16 %v936
          %v1509 = vunpack.c.l.b16 %v937
          %v1510 = vunpack.c.l.b16 %v938
          %v1511 = vunpack.c.l.b16 %v939
          %v1512 = vunpack.c.l.b16 %v940
          %v1513 = vunpack.c.l.b16 %v941
          %v1514 = vunpack.c.l.b16 %v942
          %v1515 = vunpack.c.l.b16 %v943
          %v1516 = vunpack.c.l.b16 %v944
          %v1517 = vunpack.c.l.b16 %v945
          %v1518 = vunpack.c.l.b16 %v946
          %v1519 = vunpack.c.l.b16 %v947
          %v1520 = vunpack.c.l.b16 %v948
          %v1521 = vunpack.c.l.b16 %v949
          %v1522 = vunpack.c.l.b16 %v950
          %v1523 = vunpack.c.l.b16 %v951
          %v1524 = vunpack.c.l.b16 %v952
          %v1525 = vunpack.c.l.b16 %v953
          %v1526 = vunpack.c.l.b16 %v954
          %v1527 = vunpack.c.l.b16 %v955
          %v1528 = vunpack.c.l.b16 %v956
          %v1529 = vunpack.c.l.b16 %v957
          %v1530 = vunpack.c.l.b16 %v958
          %v1531 = vunpack.c.l.b16 %v959
          %v1532 = vunpack.c.l.b16 %v960
          %v1533 = vunpack.c.l.b16 %v961
          %v1534 = vunpack.c.l.b16 %v962
          %v1535 = vunpack.c.l.b16 %v963
          %v1536 = vunpack.c.l.b16 %v964
          %v1537 = vunpack.c.l.b16 %v965
          %v1538 = vunpack.c.l.b16 %v966
          %v1539 = vunpack.c.l.b16 %v967
          %v1540 = vunpack.c.l.b16 %v968
          %v1541 = vunpack.c.l.b16 %v969
          %v1542 = vunpack.c.l.b16 %v970
          %v1543 = vunpack.c.l.b16 %v971
          %v1544 = vunpack.c.l.b16 %v972
          %v1545 = vunpack.c.l.b16 %v973
          %v1546 = vunpack.c.l.b16 %v974
          %v1547 = vunpack.c.l.b16 %v975
          %v1548 = vunpack.c.l.b16 %v976
          %v1549 = vunpack.c.l.b16 %v977
          %v1550 = vunpack.c.l.b16 %v978
          %v1551 = vunpack.c.l.b16 %v979
          %v1552 = vunpack.c.l.b16 %v980
          %v1553 = vunpack.c.l.b16 %v981
          %v1554 = vunpack.c.l.b16 %v982
          %v1555 = vunpack.c.l.b16 %v983
          %v1556 = vunpack.c.l.b16 %v984
          %v1557 = vunpack.c.l.b16 %v985
          %v1558 = vunpack.c.l.b16 %v986
          %v1559 = vunpack.c.l.b16 %v987
          %v1560 = vunpack.c.l.b16 %v988
          %v1561 = vunpack.c.l.b16 %v989
          %v1562 = vunpack.c.l.b16 %v990
          %v1563 = vunpack.c.l.b16 %v991
          %v1564 = vunpack.c.l.b16 %v992
          %v1565 = vunpack.c.l.b16 %v993
          %v1566 = vunpack.c.l.b16 %v994
          %v1567 = vunpack.c.l.b16 %v995
          %v1568 = vunpack.c.l.b16 %v996
          %v1569 = vunpack.c.l.b16 %v997
          %v1570 = vunpack.c.l.b16 %v998
          %v1571 = vunpack.c.l.b16 %v999
          %v1572 = vunpack.c.l.b16 %v1000
          %v1573 = vunpack.c.l.b16 %v1001
          %v1574 = vunpack.c.l.b16 %v1002
          %v1575 = vunpack.c.l.b16 %v1003
          %v1576 = vunpack.c.l.b16 %v1004
          %v1577 = vunpack.c.l.b16 %v1005
          %v1578 = vunpack.c.l.b16 %v1006
          %v1579 = vunpack.c.l.b16 %v1007
          %v1580 = vunpack.c.l.b16 %v1008
          %v1581 = vunpack.c.l.b16 %v1009
          %v1582 = vunpack.c.l.b16 %v1010
          %v1583 = vunpack.c.l.b16 %v1011
          %v1584 = vunpack.c.l.b16 %v1012
          %v1585 = vunpack.c.l.b16 %v1013
          %v1586 = vunpack.c.l.b16 %v1014
          %v1587 = vunpack.c.l.b16 %v1015
          %v1588 = vunpack.c.l.b16 %v1016
          %v1589 = vunpack.c.l.b16 %v1017
          %v1590 = vunpack.c.l.b16 %v1018
          %v1591 = vunpack.c.l.b16 %v1019
          %v1592 = vunpack.c.l.b16 %v1020
          %v1593 = vunpack.c.l.b16 %v1021
          %v1594 = vunpack.c.l.b16 %v1022
          %v1595 = vunpack.c.l.b16 %v1023
          %v1596 = vunpack.c.l.b16 %v1024
          %v1597 = vunpack.c.l.b16 %v1025
          %v1598 = vunpack.c.l.b16 %v1026
          %v1599 = vunpack.c.l.b16 %v1027
          %v1600 = vunpack.c.l.b16 %v1028
          %v1601 = vunpack.c.l.b16 %v1029
          %v1602 = vunpack.c.l.b16 %v1030
          %v1603 = vunpack.c.l.b16 %v1031
          %v1604 = vunpack.c.l.b16 %v1032
          %v1605 = vunpack.c.l.b16 %v1033
          %v1606 = vunpack.c.l.b16 %v1034
          %v1607 = vunpack.c.l.b16 %v1035
          %v1608 = vunpack.c.l.b16 %v1036
          %v1609 = vunpack.c.l.b16 %v1037
          %v1610 = vunpack.c.l.b16 %v1038
          %v1611 = vunpack.c.l.b16 %v1039
          %v1612 = vunpack.c.l.b16 %v1040
          %v1613 = vunpack.c.l.b16 %v1041
          %v1614 = vunpack.c.l.b16 %v1042
          %v1615 = vunpack.c.l.b16 %v1043
          %v1616 = vunpack.c.l.b16 %v1044
          %v1617 = vunpack.c.l.b16 %v1045
          %v1618 = vunpack.c.l.b16 %v1046
          %v1619 = vunpack.c.l.b16 %v1047
          %v1620 = vunpack.c.l.b16 %v1048
          %v1621 = vunpack.c.l.b16 %v1049
          %v1622 = vunpack.c.l.b16 %v1050
          %v1623 = vunpack.c.l.b16 %v1051
          %v1624 = vunpack.c.l.b16 %v1052
          %v1625 = vunpack.c.l.b16 %v1053
          %v1626 = vunpack.c.l.b16 %v1054
          %v1627 = vunpack.c.l.b16 %v1055
          %v1628 = vunpack.c.l.b16 %v1056
          %v1629 = vunpack.c.l.b16 %v1057
          %v1630 = vunpack.c.l.b16 %v1058
          %v1631 = vunpack.c.l.b16 %v1059
          %v1632 = vunpack.c.l.b16 %v1060
          %v1633 = vunpack.c.l.b16 %v1061
          %v1634 = vunpack.c.l.b16 %v1062
          %v1635 = vunpack.c.l.b16 %v1063
          %v1636 = vunpack.c.l.b16 %v1064
          %v1637 = vunpack.c.l.b16 %v1065
          %v1638 = vunpack.c.l.b16 %v1066
          %v1639 = vunpack.c.l.b16 %v1067
          %v1640 = vunpack.c.l.b16 %v1068
          %v1641 = vunpack.c.l.b16 %v1069
          %v1642 = vunpack.c.l.b16 %v1070
          %v1643 = vunpack.c.l.b16 %v1071
          %v1644 = vunpack.c.l.b16 %v1072
          %v1645 = vunpack.c.l.b16 %v1073
          %v1646 = vunpack.c.l.b16 %v1074
          %v1647 = vunpack.c.l.b16 %v1075
          %v1648 = vunpack.c.l.b16 %v1076
          %v1649 = vunpack.c.l.b16 %v1077
          %v1650 = vunpack.c.l.b16 %v1078
          %v1651 = vunpack.c.l.b16 %v1079
          %v1652 = vunpack.c.l.b16 %v1080
          %v1653 = vunpack.c.l.b16 %v1081
          %v1654 = vunpack.c.l.b16 %v1082
          %v1655 = vunpack.c.l.b16 %v1083
          %v1656 = vunpack.c.l.b16 %v1084
          %v1657 = vunpack.c.l.b16 %v1085
          %v1658 = vunpack.c.l.b16 %v1086
          %v1659 = vunpack.c.l.b16 %v1087
          %v1660 = vunpack.c.l.b16 %v1088
          %v1661 = vunpack.c.l.b16 %v1089
          %v1662 = vunpack.c.l.b16 %v1090
          %v1663 = vunpack.c.l.b16 %v1091
          %v1664 = vunpack.c.l.b16 %v1092
          %v1665 = vunpack.c.l.b16 %v1093
          %v1666 = vunpack.c.l.b16 %v1094
          %v1667 = vunpack.c.l.b16 %v1095
          %v1668 = vunpack.c.l.b16 %v1096
          %v1669 = vunpack.c.l.b16 %v1097
          %v1670 = vunpack.c.l.b16 %v1098
          %v1671 = vunpack.c.l.b16 %v1099
          %v1672 = vunpack.c.l.b16 %v1100
          %v1673 = vunpack.c.l.b16 %v1101
          %v1674 = vunpack.c.l.b16 %v1102
          %v1675 = vunpack.c.l.b16 %v1103
          %v1676 = vunpack.c.l.b16 %v1104
          %v1677 = vunpack.c.l.b16 %v1105
          %v1678 = vunpack.c.l.b16 %v1106
          %v1679 = vunpack.c.l.b16 %v1107
          %v1680 = vunpack.c.l.b16 %v1108
          %v1681 = vunpack.c.l.b16 %v1109
          %v1682 = vunpack.c.l.b16 %v1110
          %v1683 = vunpack.c.l.b16 %v1111
          %v1684 = vunpack.c.l.b16 %v1112
          %v1685 = vunpack.c.l.b16 %v1113
          %v1686 = vunpack.c.l.b16 %v1114
          %v1687 = vunpack.c.l.b16 %v1115
          %v1688 = vunpack.c.l.b16 %v1116
          %v1689 = vunpack.c.l.b16 %v1117
          %v1690 = vunpack.c.l.b16 %v1118
          %v1691 = vunpack.c.l.b16 %v1119
          %v1692 = vunpack.c.l.b16 %v1120
          %v1693 = vunpack.c.l.b16 %v1121
          %v1694 = vunpack.c.l.b16 %v1122
          %v1695 = vunpack.c.l.b16 %v1123
          %v1696 = vunpack.c.l.b16 %v1124
          %v1697 = vunpack.c.l.b16 %v1125
          %v1698 = vunpack.c.l.b16 %v1126
          %v1699 = vunpack.c.l.b16 %v1127
          %v1700 = vunpack.c.l.b16 %v1128
          %v1701 = vunpack.c.l.b16 %v1129
          %v1702 = vunpack.c.l.b16 %v1130
          %v1703 = vunpack.c.l.b16 %v1131
          %v1704 = vunpack.c.l.b16 %v1132
          %v1705 = vunpack.c.l.b16 %v1133
          %v1706 = vunpack.c.l.b16 %v1134
          %v1707 = vunpack.c.l.b16 %v1135
          %v1708 = vunpack.c.l.b16 %v1136
          %v1709 = vunpack.c.l.b16 %v1137
          %v1710 = vunpack.c.l.b16 %v1138
          %v1711 = vunpack.c.l.b16 %v1139
          %v1712 = vunpack.c.l.b16 %v1140
          %v1713 = vunpack.c.l.b16 %v1141
          %v1714 = vunpack.c.l.b16 %v1142
          %v1715 = vunpack.c.l.b16 %v1143
          %v1716 = vunpack.c.l.b16 %v1144
          %v1717 = vunpack.c.l.b16 %v1145
          %v1718 = vunpack.c.l.b16 %v1146
          %v1719 = vunpack.c.l.b16 %v1147
          %v1720 = vunpack.c.l.b16 %v1148
          %v1721 = vunpack.c.l.b16 %v1149
          %v1722 = vunpack.c.l.b16 %v1150
          %v1723 = vunpack.c.l.b16 %v1151
          %v1724 = vunpack.c.l.b16 %v1152
          %v1725 = vunpack.c.l.b16 %v1153
          %v1726 = vunpack.c.l.b16 %v1154
          %v1727 = vunpack.c.l.b16 %v1155
          %v1728 = vunpack.c.l.b16 %v1156
          %v1729 = vunpack.c.l.b16 %v1157
          %v1730 = vunpack.c.l.b16 %v1158
          %v1731 = vunpack.c.l.b16 %v1159
          %v1732 = vunpack.c.l.b16 %v1160
          %v1733 = vunpack.c.l.b16 %v1161
          %v1734 = vunpack.c.l.b16 %v1162
          %v1735 = vunpack.c.l.b16 %v1163
          %v1736 = vunpack.c.l.b16 %v1164
          %v1737 = vunpack.c.l.b16 %v1165
          %v1738 = vunpack.c.l.b16 %v1166
          %v1739 = vunpack.c.l.b16 %v1167
          %v1740 = vunpack.c.l.b16 %v1168
          %v1741 = vunpack.c.l.b16 %v1169
          %v1742 = vunpack.c.l.b16 %v1170
          %v1743 = vunpack.c.l.b16 %v1171
          %v1744 = vunpack.c.l.b16 %v1172
          %v1745 = vunpack.c.l.b16 %v1173
          %v1746 = vunpack.c.l.b16 %v1174
          %v1747 = vunpack.c.l.b16 %v1175
          %v1748 = vpack.c.b16 %v1493, %v1492
          %v1749 = vpack.c.b16 %v1495, %v1494
          %v1750 = vpack.c.b16 %v1497, %v1496
          %v1751 = vpack.c.b16 %v1499, %v1498
          %v1752 = vpack.c.b16 %v1501, %v1500
          %v1753 = vpack.c.b16 %v1503, %v1502
          %v1754 = vpack.c.b16 %v1505, %v1504
          %v1755 = vpack.c.b16 %v1507, %v1506
          %v1756 = vpack.c.b16 %v1509, %v1508
          %v1757 = vpack.c.b16 %v1511, %v1510
          %v1758 = vpack.c.b16 %v1513, %v1512
          %v1759 = vpack.c.b16 %v1515, %v1514
          %v1760 = vpack.c.b16 %v1517, %v1516
          %v1761 = vpack.c.b16 %v1519, %v1518
          %v1762 = vpack.c.b16 %v1521, %v1520
          %v1763 = vpack.c.b16 %v1523, %v1522
          %v1764 = vpack.c.b16 %v1525, %v1524
          %v1765 = vpack.c.b16 %v1527, %v1526
          %v1766 = vpack.c.b16 %v1529, %v1528
          %v1767 = vpack.c.b16 %v1531, %v1530
          %v1768 = vpack.c.b16 %v1533, %v1532
          %v1769 = vpack.c.b16 %v1535, %v1534
          %v1770 = vpack.c.b16 %v1537, %v1536
          %v1771 = vpack.c.b16 %v1539, %v1538
          %v1772 = vpack.c.b16 %v1541, %v1540
          %v1773 = vpack.c.b16 %v1543, %v1542
          %v1774 = vpack.c.b16 %v1545, %v1544
          %v1775 = vpack.c.b16 %v1547, %v1546
          %v1776 = vpack.c.b16 %v1549, %v1548
          %v1777 = vpack.c.b16 %v1551, %v1550
          %v1778 = vpack.c.b16 %v1553, %v1552
          %v1779 = vpack.c.b16 %v1555, %v1554
          %v1780 = vpack.c.b16 %v1557, %v1556
          %v1781 = vpack.c.b16 %v1559, %v1558
          %v1782 = vpack.c.b16 %v1561, %v1560
          %v1783 = vpack.c.b16 %v1563, %v1562
          %v1784 = vpack.c.b16 %v1565, %v1564
          %v1785 = vpack.c.b16 %v1567, %v1566
          %v1786 = vpack.c.b16 %v1569, %v1568
          %v1787 = vpack.c.b16 %v1571, %v1570
          %v1788 = vpack.c.b16 %v1573, %v1572
          %v1789 = vpack.c.b16 %v1575, %v1574
          %v1790 = vpack.c.b16 %v1577, %v1576
          %v1791 = vpack.c.b16 %v1579, %v1578
          %v1792 = vpack.c.b16 %v1581, %v1580
          %v1793 = vpack.c.b16 %v1583, %v1582
          %v1794 = vpack.c.b16 %v1585, %v1584
          %v1795 = vpack.c.b16 %v1587, %v1586
          %v1796 = vpack.c.b16 %v1589, %v1588
          %v1797 = vpack.c.b16 %v1591, %v1590
          %v1798 = vpack.c.b16 %v1593, %v1592
          %v1799 = vpack.c.b16 %v1595, %v1594
          %v1800 = vpack.c.b16 %v1597, %v1596
          %v1801 = vpack.c.b16 %v1599, %v1598
          %v1802 = vpack.c.b16 %v1601, %v1600
          %v1803 = vpack.c.b16 %v1603, %v1602
          %v1804 = vpack.c.b16 %v1605, %v1604
          %v1805 = vpack.c.b16 %v1607, %v1606
          %v1806 = vpack.c.b16 %v1609, %v1608
          %v1807 = vpack.c.b16 %v1611, %v1610
          %v1808 = vpack.c.b16 %v1613, %v1612
          %v1809 = vpack.c.b16 %v1615, %v1614
          %v1810 = vpack.c.b16 %v1617, %v1616
          %v1811 = vpack.c.b16 %v1619, %v1618
          %v1812 = vpack.c.b16 %v1621, %v1620
          %v1813 = vpack.c.b16 %v1623, %v1622
          %v1814 = vpack.c.b16 %v1625, %v1624
          %v1815 = vpack.c.b16 %v1627, %v1626
          %v1816 = vpack.c.b16 %v1629, %v1628
          %v1817 = vpack.c.b16 %v1631, %v1630
          %v1818 = vpack.c.b16 %v1633, %v1632
          %v1819 = vpack.c.b16 %v1635, %v1634
          %v1820 = vpack.c.b16 %v1637, %v1636
          %v1821 = vpack.c.b16 %v1639, %v1638
          %v1822 = vpack.c.b16 %v1641, %v1640
          %v1823 = vpack.c.b16 %v1643, %v1642
          %v1824 = vpack.c.b16 %v1645, %v1644
          %v1825 = vpack.c.b16 %v1647, %v1646
          %v1826 = vpack.c.b16 %v1649, %v1648
          %v1827 = vpack.c.b16 %v1651, %v1650
          %v1828 = vpack.c.b16 %v1653, %v1652
          %v1829 = vpack.c.b16 %v1655, %v1654
          %v1830 = vpack.c.b16 %v1657, %v1656
          %v1831 = vpack.c.b16 %v1659, %v1658
          %v1832 = vpack.c.b16 %v1661, %v1660
          %v1833 = vpack.c.b16 %v1663, %v1662
          %v1834 = vpack.c.b16 %v1665, %v1664
          %v1835 = vpack.c.b16 %v1667, %v1666
          %v1836 = vpack.c.b16 %v1669, %v1668
          %v1837 = vpack.c.b16 %v1671, %v1670
          %v1838 = vpack.c.b16 %v1673, %v1672
          %v1839 = vpack.c.b16 %v1675, %v1674
          %v1840 = vpack.c.b16 %v1677, %v1676
          %v1841 = vpack.c.b16 %v1679, %v1678
          %v1842 = vpack.c.b16 %v1681, %v1680
          %v1843 = vpack.c.b16 %v1683, %v1682
          %v1844 = vpack.c.b16 %v1685, %v1684
          %v1845 = vpack.c.b16 %v1687, %v1686
          %v1846 = vpack.c.b16 %v1689, %v1688
          %v1847 = vpack.c.b16 %v1691, %v1690
          %v1848 = vpack.c.b16 %v1693, %v1692
          %v1849 = vpack.c.b16 %v1695, %v1694
          %v1850 = vpack.c.b16 %v1697, %v1696
          %v1851 = vpack.c.b16 %v1699, %v1698
          %v1852 = vpack.c.b16 %v1701, %v1700
          %v1853 = vpack.c.b16 %v1703, %v1702
          %v1854 = vpack.c.b16 %v1705, %v1704
          %v1855 = vpack.c.b16 %v1707, %v1706
          %v1856 = vpack.c.b16 %v1709, %v1708
          %v1857 = vpack.c.b16 %v1711, %v1710
          %v1858 = vpack.c.b16 %v1713, %v1712
          %v1859 = vpack.c.b16 %v1715, %v1714
          %v1860 = vpack.c.b16 %v1717, %v1716
          %v1861 = vpack.c.b16 %v1719, %v1718
          %v1862 = vpack.c.b16 %v1721, %v1720
          %v1863 = vpack.c.b16 %v1723, %v1722
          %v1864 = vpack.c.b16 %v1725, %v1724
          %v1865 = vpack.c.b16 %v1727, %v1726
          %v1866 = vpack.c.b16 %v1729, %v1728
          %v1867 = vpack.c.b16 %v1731, %v1730
          %v1868 = vpack.c.b16 %v1733, %v1732
          %v1869 = vpack.c.b16 %v1735, %v1734
          %v1870 = vpack.c.b16 %v1737, %v1736
          %v1871 = vpack.c.b16 %v1739, %v1738
          %v1872 = vpack.c.b16 %v1741, %v1740
          %v1873 = vpack.c.b16 %v1743, %v1742
          %v1874 = vpack.c.b16 %v1745, %v1744
          %v1875 = vpack.c.b16 %v1747, %v1746
          %2004 = vmatpush.bf16.msra.mxu0 %v1755
          %2005 = vmatpush.bf16.msra.mxu0 %v1754
          %2006 = vmatpush.bf16.msra.mxu0 %v1753
          %2007 = vmatpush.bf16.msra.mxu0 %v1752
          %2008 = vmatpush.bf16.msra.mxu0 %v1751
          %2009 = vmatpush.bf16.msra.mxu0 %v1750
          %2010 = vmatpush.bf16.msra.mxu0 %v1749
          %2011 = vmatpush.bf16.msra.mxu0 %v1748
          %2012 = vmatmul.bf16.gmra.mxu0 %v1204
          %v2013 = vpop.f32.mrf.mxu0
          %v2014 = vadd.f32 %v1178, %v2013
          %v2015 = vpop.f32.mrf.mxu0
          %2016 = vdwg.mxu0
          %2017 = vmatpush.bf16.msra.mxu0 %v1763
          %2018 = vmatpush.bf16.msra.mxu0 %v1762
          %2019 = vmatpush.bf16.msra.mxu0 %v1761
          %2020 = vmatpush.bf16.msra.mxu0 %v1760
          %2021 = vmatpush.bf16.msra.mxu0 %v1759
          %2022 = vmatpush.bf16.msra.mxu0 %v1758
          %2023 = vmatpush.bf16.msra.mxu0 %v1757
          %2024 = vmatpush.bf16.msra.mxu0 %v1756
          %2025 = vmatmul.bf16.gmra.mxu0 %v1205
          %v2026 = vpop.f32.mrf.mxu0
          %v2027 = vadd.f32 %v2014, %v2026
          %v2028 = vpop.f32.mrf.mxu0
          %2029 = vdwg.mxu0
          %2030 = vmatpush.bf16.msra.mxu0 %v1771
          %2031 = vmatpush.bf16.msra.mxu0 %v1770
          %2032 = vmatpush.bf16.msra.mxu0 %v1769
          %2033 = vmatpush.bf16.msra.mxu0 %v1768
          %2034 = vmatpush.bf16.msra.mxu0 %v1767
          %2035 = vmatpush.bf16.msra.mxu0 %v1766
          %2036 = vmatpush.bf16.msra.mxu0 %v1765
          %2037 = vmatpush.bf16.msra.mxu0 %v1764
          %2038 = vmatmul.bf16.gmra.mxu0 %v1206
          %v2039 = vpop.f32.mrf.mxu0
          %v2040 = vadd.f32 %v2027, %v2039
          %v2041 = vpop.f32.mrf.mxu0
          %2042 = vdwg.mxu0
          %2043 = vmatpush.bf16.msra.mxu0 %v1779
          %2044 = vmatpush.bf16.msra.mxu0 %v1778
          %2045 = vmatpush.bf16.msra.mxu0 %v1777
          %2046 = vmatpush.bf16.msra.mxu0 %v1776
          %2047 = vmatpush.bf16.msra.mxu0 %v1775
          %2048 = vmatpush.bf16.msra.mxu0 %v1774
          %2049 = vmatpush.bf16.msra.mxu0 %v1773
          %2050 = vmatpush.bf16.msra.mxu0 %v1772
          %2051 = vmatmul.bf16.gmra.mxu0 %v1207
          %v2052 = vpop.f32.mrf.mxu0
          %v2053 = vadd.f32 %v2040, %v2052
          %v2054 = vpop.f32.mrf.mxu0
          %2055 = vdwg.mxu0
          %2056 = vmatpush.bf16.msra.mxu0 %v1787
          %2057 = vmatpush.bf16.msra.mxu0 %v1786
          %2058 = vmatpush.bf16.msra.mxu0 %v1785
          %2059 = vmatpush.bf16.msra.mxu0 %v1784
          %2060 = vmatpush.bf16.msra.mxu0 %v1783
          %2061 = vmatpush.bf16.msra.mxu0 %v1782
          %2062 = vmatpush.bf16.msra.mxu0 %v1781
          %2063 = vmatpush.bf16.msra.mxu0 %v1780
          %2064 = vmatmul.bf16.gmra.mxu0 %v1208
          %v2065 = vpop.f32.mrf.mxu0
          %v2066 = vadd.f32 %v2053, %v2065
          %v2067 = vpop.f32.mrf.mxu0
          %2068 = vdwg.mxu0
          %2069 = vmatpush.bf16.msra.mxu0 %v1795
          %2070 = vmatpush.bf16.msra.mxu0 %v1794
          %2071 = vmatpush.bf16.msra.mxu0 %v1793
          %2072 = vmatpush.bf16.msra.mxu0 %v1792
          %2073 = vmatpush.bf16.msra.mxu0 %v1791
          %2074 = vmatpush.bf16.msra.mxu0 %v1790
          %2075 = vmatpush.bf16.msra.mxu0 %v1789
          %2076 = vmatpush.bf16.msra.mxu0 %v1788
          %2077 = vmatmul.bf16.gmra.mxu0 %v1209
          %v2078 = vpop.f32.mrf.mxu0
          %v2079 = vadd.f32 %v2066, %v2078
          %v2080 = vpop.f32.mrf.mxu0
          %2081 = vdwg.mxu0
          %2082 = vmatpush.bf16.msra.mxu0 %v1803
          %2083 = vmatpush.bf16.msra.mxu0 %v1802
          %2084 = vmatpush.bf16.msra.mxu0 %v1801
          %2085 = vmatpush.bf16.msra.mxu0 %v1800
          %2086 = vmatpush.bf16.msra.mxu0 %v1799
          %2087 = vmatpush.bf16.msra.mxu0 %v1798
          %2088 = vmatpush.bf16.msra.mxu0 %v1797
          %2089 = vmatpush.bf16.msra.mxu0 %v1796
          %2090 = vmatmul.bf16.gmra.mxu0 %v1210
          %v2091 = vpop.f32.mrf.mxu0
          %v2092 = vadd.f32 %v2079, %v2091
          %v2093 = vpop.f32.mrf.mxu0
          %2094 = vdwg.mxu0
          %2095 = vmatpush.bf16.msra.mxu0 %v1811
          %2096 = vmatpush.bf16.msra.mxu0 %v1810
          %2097 = vmatpush.bf16.msra.mxu0 %v1809
          %2098 = vmatpush.bf16.msra.mxu0 %v1808
          %2099 = vmatpush.bf16.msra.mxu0 %v1807
          %2100 = vmatpush.bf16.msra.mxu0 %v1806
          %2101 = vmatpush.bf16.msra.mxu0 %v1805
          %2102 = vmatpush.bf16.msra.mxu0 %v1804
          %2103 = vmatmul.bf16.gmra.mxu0 %v1211
          %v2104 = vpop.f32.mrf.mxu0
          %v2105 = vadd.f32 %v2092, %v2104
          %v2106 = vpop.f32.mrf.mxu0
          %2107 = vdwg.mxu0
          %2108 = vmatpush.bf16.msra.mxu0 %v1819
          %2109 = vmatpush.bf16.msra.mxu0 %v1818
          %2110 = vmatpush.bf16.msra.mxu0 %v1817
          %2111 = vmatpush.bf16.msra.mxu0 %v1816
          %2112 = vmatpush.bf16.msra.mxu0 %v1815
          %2113 = vmatpush.bf16.msra.mxu0 %v1814
          %2114 = vmatpush.bf16.msra.mxu0 %v1813
          %2115 = vmatpush.bf16.msra.mxu0 %v1812
          %2116 = vmatmul.bf16.gmra.mxu0 %v1212
          %v2117 = vpop.f32.mrf.mxu0
          %v2118 = vadd.f32 %v2105, %v2117
          %v2119 = vpop.f32.mrf.mxu0
          %2120 = vdwg.mxu0
          %2121 = vmatpush.bf16.msra.mxu0 %v1827
          %2122 = vmatpush.bf16.msra.mxu0 %v1826
          %2123 = vmatpush.bf16.msra.mxu0 %v1825
          %2124 = vmatpush.bf16.msra.mxu0 %v1824
          %2125 = vmatpush.bf16.msra.mxu0 %v1823
          %2126 = vmatpush.bf16.msra.mxu0 %v1822
          %2127 = vmatpush.bf16.msra.mxu0 %v1821
          %2128 = vmatpush.bf16.msra.mxu0 %v1820
          %2129 = vmatmul.bf16.gmra.mxu0 %v1213
          %v2130 = vpop.f32.mrf.mxu0
          %v2131 = vadd.f32 %v2118, %v2130
          %v2132 = vpop.f32.mrf.mxu0
          %2133 = vdwg.mxu0
          %2134 = vmatpush.bf16.msra.mxu0 %v1835
          %2135 = vmatpush.bf16.msra.mxu0 %v1834
          %2136 = vmatpush.bf16.msra.mxu0 %v1833
          %2137 = vmatpush.bf16.msra.mxu0 %v1832
          %2138 = vmatpush.bf16.msra.mxu0 %v1831
          %2139 = vmatpush.bf16.msra.mxu0 %v1830
          %2140 = vmatpush.bf16.msra.mxu0 %v1829
          %2141 = vmatpush.bf16.msra.mxu0 %v1828
          %2142 = vmatmul.bf16.gmra.mxu0 %v1214
          %v2143 = vpop.f32.mrf.mxu0
          %v2144 = vadd.f32 %v2131, %v2143
          %v2145 = vpop.f32.mrf.mxu0
          %2146 = vdwg.mxu0
          %2147 = vmatpush.bf16.msra.mxu0 %v1843
          %2148 = vmatpush.bf16.msra.mxu0 %v1842
          %2149 = vmatpush.bf16.msra.mxu0 %v1841
          %2150 = vmatpush.bf16.msra.mxu0 %v1840
          %2151 = vmatpush.bf16.msra.mxu0 %v1839
          %2152 = vmatpush.bf16.msra.mxu0 %v1838
          %2153 = vmatpush.bf16.msra.mxu0 %v1837
          %2154 = vmatpush.bf16.msra.mxu0 %v1836
          %2155 = vmatmul.bf16.gmra.mxu0 %v1215
          %v2156 = vpop.f32.mrf.mxu0
          %v2157 = vadd.f32 %v2144, %v2156
          %v2158 = vpop.f32.mrf.mxu0
          %2159 = vdwg.mxu0
          %2160 = vmatpush.bf16.msra.mxu0 %v1851
          %2161 = vmatpush.bf16.msra.mxu0 %v1850
          %2162 = vmatpush.bf16.msra.mxu0 %v1849
          %2163 = vmatpush.bf16.msra.mxu0 %v1848
          %2164 = vmatpush.bf16.msra.mxu0 %v1847
          %2165 = vmatpush.bf16.msra.mxu0 %v1846
          %2166 = vmatpush.bf16.msra.mxu0 %v1845
          %2167 = vmatpush.bf16.msra.mxu0 %v1844
          %2168 = vmatmul.bf16.gmra.mxu0 %v1216
          %v2169 = vpop.f32.mrf.mxu0
          %v2170 = vadd.f32 %v2157, %v2169
          %v2171 = vpop.f32.mrf.mxu0
          %2172 = vdwg.mxu0
          %2173 = vmatpush.bf16.msra.mxu0 %v1859
          %2174 = vmatpush.bf16.msra.mxu0 %v1858
          %2175 = vmatpush.bf16.msra.mxu0 %v1857
          %2176 = vmatpush.bf16.msra.mxu0 %v1856
          %2177 = vmatpush.bf16.msra.mxu0 %v1855
          %2178 = vmatpush.bf16.msra.mxu0 %v1854
          %2179 = vmatpush.bf16.msra.mxu0 %v1853
          %2180 = vmatpush.bf16.msra.mxu0 %v1852
          %2181 = vmatmul.bf16.gmra.mxu0 %v1217
          %v2182 = vpop.f32.mrf.mxu0
          %v2183 = vadd.f32 %v2170, %v2182
          %v2184 = vpop.f32.mrf.mxu0
          %2185 = vdwg.mxu0
          %2186 = vmatpush.bf16.msra.mxu0 %v1867
          %2187 = vmatpush.bf16.msra.mxu0 %v1866
          %2188 = vmatpush.bf16.msra.mxu0 %v1865
          %2189 = vmatpush.bf16.msra.mxu0 %v1864
          %2190 = vmatpush.bf16.msra.mxu0 %v1863
          %2191 = vmatpush.bf16.msra.mxu0 %v1862
          %2192 = vmatpush.bf16.msra.mxu0 %v1861
          %2193 = vmatpush.bf16.msra.mxu0 %v1860
          %2194 = vmatmul.bf16.gmra.mxu0 %v1218
          %v2195 = vpop.f32.mrf.mxu0
          %v2196 = vadd.f32 %v2183, %v2195
          %v2197 = vpop.f32.mrf.mxu0
          %2198 = vdwg.mxu0
          %2199 = vmatpush.bf16.msra.mxu0 %v1875
          %2200 = vmatpush.bf16.msra.mxu0 %v1874
          %2201 = vmatpush.bf16.msra.mxu0 %v1873
          %2202 = vmatpush.bf16.msra.mxu0 %v1872
          %2203 = vmatpush.bf16.msra.mxu0 %v1871
          %2204 = vmatpush.bf16.msra.mxu0 %v1870
          %2205 = vmatpush.bf16.msra.mxu0 %v1869
          %2206 = vmatpush.bf16.msra.mxu0 %v1868
          %2207 = vmatmul.bf16.gmra.mxu0 %v1219
          %v2208 = vpop.f32.mrf.mxu0
          %v2209 = vadd.f32 %v2196, %v2208
          %v2210 = vpop.f32.mrf.mxu0
          %2211 = vdwg.mxu0
          %v2212 = vmax.f32 %v2209, 0.0
          %v2213 = vpack.c.bf16 %v2212, %v2212
          %v2214 = vld [vmem:[%s4] sm:$0xf]
          %v2215 = vld [vmem:[%s4 + $0x4] sm:$0xf]
          %v2216 = vld [vmem:[%s4 + $0x8] sm:$0xf]
          %v2217 = vld [vmem:[%s4 + $0xc] sm:$0xf]
          %v2218 = vld [vmem:[%s5] sm:$0x1]
          %v2220 = vperm.slane %v2218, 0
          %v2226 = vunpack.c.l.b16 %v2214
          %v2227 = vunpack.c.l.b16 %v2215
          %v2228 = vunpack.c.l.b16 %v2216
          %v2229 = vunpack.c.l.b16 %v2217
          %v2230 = vpack.c.b16 %v2227, %v2226
          %v2231 = vpack.c.b16 %v2229, %v2228
          %vm2234 = vcmask 261120
          %v2236 = vsel %vm2234, %v2213, 0
          %2238 = vmatpush.bf16.msra.mxu0 0
          %2239 = vmatpush.bf16.msra.mxu0 0
          %2240 = vmatpush.bf16.msra.mxu0 0
          %2241 = vmatpush.bf16.msra.mxu0 0
          %2242 = vmatpush.bf16.msra.mxu0 0
          %2243 = vmatpush.bf16.msra.mxu0 0
          %2244 = vmatpush.bf16.msra.mxu0 %v2231
          %2245 = vmatpush.bf16.msra.mxu0 %v2230
          %2246 = vmatmul.bf16.gmra.mxu0 %v2236
          %v2247 = vpop.f32.mrf.mxu0
          %v2248 = vadd.f32 %v2220, %v2247
          %v2249 = vpop.f32.mrf.mxu0
          %2250 = vdwg.mxu0
          %v2251 = vld [vmem:[%s6] sm:$0xff]
          %v2252 = vadd.f32 %v2248, %v2251
          %2253 = vst.msk [vmem:[%s846] sm:$0xff] %vm2234, %v2252
        $region108: #{tpu_custom_call.1} parent=103 // pred_fallthru
          _
        %v2254 = vld [vmem:[%s846] sm:$0xff]
        %v2255 = vld [vmem:[%s854] sm:$0x1]
        %v2256 = vpack.c.bf16 %v2254, %v2254
        %v2257 = vld [vmem:[%s859] sm:$0xf]
        %v2258 = vld [vmem:[%s859 + $0x4] sm:$0xf]
        %v2259 = vld [vmem:[%s859 + $0x8] sm:$0xf]
        %v2260 = vld [vmem:[%s859 + $0xc] sm:$0xf]
        %v2261 = vld [vmem:[%s862] sm:$0x1]
        %v2263 = vperm.slane %v2261, 0
        %v2269 = vunpack.c.l.b16 %v2257
        %v2270 = vunpack.c.l.b16 %v2258
        %v2271 = vunpack.c.l.b16 %v2259
        %v2272 = vunpack.c.l.b16 %v2260
        %v2273 = vpack.c.b16 %v2270, %v2269
        %v2274 = vpack.c.b16 %v2272, %v2271
        %vm2277 = vcmask 261120
        %v2279 = vsel %vm2277, %v2256, 0
        %2281 = vmatpush.bf16.msra.mxu0 0
        %2282 = vmatpush.bf16.msra.mxu0 0
        %2283 = vmatpush.bf16.msra.mxu0 0
        %2284 = vmatpush.bf16.msra.mxu0 0
        %2285 = vmatpush.bf16.msra.mxu0 0
        %2286 = vmatpush.bf16.msra.mxu0 0
        %2287 = vmatpush.bf16.msra.mxu0 %v2274
        %2288 = vmatpush.bf16.msra.mxu0 %v2273
        %2289 = vmatmul.bf16.gmra.mxu0 %v2279
        %v2290 = vpop.f32.mrf.mxu0
        %v2291 = vadd.f32 %v2263, %v2290
        %v2292 = vpop.f32.mrf.mxu0
        %2293 = vdwg.mxu0
        %v2294 = vmax.f32 %v2291, 0.0
        %v2295 = vld [vmem:[%s867] sm:$0xf]
        %v2296 = vld [vmem:[%s867 + $0x4] sm:$0xf]
        %v2297 = vld [vmem:[%s867 + $0x8] sm:$0xf]
        %v2298 = vld [vmem:[%s867 + $0xc] sm:$0xf]
        %v2299 = vld [vmem:[%s870] sm:$0x1]
        %v2301 = vperm.slane %v2299, 0
        %v2307 = vunpack.c.l.b16 %v2295
        %v2308 = vunpack.c.l.b16 %v2296
        %v2309 = vunpack.c.l.b16 %v2297
        %v2310 = vunpack.c.l.b16 %v2298
        %v2311 = vpack.c.b16 %v2308, %v2307
        %v2312 = vpack.c.b16 %v2310, %v2309
        %2315 = vmatpush.bf16.msra.mxu0 0
        %2316 = vmatpush.bf16.msra.mxu0 0
        %2317 = vmatpush.bf16.msra.mxu0 0
        %2318 = vmatpush.bf16.msra.mxu0 0
        %2319 = vmatpush.bf16.msra.mxu0 0
        %2320 = vmatpush.bf16.msra.mxu0 0
        %2321 = vmatpush.bf16.msra.mxu0 %v2312
        %2322 = vmatpush.bf16.msra.mxu0 %v2311
        %2323 = vmatmul.bf16.gmra.mxu0 %v2279
        %v2324 = vpop.f32.mrf.mxu0
        %v2325 = vadd.f32 %v2301, %v2324
        %v2326 = vpop.f32.mrf.mxu0
        %2327 = vdwg.mxu0
        %v2328 = vmax.f32 %v2325, 0.0
        %v2329 = vld [vmem:[%s875] sm:$0xf]
        %v2330 = vld [vmem:[%s875 + $0x4] sm:$0xf]
        %v2331 = vld [vmem:[%s875 + $0x8] sm:$0xf]
        %v2332 = vld [vmem:[%s875 + $0xc] sm:$0xf]
        %v2333 = vld [vmem:[%s878] sm:$0x1]
        %v2335 = vperm.slane %v2333, 0
        %v2341 = vunpack.c.l.b16 %v2329
        %v2342 = vunpack.c.l.b16 %v2330
        %v2343 = vunpack.c.l.b16 %v2331
        %v2344 = vunpack.c.l.b16 %v2332
        %v2345 = vpack.c.b16 %v2342, %v2341
        %v2346 = vpack.c.b16 %v2344, %v2343
        %2349 = vmatpush.bf16.msra.mxu0 0
        %2350 = vmatpush.bf16.msra.mxu0 0
        %2351 = vmatpush.bf16.msra.mxu0 0
        %2352 = vmatpush.bf16.msra.mxu0 0
        %2353 = vmatpush.bf16.msra.mxu0 0
        %2354 = vmatpush.bf16.msra.mxu0 0
        %2355 = vmatpush.bf16.msra.mxu0 %v2346
        %2356 = vmatpush.bf16.msra.mxu0 %v2345
        %2357 = vmatmul.bf16.gmra.mxu0 %v2279
        %v2358 = vpop.f32.mrf.mxu0
        %v2359 = vadd.f32 %v2335, %v2358
        %v2360 = vpop.f32.mrf.mxu0
        %2361 = vdwg.mxu0
        %v2362 = vmax.f32 %v2359, 0.0
        %2364 = vrot.lane.b32.xlu0 %v2294, 120
        %v2365 = vpop.permute.xlu0 %2364
        %2367 = vrot.lane.b32.xlu0 %v2294, 112
        %v2368 = vpop.permute.xlu0 %2367
        %2370 = vrot.lane.b32.xlu0 %v2294, 104
        %v2371 = vpop.permute.xlu0 %2370
        %v2373 = vrot.slane %v2368, 4
        %vm2374 = vcmask 1047556
        %v2375 = vsel %vm2374, %v2373, %v2294
        %v2376 = vrot.slane %v2294, 4
        %v2377 = vsel %vm2374, %v2368, %v2376
        %v2379 = vunpack.c.l.s4 1983009808
        %v2380 = vunpack.c.0.s8 %v2379
        %v2381 = vperm.slane %v2375, %v2380
        %v2383 = vunpack.c.l.s4 1983009808
        %v2384 = vunpack.c.0.s8 %v2383
        %v2385 = vperm.slane %v2377, %v2384
        %v2386 = vrot.slane %v2371, 4
        %v2387 = vsel %vm2374, %v2386, %v2365
        %v2388 = vrot.slane %v2365, 4
        %v2389 = vsel %vm2374, %v2371, %v2388
        %v2391 = vunpack.c.l.s4 1983009808
        %v2392 = vunpack.c.0.s8 %v2391
        %v2393 = vperm.slane %v2387, %v2392
        %v2395 = vunpack.c.l.s4 1983009808
        %v2396 = vunpack.c.0.s8 %v2395
        %v2397 = vperm.slane %v2389, %v2396
        %v2398 = vrot.slane %v2393, 4
        %v2399 = vsel %vm2374, %v2398, %v2381
        %v2400 = vrot.slane %v2381, 4
        %v2401 = vsel %vm2374, %v2393, %v2400
        %v2403 = vunpack.c.l.s4 1934713408
        %v2404 = vunpack.c.0.s8 %v2403
        %v2405 = vperm.slane %v2399, %v2404
        %v2407 = vunpack.c.l.s4 1934713408
        %v2408 = vunpack.c.0.s8 %v2407
        %v2409 = vperm.slane %v2401, %v2408
        %v2410 = vrot.slane %v2397, 4
        %v2411 = vsel %vm2374, %v2410, %v2385
        %v2412 = vrot.slane %v2385, 4
        %v2413 = vsel %vm2374, %v2397, %v2412
        %v2415 = vunpack.c.l.s4 1934713408
        %v2416 = vunpack.c.0.s8 %v2415
        %v2417 = vperm.slane %v2411, %v2416
        %v2419 = vunpack.c.l.s4 1934713408
        %v2420 = vunpack.c.0.s8 %v2419
        %v2421 = vperm.slane %v2413, %v2420
        %v2422 = vrot.slane %v2405, 4
        %v2423 = vsel %vm2374, 0.0, %v2422
        %v2424 = vrot.slane %v2409, 4
        %v2425 = vsel %vm2374, 0.0, %v2424
        %v2426 = vrot.slane %v2417, 4
        %v2427 = vsel %vm2374, 0.0, %v2426
        %v2428 = vrot.slane %v2421, 4
        %v2429 = vsel %vm2374, 0.0, %v2428
        %v2430 = vsel %vm2374, %v2424, %v2405
        %v2432 = vunpack.c.l.s4 1983009808
        %v2433 = vunpack.c.0.s8 %v2432
        %v2434 = vperm.slane %v2430, %v2433
        %v2435 = vrot.slane %v2425, 4
        %v2436 = vsel %vm2374, %v2435, %v2423
        %v2438 = vunpack.c.l.s4 1983009808
        %v2439 = vunpack.c.0.s8 %v2438
        %v2440 = vperm.slane %v2436, %v2439
        %v2441 = vsel %vm2374, %v2428, %v2417
        %v2443 = vunpack.c.l.s4 1983009808
        %v2444 = vunpack.c.0.s8 %v2443
        %v2445 = vperm.slane %v2441, %v2444
        %v2446 = vrot.slane %v2429, 4
        %v2447 = vsel %vm2374, %v2446, %v2427
        %v2449 = vunpack.c.l.s4 1983009808
        %v2450 = vunpack.c.0.s8 %v2449
        %v2451 = vperm.slane %v2447, %v2450
        %v2452 = vrot.slane %v2440, 4
        %v2453 = vsel %vm2374, %v2452, %v2434
        %v2454 = vrot.slane %v2434, 4
        %v2455 = vsel %vm2374, %v2440, %v2454
        %v2457 = vunpack.c.l.s4 1934713408
        %v2458 = vunpack.c.0.s8 %v2457
        %v2459 = vperm.slane %v2453, %v2458
        %v2461 = vunpack.c.l.s4 1934713408
        %v2462 = vunpack.c.0.s8 %v2461
        %v2463 = vperm.slane %v2455, %v2462
        %v2464 = vrot.slane %v2451, 4
        %v2465 = vsel %vm2374, %v2464, %v2445
        %v2466 = vrot.slane %v2445, 4
        %v2467 = vsel %vm2374, %v2451, %v2466
        %v2469 = vunpack.c.l.s4 1934713408
        %v2470 = vunpack.c.0.s8 %v2469
        %v2471 = vperm.slane %v2465, %v2470
        %v2473 = vunpack.c.l.s4 1934713408
        %v2474 = vunpack.c.0.s8 %v2473
        %v2475 = vperm.slane %v2467, %v2474
        %v2476 = vrot.slane %v2471, 4
        %v2477 = vsel %vm2374, %v2476, %v2459
        %v2478 = vrot.slane %v2459, 4
        %v2479 = vsel %vm2374, %v2471, %v2478
        %v2480 = vrot.slane %v2475, 4
        %v2481 = vsel %vm2374, %v2480, %v2463
        %v2482 = vrot.slane %v2463, 4
        %v2483 = vsel %vm2374, %v2475, %v2482
        %v2484 = vpack.c.bf16 %v2477, %v2477
        %v2485 = vpack.c.bf16 %v2479, %v2479
        %v2486 = vpack.c.bf16 %v2481, %v2481
        %v2487 = vpack.c.bf16 %v2483, %v2483
        %2489 = vrot.lane.b32.xlu0 %v2328, 120
        %v2490 = vpop.permute.xlu0 %2489
        %2492 = vrot.lane.b32.xlu0 %v2328, 112
        %v2493 = vpop.permute.xlu0 %2492
        %2495 = vrot.lane.b32.xlu0 %v2328, 104
        %v2496 = vpop.permute.xlu0 %2495
        %v2498 = vrot.slane %v2493, 4
        %v2499 = vsel %vm2374, %v2498, %v2328
        %v2500 = vrot.slane %v2328, 4
        %v2501 = vsel %vm2374, %v2493, %v2500
        %v2503 = vunpack.c.l.s4 1983009808
        %v2504 = vunpack.c.0.s8 %v2503
        %v2505 = vperm.slane %v2499, %v2504
        %v2507 = vunpack.c.l.s4 1983009808
        %v2508 = vunpack.c.0.s8 %v2507
        %v2509 = vperm.slane %v2501, %v2508
        %v2510 = vrot.slane %v2496, 4
        %v2511 = vsel %vm2374, %v2510, %v2490
        %v2512 = vrot.slane %v2490, 4
        %v2513 = vsel %vm2374, %v2496, %v2512
        %v2515 = vunpack.c.l.s4 1983009808
        %v2516 = vunpack.c.0.s8 %v2515
        %v2517 = vperm.slane %v2511, %v2516
        %v2519 = vunpack.c.l.s4 1983009808
        %v2520 = vunpack.c.0.s8 %v2519
        %v2521 = vperm.slane %v2513, %v2520
        %v2522 = vrot.slane %v2517, 4
        %v2523 = vsel %vm2374, %v2522, %v2505
        %v2524 = vrot.slane %v2505, 4
        %v2525 = vsel %vm2374, %v2517, %v2524
        %v2527 = vunpack.c.l.s4 1934713408
        %v2528 = vunpack.c.0.s8 %v2527
        %v2529 = vperm.slane %v2523, %v2528
        %v2531 = vunpack.c.l.s4 1934713408
        %v2532 = vunpack.c.0.s8 %v2531
        %v2533 = vperm.slane %v2525, %v2532
        %v2534 = vrot.slane %v2521, 4
        %v2535 = vsel %vm2374, %v2534, %v2509
        %v2536 = vrot.slane %v2509, 4
        %v2537 = vsel %vm2374, %v2521, %v2536
        %v2539 = vunpack.c.l.s4 1934713408
        %v2540 = vunpack.c.0.s8 %v2539
        %v2541 = vperm.slane %v2535, %v2540
        %v2543 = vunpack.c.l.s4 1934713408
        %v2544 = vunpack.c.0.s8 %v2543
        %v2545 = vperm.slane %v2537, %v2544
        %v2546 = vrot.slane %v2529, 4
        %v2547 = vsel %vm2374, 0.0, %v2546
        %v2548 = vrot.slane %v2533, 4
        %v2549 = vsel %vm2374, 0.0, %v2548
        %v2550 = vrot.slane %v2541, 4
        %v2551 = vsel %vm2374, 0.0, %v2550
        %v2552 = vrot.slane %v2545, 4
        %v2553 = vsel %vm2374, 0.0, %v2552
        %v2554 = vsel %vm2374, %v2548, %v2529
        %v2556 = vunpack.c.l.s4 1983009808
        %v2557 = vunpack.c.0.s8 %v2556
        %v2558 = vperm.slane %v2554, %v2557
        %v2559 = vrot.slane %v2549, 4
        %v2560 = vsel %vm2374, %v2559, %v2547
        %v2562 = vunpack.c.l.s4 1983009808
        %v2563 = vunpack.c.0.s8 %v2562
        %v2564 = vperm.slane %v2560, %v2563
        %v2565 = vsel %vm2374, %v2552, %v2541
        %v2567 = vunpack.c.l.s4 1983009808
        %v2568 = vunpack.c.0.s8 %v2567
        %v2569 = vperm.slane %v2565, %v2568
        %v2570 = vrot.slane %v2553, 4
        %v2571 = vsel %vm2374, %v2570, %v2551
        %v2573 = vunpack.c.l.s4 1983009808
        %v2574 = vunpack.c.0.s8 %v2573
        %v2575 = vperm.slane %v2571, %v2574
        %v2576 = vrot.slane %v2564, 4
        %v2577 = vsel %vm2374, %v2576, %v2558
        %v2578 = vrot.slane %v2558, 4
        %v2579 = vsel %vm2374, %v2564, %v2578
        %v2581 = vunpack.c.l.s4 1934713408
        %v2582 = vunpack.c.0.s8 %v2581
        %v2583 = vperm.slane %v2577, %v2582
        %v2585 = vunpack.c.l.s4 1934713408
        %v2586 = vunpack.c.0.s8 %v2585
        %v2587 = vperm.slane %v2579, %v2586
        %v2588 = vrot.slane %v2575, 4
        %v2589 = vsel %vm2374, %v2588, %v2569
        %v2590 = vrot.slane %v2569, 4
        %v2591 = vsel %vm2374, %v2575, %v2590
        %v2593 = vunpack.c.l.s4 1934713408
        %v2594 = vunpack.c.0.s8 %v2593
        %v2595 = vperm.slane %v2589, %v2594
        %v2597 = vunpack.c.l.s4 1934713408
        %v2598 = vunpack.c.0.s8 %v2597
        %v2599 = vperm.slane %v2591, %v2598
        %v2600 = vrot.slane %v2595, 4
        %v2601 = vsel %vm2374, %v2600, %v2583
        %v2602 = vrot.slane %v2583, 4
        %v2603 = vsel %vm2374, %v2595, %v2602
        %v2604 = vrot.slane %v2599, 4
        %v2605 = vsel %vm2374, %v2604, %v2587
        %v2606 = vrot.slane %v2587, 4
        %v2607 = vsel %vm2374, %v2599, %v2606
        %v2608 = vpack.c.bf16 %v2601, %v2601
        %v2609 = vpack.c.bf16 %v2603, %v2603
        %v2610 = vpack.c.bf16 %v2605, %v2605
        %v2611 = vpack.c.bf16 %v2607, %v2607
        %2613 = vrot.lane.b32.xlu0 %v2362, 120
        %v2614 = vpop.permute.xlu0 %2613
        %2616 = vrot.lane.b32.xlu0 %v2362, 112
        %v2617 = vpop.permute.xlu0 %2616
        %2619 = vrot.lane.b32.xlu0 %v2362, 104
        %v2620 = vpop.permute.xlu0 %2619
        %v2622 = vrot.slane %v2617, 4
        %v2623 = vsel %vm2374, %v2622, %v2362
        %v2624 = vrot.slane %v2362, 4
        %v2625 = vsel %vm2374, %v2617, %v2624
        %v2627 = vunpack.c.l.s4 1983009808
        %v2628 = vunpack.c.0.s8 %v2627
        %v2629 = vperm.slane %v2623, %v2628
        %v2631 = vunpack.c.l.s4 1983009808
        %v2632 = vunpack.c.0.s8 %v2631
        %v2633 = vperm.slane %v2625, %v2632
        %v2634 = vrot.slane %v2620, 4
        %v2635 = vsel %vm2374, %v2634, %v2614
        %v2636 = vrot.slane %v2614, 4
        %v2637 = vsel %vm2374, %v2620, %v2636
        %v2639 = vunpack.c.l.s4 1983009808
        %v2640 = vunpack.c.0.s8 %v2639
        %v2641 = vperm.slane %v2635, %v2640
        %v2643 = vunpack.c.l.s4 1983009808
        %v2644 = vunpack.c.0.s8 %v2643
        %v2645 = vperm.slane %v2637, %v2644
        %v2646 = vrot.slane %v2641, 4
        %v2647 = vsel %vm2374, %v2646, %v2629
        %v2648 = vrot.slane %v2629, 4
        %v2649 = vsel %vm2374, %v2641, %v2648
        %v2651 = vunpack.c.l.s4 1934713408
        %v2652 = vunpack.c.0.s8 %v2651
        %v2653 = vperm.slane %v2647, %v2652
        %v2655 = vunpack.c.l.s4 1934713408
        %v2656 = vunpack.c.0.s8 %v2655
        %v2657 = vperm.slane %v2649, %v2656
        %v2658 = vrot.slane %v2645, 4
        %v2659 = vsel %vm2374, %v2658, %v2633
        %v2660 = vrot.slane %v2633, 4
        %v2661 = vsel %vm2374, %v2645, %v2660
        %v2663 = vunpack.c.l.s4 1934713408
        %v2664 = vunpack.c.0.s8 %v2663
        %v2665 = vperm.slane %v2659, %v2664
        %v2667 = vunpack.c.l.s4 1934713408
        %v2668 = vunpack.c.0.s8 %v2667
        %v2669 = vperm.slane %v2661, %v2668
        %v2670 = vrot.slane %v2653, 4
        %v2671 = vsel %vm2374, 0.0, %v2670
        %v2672 = vrot.slane %v2657, 4
        %v2673 = vsel %vm2374, 0.0, %v2672
        %v2674 = vrot.slane %v2665, 4
        %v2675 = vsel %vm2374, 0.0, %v2674
        %v2676 = vrot.slane %v2669, 4
        %v2677 = vsel %vm2374, 0.0, %v2676
        %v2678 = vsel %vm2374, %v2672, %v2653
        %v2680 = vunpack.c.l.s4 1983009808
        %v2681 = vunpack.c.0.s8 %v2680
        %v2682 = vperm.slane %v2678, %v2681
        %v2683 = vrot.slane %v2673, 4
        %v2684 = vsel %vm2374, %v2683, %v2671
        %v2686 = vunpack.c.l.s4 1983009808
        %v2687 = vunpack.c.0.s8 %v2686
        %v2688 = vperm.slane %v2684, %v2687
        %v2689 = vsel %vm2374, %v2676, %v2665
        %v2691 = vunpack.c.l.s4 1983009808
        %v2692 = vunpack.c.0.s8 %v2691
        %v2693 = vperm.slane %v2689, %v2692
        %v2694 = vrot.slane %v2677, 4
        %v2695 = vsel %vm2374, %v2694, %v2675
        %v2697 = vunpack.c.l.s4 1983009808
        %v2698 = vunpack.c.0.s8 %v2697
        %v2699 = vperm.slane %v2695, %v2698
        %v2700 = vrot.slane %v2688, 4
        %v2701 = vsel %vm2374, %v2700, %v2682
        %v2702 = vrot.slane %v2682, 4
        %v2703 = vsel %vm2374, %v2688, %v2702
        %v2705 = vunpack.c.l.s4 1934713408
        %v2706 = vunpack.c.0.s8 %v2705
        %v2707 = vperm.slane %v2701, %v2706
        %v2709 = vunpack.c.l.s4 1934713408
        %v2710 = vunpack.c.0.s8 %v2709
        %v2711 = vperm.slane %v2703, %v2710
        %v2712 = vrot.slane %v2699, 4
        %v2713 = vsel %vm2374, %v2712, %v2693
        %v2714 = vrot.slane %v2693, 4
        %v2715 = vsel %vm2374, %v2699, %v2714
        %v2717 = vunpack.c.l.s4 1934713408
        %v2718 = vunpack.c.0.s8 %v2717
        %v2719 = vperm.slane %v2713, %v2718
        %v2721 = vunpack.c.l.s4 1934713408
        %v2722 = vunpack.c.0.s8 %v2721
        %v2723 = vperm.slane %v2715, %v2722
        %v2724 = vrot.slane %v2719, 4
        %v2725 = vsel %vm2374, %v2724, %v2707
        %v2726 = vrot.slane %v2707, 4
        %v2727 = vsel %vm2374, %v2719, %v2726
        %v2728 = vrot.slane %v2723, 4
        %v2729 = vsel %vm2374, %v2728, %v2711
        %v2730 = vrot.slane %v2711, 4
        %v2731 = vsel %vm2374, %v2723, %v2730
        %v2732 = vpack.c.bf16 %v2725, %v2725
        %v2733 = vpack.c.bf16 %v2727, %v2727
        %v2734 = vpack.c.bf16 %v2729, %v2729
        %v2735 = vpack.c.bf16 %v2731, %v2731
        %vm2736 = vcmask 64512
        %v2738 = vsel %vm2736, %v2484, 0
        %v2741 = vsel %vm2736, %v2608, 0
        %2743 = vmatpush.bf16.xpose.msra.mxu0 0
        %2744 = vmatpush.bf16.xpose.msra.mxu0 0
        %2745 = vmatpush.bf16.xpose.msra.mxu0 0
        %2746 = vmatpush.bf16.xpose.msra.mxu0 0
        %2747 = vmatpush.bf16.xpose.msra.mxu0 0
        %2748 = vmatpush.bf16.xpose.msra.mxu0 0
        %2749 = vmatpush.bf16.xpose.msra.mxu0 0
        %2750 = vmatpush.bf16.xpose.msra.mxu0 %v2741
        %2751 = vmatmul.bf16.gmra.mxu0 %v2738
        %v2752 = vpop.f32.mrf.mxu0
        %v2753 = vadd.f32 0.0, %v2752
        %v2754 = vpop.f32.mrf.mxu0
        %2755 = vdwg.mxu0
        %v2757 = vsel %vm2736, %v2485, 0
        %v2760 = vsel %vm2736, %v2609, 0
        %2762 = vmatpush.bf16.xpose.msra.mxu0 0
        %2763 = vmatpush.bf16.xpose.msra.mxu0 0
        %2764 = vmatpush.bf16.xpose.msra.mxu0 0
        %2765 = vmatpush.bf16.xpose.msra.mxu0 0
        %2766 = vmatpush.bf16.xpose.msra.mxu0 0
        %2767 = vmatpush.bf16.xpose.msra.mxu0 0
        %2768 = vmatpush.bf16.xpose.msra.mxu0 0
        %2769 = vmatpush.bf16.xpose.msra.mxu0 %v2760
        %2770 = vmatmul.bf16.gmra.mxu0 %v2757
        %v2771 = vpop.f32.mrf.mxu0
        %v2772 = vadd.f32 0.0, %v2771
        %v2773 = vpop.f32.mrf.mxu0
        %2774 = vdwg.mxu0
        %v2776 = vsel %vm2736, %v2486, 0
        %v2779 = vsel %vm2736, %v2610, 0
        %2781 = vmatpush.bf16.xpose.msra.mxu0 0
        %2782 = vmatpush.bf16.xpose.msra.mxu0 0
        %2783 = vmatpush.bf16.xpose.msra.mxu0 0
        %2784 = vmatpush.bf16.xpose.msra.mxu0 0
        %2785 = vmatpush.bf16.xpose.msra.mxu0 0
        %2786 = vmatpush.bf16.xpose.msra.mxu0 0
        %2787 = vmatpush.bf16.xpose.msra.mxu0 0
        %2788 = vmatpush.bf16.xpose.msra.mxu0 %v2779
        %2789 = vmatmul.bf16.gmra.mxu0 %v2776
        %v2790 = vpop.f32.mrf.mxu0
        %v2791 = vadd.f32 0.0, %v2790
        %v2792 = vpop.f32.mrf.mxu0
        %2793 = vdwg.mxu0
        %v2795 = vsel %vm2736, %v2487, 0
        %v2798 = vsel %vm2736, %v2611, 0
        %2800 = vmatpush.bf16.xpose.msra.mxu0 0
        %2801 = vmatpush.bf16.xpose.msra.mxu0 0
        %2802 = vmatpush.bf16.xpose.msra.mxu0 0
        %2803 = vmatpush.bf16.xpose.msra.mxu0 0
        %2804 = vmatpush.bf16.xpose.msra.mxu0 0
        %2805 = vmatpush.bf16.xpose.msra.mxu0 0
        %2806 = vmatpush.bf16.xpose.msra.mxu0 0
        %2807 = vmatpush.bf16.xpose.msra.mxu0 %v2798
        %2808 = vmatmul.bf16.gmra.mxu0 %v2795
        %v2809 = vpop.f32.mrf.mxu0
        %v2810 = vadd.f32 0.0, %v2809
        %v2811 = vpop.f32.mrf.mxu0
        %2812 = vdwg.mxu0
        %v2813 = vmul.f32 %v2753, 0.35355338
        %v2814 = vmul.f32 %v2772, 0.35355338
        %v2815 = vmul.f32 %v2791, 0.35355338
        %v2816 = vmul.f32 %v2810, 0.35355338
        %vm2817 = vcmp.eq.f32.partialorder %v2255, 0.0
        %v2818 = vsel %vm2817, 1, 0
        %v2819 = vperm.slane %v2818, 0
        %vm2820 = vcmp.eq.s32.totalorder %v2819, 1
        %v2821 = vsel %vm2820, -4.2949673e+09, %v2813
        %v2822 = vsel %vm2820, -4.2949673e+09, %v2814
        %v2823 = vsel %vm2820, -4.2949673e+09, %v2815
        %v2824 = vsel %vm2820, -4.2949673e+09, %v2816
        %v2825 = vsel %vm2736, %v2821, -inf
        %2826 = vmax.xlane.f32.xlu0 %v2825
        %v2827 = vpop.xlane.xlu0 %2826
        %v2828 = vsel %vm2736, %v2822, -inf
        %2829 = vmax.xlane.f32.xlu0 %v2828
        %v2830 = vpop.xlane.xlu0 %2829
        %v2831 = vsel %vm2736, %v2823, -inf
        %2832 = vmax.xlane.f32.xlu0 %v2831
        %v2833 = vpop.xlane.xlu0 %2832
        %v2834 = vsel %vm2736, %v2824, -inf
        %2835 = vmax.xlane.f32.xlu0 %v2834
        %v2836 = vpop.xlane.xlu0 %2835
        %v2837 = vsub.f32 %v2821, %v2827
        %v2838 = vsub.f32 %v2822, %v2830
        %v2839 = vsub.f32 %v2823, %v2833
        %v2840 = vsub.f32 %v2824, %v2836
        %v2841 = vmul.f32 %v2837, 1.442695
        %v2842 = vpow.pop %v2841
        %v2843 = vmul.f32 %v2838, 1.442695
        %v2844 = vpow.pop %v2843
        %v2845 = vmul.f32 %v2839, 1.442695
        %v2846 = vpow.pop %v2845
        %v2847 = vmul.f32 %v2840, 1.442695
        %v2848 = vpow.pop %v2847
        %v2849 = vsel %vm2736, %v2842, 0.0
        %2850 = vadd.xlane.f32.xlu0 %v2849
        %v2851 = vpop.xlane.xlu0 %2850
        %v2852 = vsel %vm2736, %v2844, 0.0
        %2853 = vadd.xlane.f32.xlu0 %v2852
        %v2854 = vpop.xlane.xlu0 %2853
        %v2855 = vsel %vm2736, %v2846, 0.0
        %2856 = vadd.xlane.f32.xlu0 %v2855
        %v2857 = vpop.xlane.xlu0 %2856
        %v2858 = vsel %vm2736, %v2848, 0.0
        %2859 = vadd.xlane.f32.xlu0 %v2858
        %v2860 = vpop.xlane.xlu0 %2859
        %v2861 = vrcp.pop %v2851
        %v2862 = vrcp.pop %v2854
        %v2863 = vrcp.pop %v2857
        %v2864 = vrcp.pop %v2860
        %v2865 = vmul.f32 %v2842, %v2861
        %v2866 = vmul.f32 %v2844, %v2862
        %v2867 = vmul.f32 %v2846, %v2863
        %v2868 = vmul.f32 %v2848, %v2864
        %v2869 = vperm.slane %v2255, 0
        %v2870 = vlaneseq
        %v2871 = vshrl.u32 %v2870, 7
        %2873 = vset.pattern.permute.xlu0 %v2871
        %2874 = vperm.xlu0 %2873, %v2869
        %v2875 = vpop.permute.xlu0 %2874
        %v2876 = vmul.f32 %v2865, %v2875
        %v2877 = vmul.f32 %v2866, %v2875
        %v2878 = vmul.f32 %v2867, %v2875
        %v2879 = vmul.f32 %v2868, %v2875
        %v2880 = vpack.c.bf16 %v2876, %v2876
        %v2881 = vpack.c.bf16 %v2877, %v2877
        %v2882 = vpack.c.bf16 %v2878, %v2878
        %v2883 = vpack.c.bf16 %v2879, %v2879
        %v2885 = vsel %vm2736, %v2880, 0
        %vm2887 = vcmask 1043456
        %v2889 = vsel %vm2887, %v2732, 0
        %2891 = vmatpush.bf16.msra.mxu0 0
        %2892 = vmatpush.bf16.msra.mxu0 0
        %2893 = vmatpush.bf16.msra.mxu0 0
        %2894 = vmatpush.bf16.msra.mxu0 0
        %2895 = vmatpush.bf16.msra.mxu0 0
        %2896 = vmatpush.bf16.msra.mxu0 0
        %2897 = vmatpush.bf16.msra.mxu0 0
        %2898 = vmatpush.bf16.msra.mxu0 %v2889
        %2899 = vmatmul.bf16.gmra.mxu0 %v2885
        %v2900 = vpop.f32.mrf.mxu0
        %v2901 = vadd.f32 0.0, %v2900
        %v2902 = vpop.f32.mrf.mxu0
        %2903 = vdwg.mxu0
        %v2905 = vsel %vm2736, %v2881, 0
        %v2908 = vsel %vm2887, %v2733, 0
        %2910 = vmatpush.bf16.msra.mxu0 0
        %2911 = vmatpush.bf16.msra.mxu0 0
        %2912 = vmatpush.bf16.msra.mxu0 0
        %2913 = vmatpush.bf16.msra.mxu0 0
        %2914 = vmatpush.bf16.msra.mxu0 0
        %2915 = vmatpush.bf16.msra.mxu0 0
        %2916 = vmatpush.bf16.msra.mxu0 0
        %2917 = vmatpush.bf16.msra.mxu0 %v2908
        %2918 = vmatmul.bf16.gmra.mxu0 %v2905
        %v2919 = vpop.f32.mrf.mxu0
        %v2920 = vadd.f32 0.0, %v2919
        %v2921 = vpop.f32.mrf.mxu0
        %2922 = vdwg.mxu0
        %v2924 = vsel %vm2736, %v2882, 0
        %v2927 = vsel %vm2887, %v2734, 0
        %2929 = vmatpush.bf16.msra.mxu0 0
        %2930 = vmatpush.bf16.msra.mxu0 0
        %2931 = vmatpush.bf16.msra.mxu0 0
        %2932 = vmatpush.bf16.msra.mxu0 0
        %2933 = vmatpush.bf16.msra.mxu0 0
        %2934 = vmatpush.bf16.msra.mxu0 0
        %2935 = vmatpush.bf16.msra.mxu0 0
        %2936 = vmatpush.bf16.msra.mxu0 %v2927
        %2937 = vmatmul.bf16.gmra.mxu0 %v2924
        %v2938 = vpop.f32.mrf.mxu0
        %v2939 = vadd.f32 0.0, %v2938
        %v2940 = vpop.f32.mrf.mxu0
        %2941 = vdwg.mxu0
        %v2943 = vsel %vm2736, %v2883, 0
        %v2946 = vsel %vm2887, %v2735, 0
        %2948 = vmatpush.bf16.msra.mxu0 0
        %2949 = vmatpush.bf16.msra.mxu0 0
        %2950 = vmatpush.bf16.msra.mxu0 0
        %2951 = vmatpush.bf16.msra.mxu0 0
        %2952 = vmatpush.bf16.msra.mxu0 0
        %2953 = vmatpush.bf16.msra.mxu0 0
        %2954 = vmatpush.bf16.msra.mxu0 0
        %2955 = vmatpush.bf16.msra.mxu0 %v2946
        %2956 = vmatmul.bf16.gmra.mxu0 %v2943
        %v2957 = vpop.f32.mrf.mxu0
        %v2958 = vadd.f32 0.0, %v2957
        %v2959 = vpop.f32.mrf.mxu0
        %2960 = vdwg.mxu0
        %v2961 = vrot.slane %v2939, 4
        %v2962 = vsel %vm2374, %v2961, %v2901
        %v2963 = vrot.slane %v2901, 4
        %v2964 = vsel %vm2374, %v2939, %v2963
        %v2966 = vunpack.c.l.s4 1983009808
        %v2967 = vunpack.c.0.s8 %v2966
        %v2968 = vperm.slane %v2962, %v2967
        %v2970 = vunpack.c.l.s4 1983009808
        %v2971 = vunpack.c.0.s8 %v2970
        %v2972 = vperm.slane %v2964, %v2971
        %v2973 = vrot.slane %v2958, 4
        %v2974 = vsel %vm2374, %v2973, %v2920
        %v2975 = vrot.slane %v2920, 4
        %v2976 = vsel %vm2374, %v2958, %v2975
        %v2978 = vunpack.c.l.s4 1983009808
        %v2979 = vunpack.c.0.s8 %v2978
        %v2980 = vperm.slane %v2974, %v2979
        %v2982 = vunpack.c.l.s4 1983009808
        %v2983 = vunpack.c.0.s8 %v2982
        %v2984 = vperm.slane %v2976, %v2983
        %v2985 = vrot.slane %v2980, 4
        %v2986 = vsel %vm2374, %v2985, %v2968
        %v2987 = vrot.slane %v2968, 4
        %v2988 = vsel %vm2374, %v2980, %v2987
        %v2990 = vunpack.c.l.s4 1934713408
        %v2991 = vunpack.c.0.s8 %v2990
        %v2992 = vperm.slane %v2986, %v2991
        %v2994 = vunpack.c.l.s4 1934713408
        %v2995 = vunpack.c.0.s8 %v2994
        %v2996 = vperm.slane %v2988, %v2995
        %v2997 = vrot.slane %v2984, 4
        %v2998 = vsel %vm2374, %v2997, %v2972
        %v2999 = vrot.slane %v2972, 4
        %v3000 = vsel %vm2374, %v2984, %v2999
        %v3002 = vunpack.c.l.s4 1934713408
        %v3003 = vunpack.c.0.s8 %v3002
        %v3004 = vperm.slane %v2998, %v3003
        %v3006 = vunpack.c.l.s4 1934713408
        %v3007 = vunpack.c.0.s8 %v3006
        %v3008 = vperm.slane %v3000, %v3007
        %v3009 = vrot.slane %v2992, 4
        %v3010 = vsel %vm2374, 0.0, %v3009
        %v3011 = vrot.slane %v2996, 4
        %v3012 = vsel %vm2374, 0.0, %v3011
        %v3013 = vrot.slane %v3004, 4
        %v3014 = vsel %vm2374, 0.0, %v3013
        %v3015 = vrot.slane %v3008, 4
        %v3016 = vsel %vm2374, 0.0, %v3015
        %v3017 = vsel %vm2374, %v3011, %v2992
        %v3019 = vunpack.c.l.s4 1983009808
        %v3020 = vunpack.c.0.s8 %v3019
        %v3021 = vperm.slane %v3017, %v3020
        %v3022 = vrot.slane %v3012, 4
        %v3023 = vsel %vm2374, %v3022, %v3010
        %v3025 = vunpack.c.l.s4 1983009808
        %v3026 = vunpack.c.0.s8 %v3025
        %v3027 = vperm.slane %v3023, %v3026
        %v3028 = vsel %vm2374, %v3015, %v3004
        %v3030 = vunpack.c.l.s4 1983009808
        %v3031 = vunpack.c.0.s8 %v3030
        %v3032 = vperm.slane %v3028, %v3031
        %v3033 = vrot.slane %v3016, 4
        %v3034 = vsel %vm2374, %v3033, %v3014
        %v3036 = vunpack.c.l.s4 1983009808
        %v3037 = vunpack.c.0.s8 %v3036
        %v3038 = vperm.slane %v3034, %v3037
        %v3039 = vrot.slane %v3027, 4
        %v3040 = vsel %vm2374, %v3039, %v3021
        %v3041 = vrot.slane %v3021, 4
        %v3042 = vsel %vm2374, %v3027, %v3041
        %v3044 = vunpack.c.l.s4 1934713408
        %v3045 = vunpack.c.0.s8 %v3044
        %v3046 = vperm.slane %v3040, %v3045
        %v3048 = vunpack.c.l.s4 1934713408
        %v3049 = vunpack.c.0.s8 %v3048
        %v3050 = vperm.slane %v3042, %v3049
        %v3051 = vrot.slane %v3038, 4
        %v3052 = vsel %vm2374, %v3051, %v3032
        %v3053 = vrot.slane %v3032, 4
        %v3054 = vsel %vm2374, %v3038, %v3053
        %v3056 = vunpack.c.l.s4 1934713408
        %v3057 = vunpack.c.0.s8 %v3056
        %v3058 = vperm.slane %v3052, %v3057
        %v3060 = vunpack.c.l.s4 1934713408
        %v3061 = vunpack.c.0.s8 %v3060
        %v3062 = vperm.slane %v3054, %v3061
        %v3063 = vrot.slane %v3058, 4
        %v3064 = vsel %vm2374, %v3063, %v3046
        %v3065 = vrot.slane %v3046, 4
        %v3066 = vsel %vm2374, %v3058, %v3065
        %v3067 = vrot.slane %v3062, 4
        %v3068 = vsel %vm2374, %v3067, %v3050
        %v3069 = vrot.slane %v3050, 4
        %v3070 = vsel %vm2374, %v3062, %v3069
        %3072 = vrot.lane.b32.xlu0 %v3066, 8
        %v3073 = vpop.permute.xlu0 %3072
        %3076 = vrot.lane.b32.xlu0 %v3068, 16
        %v3077 = vpop.permute.xlu0 %3076
        %3080 = vrot.lane.b32.xlu0 %v3070, 24
        %v3081 = vpop.permute.xlu0 %3080
        %v3083 = vsel %vm2736, %v3064, %v3073
        %vm3084 = vcmask 130048
        %v3085 = vsel %vm3084, %v3083, %v3077
        %vm3086 = vcmask 195584
        %v3087 = vsel %vm3086, %v3085, %v3081
        %v3088 = vadd.f32 %v3087, %v2254
        %v3089 = vld [vmem:[%s881] sm:$0x1]
        %v3090 = vld [vmem:[%s884] sm:$0x1]
        %v3091 = vsel %vm2277, %v3088, 0.0
        %3092 = vadd.xlane.f32.xlu0 %v3091
        %v3093 = vpop.xlane.xlu0 %3092
        %v3094 = vrcp.pop 32.0
        %v3095 = vmul.f32 32.0, %v3094
        %v3096 = vsub.f32 1.0, %v3095
        %v3097 = vmul.f32 %v3094, %v3096
        %v3098 = vadd.f32 %v3094, %v3097
        %vm3099 = vweird.f32 %v3094
        %v3100 = vsel %vm3099, %v3094, %v3098
        %v3101 = vmul.f32 %v3093, %v3100
        %v3102 = vsub.f32 %v3088, %v3101
        %v3103 = vmul.f32 %v3102, %v3102
        %v3104 = vsel %vm2277, %v3103, 0.0
        %3105 = vadd.xlane.f32.xlu0 %v3104
        %v3106 = vpop.xlane.xlu0 %3105
        %v3107 = vmul.f32 %v3106, 0.032258064
        %v3108 = vrsqrt.pop %v3107
        %v3109 = vmul.f32 %v3108, %v3107
        %v3110 = vmul.f32 %v3109, %v3108
        %v3111 = vmul.f32 0.5, %v3110
        %v3112 = vsub.f32 1.5, %v3111
        %v3113 = vmul.f32 %v3108, %v3112
        %v3114 = vmul.f32 %v3107, %v3113
        %vm3115 = vcmp.eq.f32.partialorder %v3107, inf
        %v3116 = vsel %vm3115, %v3107, %v3114
        %vm3117 = vcmp.eq.f32.partialorder %v3107, 0.0
        %v3118 = vand.u32 %v3107, 2147483648
        %v3119 = vsel %vm3117, %v3118, %v3116
        %v3120 = vadd.f32 %v3119, 1e-08
        %v3121 = vrcp.pop %v3120
        %v3122 = vmul.f32 %v3102, %v3121
        %v3124 = vperm.slane %v3089, 0
        %v3126 = vmul.f32 %v3124, %v3122
        %v3128 = vperm.slane %v3090, 0
        %v3130 = vadd.f32 %v3126, %v3128
        %v3131 = vpack.c.bf16 %v3130, %v3130
        %v3132 = vld [vmem:[%s889] sm:$0xf]
        %v3133 = vld [vmem:[%s889 + $0x4] sm:$0xf]
        %v3134 = vld [vmem:[%s889 + $0x8] sm:$0xf]
        %v3135 = vld [vmem:[%s889 + $0xc] sm:$0xf]
        %v3136 = vld [vmem:[%s892] sm:$0x1]
        %v3138 = vperm.slane %v3136, 0
        %v3144 = vunpack.c.l.b16 %v3132
        %v3145 = vunpack.c.l.b16 %v3133
        %v3146 = vunpack.c.l.b16 %v3134
        %v3147 = vunpack.c.l.b16 %v3135
        %v3148 = vpack.c.b16 %v3145, %v3144
        %v3149 = vpack.c.b16 %v3147, %v3146
        %v3153 = vsel %vm2277, %v3131, 0
        %3155 = vmatpush.bf16.msra.mxu0 0
        %3156 = vmatpush.bf16.msra.mxu0 0
        %3157 = vmatpush.bf16.msra.mxu0 0
        %3158 = vmatpush.bf16.msra.mxu0 0
        %3159 = vmatpush.bf16.msra.mxu0 0
        %3160 = vmatpush.bf16.msra.mxu0 0
        %3161 = vmatpush.bf16.msra.mxu0 %v3149
        %3162 = vmatpush.bf16.msra.mxu0 %v3148
        %3163 = vmatmul.bf16.gmra.mxu0 %v3153
        %v3164 = vpop.f32.mrf.mxu0
        %v3165 = vadd.f32 %v3138, %v3164
        %v3166 = vpop.f32.mrf.mxu0
        %3167 = vdwg.mxu0
        %v3168 = vmax.f32 %v3165, 0.0
        %v3169 = vpack.c.bf16 %v3168, %v3168
        %v3170 = vld [vmem:[%s897] sm:$0xf]
        %v3171 = vld [vmem:[%s897 + $0x4] sm:$0xf]
        %v3172 = vld [vmem:[%s897 + $0x8] sm:$0xf]
        %v3173 = vld [vmem:[%s897 + $0xc] sm:$0xf]
        %v3174 = vld [vmem:[%s897 + $0x10] sm:$0xf]
        %v3175 = vld [vmem:[%s897 + $0x14] sm:$0xf]
        %v3176 = vld [vmem:[%s897 + $0x18] sm:$0xf]
        %v3177 = vld [vmem:[%s897 + $0x1c] sm:$0xf]
        %v3178 = vld [vmem:[%s897 + $0x20] sm:$0xf]
        %v3179 = vld [vmem:[%s897 + $0x24] sm:$0xf]
        %v3180 = vld [vmem:[%s897 + $0x28] sm:$0xf]
        %v3181 = vld [vmem:[%s897 + $0x2c] sm:$0xf]
        %v3182 = vld [vmem:[%s897 + $0x30] sm:$0xf]
        %v3183 = vld [vmem:[%s897 + $0x34] sm:$0xf]
        %v3184 = vld [vmem:[%s897 + $0x38] sm:$0xf]
        %v3185 = vld [vmem:[%s897 + $0x3c] sm:$0xf]
        %v3186 = vld [vmem:[%s900] sm:$0x1]
        %v3188 = vperm.slane %v3186, 0
        %v3206 = vunpack.c.l.b16 %v3170
        %v3207 = vunpack.c.l.b16 %v3171
        %v3208 = vunpack.c.l.b16 %v3172
        %v3209 = vunpack.c.l.b16 %v3173
        %v3210 = vunpack.c.l.b16 %v3174
        %v3211 = vunpack.c.l.b16 %v3175
        %v3212 = vunpack.c.l.b16 %v3176
        %v3213 = vunpack.c.l.b16 %v3177
        %v3214 = vunpack.c.l.b16 %v3178
        %v3215 = vunpack.c.l.b16 %v3179
        %v3216 = vunpack.c.l.b16 %v3180
        %v3217 = vunpack.c.l.b16 %v3181
        %v3218 = vunpack.c.l.b16 %v3182
        %v3219 = vunpack.c.l.b16 %v3183
        %v3220 = vunpack.c.l.b16 %v3184
        %v3221 = vunpack.c.l.b16 %v3185
        %v3222 = vpack.c.b16 %v3207, %v3206
        %v3223 = vpack.c.b16 %v3209, %v3208
        %v3224 = vpack.c.b16 %v3211, %v3210
        %v3225 = vpack.c.b16 %v3213, %v3212
        %v3226 = vpack.c.b16 %v3215, %v3214
        %v3227 = vpack.c.b16 %v3217, %v3216
        %v3228 = vpack.c.b16 %v3219, %v3218
        %v3229 = vpack.c.b16 %v3221, %v3220
        %3238 = vmatpush.bf16.msra.mxu0 %v3229
        %3239 = vmatpush.bf16.msra.mxu0 %v3228
        %3240 = vmatpush.bf16.msra.mxu0 %v3227
        %3241 = vmatpush.bf16.msra.mxu0 %v3226
        %3242 = vmatpush.bf16.msra.mxu0 %v3225
        %3243 = vmatpush.bf16.msra.mxu0 %v3224
        %3244 = vmatpush.bf16.msra.mxu0 %v3223
        %3245 = vmatpush.bf16.msra.mxu0 %v3222
        %3246 = vmatmul.bf16.gmra.mxu0 %v3169
        %v3247 = vpop.f32.mrf.mxu0
        %v3248 = vadd.f32 %v3188, %v3247
        %v3249 = vpop.f32.mrf.mxu0
        %3250 = vdwg.mxu0
        %v3251 = vadd.f32 %v3248, %v3130
        %v3252 = vld [vmem:[%s903] sm:$0x1]
        %v3253 = vld [vmem:[%s906] sm:$0x1]
        %v3254 = vsel %vm2277, %v3251, 0.0
        %3255 = vadd.xlane.f32.xlu0 %v3254
        %v3256 = vpop.xlane.xlu0 %3255
        %v3257 = vmul.f32 %v3256, %v3100
        %v3258 = vsub.f32 %v3251, %v3257
        %v3259 = vmul.f32 %v3258, %v3258
        %v3260 = vsel %vm2277, %v3259, 0.0
        %3261 = vadd.xlane.f32.xlu0 %v3260
        %v3262 = vpop.xlane.xlu0 %3261
        %v3263 = vmul.f32 %v3262, 0.032258064
        %v3264 = vrsqrt.pop %v3263
        %v3265 = vmul.f32 %v3264, %v3263
        %v3266 = vmul.f32 %v3265, %v3264
        %v3267 = vmul.f32 0.5, %v3266
        %v3268 = vsub.f32 1.5, %v3267
        %v3269 = vmul.f32 %v3264, %v3268
        %v3270 = vmul.f32 %v3263, %v3269
        %vm3271 = vcmp.eq.f32.partialorder %v3263, inf
        %v3272 = vsel %vm3271, %v3263, %v3270
        %vm3273 = vcmp.eq.f32.partialorder %v3263, 0.0
        %v3274 = vand.u32 %v3263, 2147483648
        %v3275 = vsel %vm3273, %v3274, %v3272
        %v3276 = vadd.f32 %v3275, 1e-08
        %v3277 = vrcp.pop %v3276
        %v3278 = vmul.f32 %v3258, %v3277
        %v3280 = vperm.slane %v3252, 0
        %v3282 = vmul.f32 %v3280, %v3278
        %v3284 = vperm.slane %v3253, 0
        %v3286 = vadd.f32 %v3282, %v3284
        %3287 = vst.msk [vmem:[%s846] sm:$0xff] %vm2277, %v3286
        %s3288 = sand.u32 %s576, 1
        %s3289 = scalar_lea.sflag [#allocation3], %s3288
        %s3290 = sand.u32 %s576, 1
        %s3291 = smul.addr %s3290, 8
        %s3292 = scalar_lea.vmem [#allocation2], %s3291
        // Predicated region
        $region109: #{tpu_custom_call.1} parent=103 // pred_check
          %p3293 = pneg %p586
        $region110: #{tpu_custom_call.1} parent=103 // pred_check_branch
          %3295 = sbr.rel (%p3293) target = $region112
        $region111: #{tpu_custom_call.1} parent=103 // pred_region
          %3297 = vsyncadd %s3289, 0
          %s3298 = smul.addr %s39, 8
          %s3299 = scalar_lea.hbm %s21, %s3298
          %s3301 = sshll.u32 %s3292, 4
          %s3302 = int_to_ptr.vmem [resolvable:$true] %s3301
          %s3303 = sshll.u32 %s3299, 4
          %s3304 = int_to_ptr.hbm [resolvable:$true] %s3303
          %3306 = dma.vmem_to_hbm [thread:$0]  %s3302, 128, %s3304, %s3289
        $region112: #{tpu_custom_call.1} parent=103 // pred_fallthru
          _
      $region104: #{tpu_custom_call.1} parent=5 // pred_fallthru
        _
      %p3307 = scmp.le.s32.totalorder 2, %s30
      // Predicated region
      $region113: #{tpu_custom_call.1} parent=5 // pred_check
        %p3308 = pneg %p3307
      $region114: #{tpu_custom_call.1} parent=5 // pred_check_branch
        %3310 = sbr.rel (%p3308) target = $region116
      $region115: #{tpu_custom_call.1} parent=5 // pred_region
        %s3311 = ssub.s32 %s30, 2
        // Predicated region
        $region117: #{tpu_custom_call.1} parent=115 // pred_check
          %p3312 = pneg %p592
        $region118: #{tpu_custom_call.1} parent=115 // pred_check_branch
          %3314 = sbr.rel (%p3312) target = $region120
        $region119: #{tpu_custom_call.1} parent=115 // pred_region
          %s3315 = sand.u32 %s577, 1
          %s3316 = scalar_lea.sflag [#allocation3], %s3315
          %s3317 = sand.u32 %s577, 1
          %s3318 = smul.addr %s3317, 8
          %s3319 = scalar_lea.vmem [#allocation2], %s3318
          %3321 = dma.done %s3316, 128
        $region120: #{tpu_custom_call.1} parent=115 // pred_fallthru
          _
      $region116: #{tpu_custom_call.1} parent=5 // pred_fallthru
        _
    $region6: #{tpu_custom_call.1} parent=1 // loop_footer
      %s34 = sadd.s32 1, %s30
    $region7: #{tpu_custom_call.1} parent=1 // loop_footer_branch
      %29 = sbr.rel target = $region3
    $region8: #{tpu_custom_call.1} parent=1 // loop_exit
      _
    %3322 = vsyncpa [#allocation3], 1
    %s3323 = scalar_lea.sflag [#allocation3], 1
    %3324 = vsyncpa %s3323, 1

</llo_original>
